<compile_context>
chip_gen: v7x
topology: tpu7x:2x2x1
jax: 0.10.0
libtpu: 0.0.40
codegen_flags: <defaults>
</compile_context>

<pallas_src>
import functools

import jax
import jax.numpy as jnp
import numpy as np
from jax.experimental import pallas as pl
from jax.experimental.pallas import tpu as pltpu


def _round_up(v, m):
    return ((v + m - 1) // m) * m


def _pick_depth_tile(cin, cout, plane, d, max_off, budget_bytes=28 * 1024 * 1024):
    """Largest depth tile whose per-step VMEM footprint fits the budget.

    Budget is sized so the working set stays well below the 48 MiB vmem limit we
    request, which fits v7x's 64 MiB physical VMEM; v5e/v6e (128 MiB) could go
    larger but one safe configuration is used for every generation.
    """
    best = 1
    for td in range(1, d + 1):
        cto = _round_up(td * plane, 256)
        csub = cto // 2
        x_t = 2 * cin * (cto + max_off) * 2        # input slab, double-buffered, bf16
        w_t = 2 * 8 * cout * 27 * cin * 2          # folded weights, bf16
        o_t = 2 * 8 * cout * cto * 2               # output tile, double-buffered, bf16
        p_t = 2 * 27 * cin * csub * 2              # im2col scratch (2 slots), bf16
        a_t = 8 * cout * csub * 4                  # f32 accumulator / epilogue temp
        if x_t + w_t + o_t + p_t + a_t <= budget_bytes:
            best = td
        else:
            break
    return best


def _upblock3d_kernel(x_ref, w_ref, scale_ref, shift_ref, o_ref, p_ref, *,
                      cin, csub, n_sub, offsets):
    """One (batch, depth-tile) grid step.

    x_ref:     (1, 1, Cin, IN_TILE)  bf16  input slab (tile cols + halo), spatial on lanes
    w_ref:     (8*Cout, 27*Cin)      bf16  folded block-sparse deconv weights (resident)
    scale_ref: (8*Cout, 1)           f32   fused BatchNorm scale per output row
    shift_ref: (8*Cout, 1)           f32   fused BatchNorm shift per output row
    o_ref:     (1, 8*Cout, CTO)      bf16  parity-major output tile, lane-dense
    p_ref:     (2, 27*Cin, csub)     bf16  double-buffered im2col scratch
    """
    n_bufs = p_ref.shape[0]
    for s in range(n_sub):
        slot = s % n_bufs
        col0 = s * csub
        # Folded im2col for this column sub-chunk: 27 contiguous STATIC lane slices.
        # Writing into the alternate scratch slot lets the copies for sub-chunk s
        # overlap the MXU matmul of sub-chunk s-1.
        for i, off in enumerate(offsets):
            p_ref[slot, i * cin:(i + 1) * cin, :] = \
                x_ref[0, 0, :, off + col0:off + col0 + csub]
        # One MXU matmul: all 27 taps folded into K, all 8 parity classes folded into M.
        acc = jnp.dot(w_ref[...], p_ref[slot, :, :],
                      preferred_element_type=jnp.float32)
        # Fused eval-BatchNorm + ReLU epilogue in f32, bf16 store (lane-dense).
        y = jnp.maximum(acc * scale_ref[...] + shift_ref[...], 0.0)
        o_ref[0, :, col0:col0 + csub] = y.astype(o_ref.dtype)


def upblock3d_forward(x, conv_weight, bn_gamma, bn_beta, bn_mean, bn_var,
                      skipped=None, eps=1e-5, depth_tile=None):
    """UpBlock3D forward.

    x:           (N, Cx, D, H, W)      float32, NCDHW
    conv_weight: (Cin, Cout, 4, 4, 4)  PyTorch ConvTranspose3d weight, Cin = Cx (+ Cskip)
    bn_*:        (Cout,)               BatchNorm3d affine params + running stats
    skipped:     optional (N, Cskip, D, H, W), concatenated in front of x (dim=1)
    depth_tile:  optional int, output-depth planes per grid step (None = auto from VMEM budget)
    returns:     (N, Cout, 2D, 2H, 2W) float32
    """
    if skipped is not None:
        x = jnp.concatenate([skipped, x], axis=1)
    N, Cin, D, H, W = x.shape
    Cout = conv_weight.shape[1]
    assert conv_weight.shape == (Cin, Cout, 4, 4, 4)

    Dp, Hp, Wp = D + 2, H + 2, W + 2
    plane = Hp * Wp
    S = Dp * plane
    max_off = 2 * plane + 2 * Wp + 2            # largest of the 27 window offsets

    # ---- depth tiling ------------------------------------------------------------------
    if depth_tile is None:
        depth_tile = _pick_depth_tile(Cin, Cout, plane, D, max_off)
    td = max(1, min(int(depth_tile), D))
    n_dt = -(-D // td)                          # ceil; last tile may be ragged (garbage pad)
    cto = _round_up(td * plane, 256)            # output cols per tile, lane-aligned
    csub = cto // 2                             # in-kernel sub-chunk width
    in_tile = cto + max_off                     # input cols per tile incl. halo
    s_need = (n_dt - 1) * td * plane + in_tile
    s_ext = max(S, s_need)

    # ---- input: pad, flatten spatial onto lanes, chop into halo'd depth tiles (bf16) ----
    xp = jnp.pad(x.astype(jnp.bfloat16), ((0, 0), (0, 0), (1, 1), (1, 1), (1, 1)))
    x_flat = xp.reshape(N, Cin, S)
    if s_ext > S:
        x_flat = jnp.pad(x_flat, ((0, 0), (0, 0), (0, s_ext - S)))
    x_tiles = jnp.stack(
        [jax.lax.slice_in_dim(x_flat, dt * td * plane, dt * td * plane + in_tile, axis=2)
         for dt in range(n_dt)], axis=1)        # (N, n_dt, Cin, IN_TILE)

    # ---- 27 shifted-window lane offsets, window index i = a*9 + b*3 + c ----
    offsets = tuple(a * plane + b * Wp + c
                    for a in range(3) for b in range(3) for c in range(3))

    # ---- folded block-sparse deconv weight matrix Wm[(parity, cout), (window, cin)] ----
    # Built with a single gather + transpose/reshape (no .at[].set chain).
    kd = np.zeros((8, 27), np.int32)
    kh = np.zeros((8, 27), np.int32)
    kw = np.zeros((8, 27), np.int32)
    msk = np.zeros((8, 27), np.float32)
    for pd in range(2):
        for ph in range(2):
            for pw in range(2):
                p = pd * 4 + ph * 2 + pw
                for a in range(3):
                    for b in range(3):
                        for c in range(3):
                            jd, jh, jw = a - pd, b - ph, c - pw
                            if 0 <= jd <= 1 and 0 <= jh <= 1 and 0 <= jw <= 1:
                                i = a * 9 + b * 3 + c
                                msk[p, i] = 1.0
                                kd[p, i] = 3 - pd - 2 * jd
                                kh[p, i] = 3 - ph - 2 * jh
                                kw[p, i] = 3 - pw - 2 * jw
    wblk = conv_weight[:, :, kd, kh, kw] * jnp.asarray(msk)[None, None]   # (Cin, Cout, 8, 27)
    wm = jnp.transpose(wblk, (2, 1, 3, 0)).reshape(8 * Cout, 27 * Cin).astype(jnp.bfloat16)

    # ---- eval-mode BatchNorm folded into per-output-row scale/shift ----
    scale = bn_gamma / jnp.sqrt(bn_var + eps)
    shift = bn_beta - bn_mean * scale
    scale_rows = jnp.tile(scale, 8).reshape(8 * Cout, 1).astype(jnp.float32)
    shift_rows = jnp.tile(shift, 8).reshape(8 * Cout, 1).astype(jnp.float32)

    kern = functools.partial(_upblock3d_kernel, cin=Cin, csub=csub, n_sub=2,
                             offsets=offsets)

    out_pm = pl.pallas_call(
        kern,
        out_shape=jax.ShapeDtypeStruct((N, 8 * Cout, n_dt * cto), jnp.bfloat16),
        grid_spec=pltpu.PrefetchScalarGridSpec(
            num_scalar_prefetch=0,
            grid=(N, n_dt),
            in_specs=[
                pl.BlockSpec((1, 1, Cin, in_tile), lambda n, dt: (n, dt, 0, 0)),
                pl.BlockSpec((8 * Cout, 27 * Cin), lambda n, dt: (0, 0)),
                pl.BlockSpec((8 * Cout, 1), lambda n, dt: (0, 0)),
                pl.BlockSpec((8 * Cout, 1), lambda n, dt: (0, 0)),
            ],
            out_specs=pl.BlockSpec((1, 8 * Cout, cto), lambda n, dt: (n, 0, dt)),
            scratch_shapes=[pltpu.VMEM((2, 27 * Cin, csub), jnp.bfloat16)],
        ),
        compiler_params=pltpu.CompilerParams(
            dimension_semantics=("parallel", "parallel"),
            vmem_limit_bytes=48 * 1024 * 1024,
        ),
    )(x_tiles, wm, scale_rows, shift_rows)

    # ---- un-fold (all in bf16): drop pad/garbage columns, interleave the 8 parity classes ----
    out = out_pm.reshape(N, 2, 2, 2, Cout, n_dt, cto)[..., :td * plane]
    out = out.reshape(N, 2, 2, 2, Cout, n_dt * td, Hp, Wp)[..., :D, :H, :W]
    out = jnp.transpose(out, (0, 4, 5, 1, 6, 2, 7, 3))
    return out.reshape(N, Cout, 2 * D, 2 * H, 2 * W).astype(jnp.float32)


def _reference_upblock3d(x, conv_weight, bn_gamma, bn_beta, bn_mean, bn_var, eps=1e-5):
    """Pure-JAX reference: ConvTranspose3d(4, s=2, p=1, no bias) + eval BN + ReLU."""
    w_flip = conv_weight[:, :, ::-1, ::-1, ::-1]
    w_oidhw = jnp.transpose(w_flip, (1, 0, 2, 3, 4))          # (Cout, Cin, 4, 4, 4)
    y = jax.lax.conv_general_dilated(
        x, w_oidhw,
        window_strides=(1, 1, 1),
        padding=[(2, 2), (2, 2), (2, 2)],
        lhs_dilation=(2, 2, 2),
        dimension_numbers=("NCDHW", "OIDHW", "NCDHW"),
        precision=jax.lax.Precision.HIGHEST)
    scale = bn_gamma / jnp.sqrt(bn_var + eps)
    shift = bn_beta - bn_mean * scale
    y = y * scale.reshape(1, -1, 1, 1, 1) + shift.reshape(1, -1, 1, 1, 1)
    return jnp.maximum(y, 0.0)


if __name__ == "__main__":
    # Small config: UpBlock3D(in_channels=16, out_channels=8) with a skip connection.
    x_channels, skip_channels, out_channels = 8, 8, 8
    in_channels = x_channels + skip_channels
    N, D, H, W = 2, 8, 8, 8

    key = jax.random.PRNGKey(0)
    kx, ks, kw_, kg, kb, km, kv = jax.random.split(key, 7)

    x = jax.random.normal(kx, (N, x_channels, D, H, W), dtype=jnp.float32)
    skipped = jax.random.normal(ks, (N, skip_channels, D, H, W), dtype=jnp.float32)
    fan = in_channels * 4 ** 3
    conv_weight = jax.random.normal(
        kw_, (in_channels, out_channels, 4, 4, 4), dtype=jnp.float32) / np.sqrt(fan)
    bn_gamma = jax.random.uniform(kg, (out_channels,), jnp.float32, 0.5, 1.5)
    bn_beta = 0.1 * jax.random.normal(kb, (out_channels,), jnp.float32)
    bn_mean = 0.1 * jax.random.normal(km, (out_channels,), jnp.float32)
    bn_var = jax.random.uniform(kv, (out_channels,), jnp.float32, 0.5, 1.5)

    # Reference with the same bf16-rounded operands the kernel feeds the MXU; the kernel
    # also stores bf16, so compare against the bf16-rounded reference output.
    x_cat = jnp.concatenate([skipped, x], axis=1)
    ref = _reference_upblock3d(
        x_cat.astype(jnp.bfloat16).astype(jnp.float32),
        conv_weight.astype(jnp.bfloat16).astype(jnp.float32),
        bn_gamma, bn_beta, bn_mean, bn_var)
    ref = jax.block_until_ready(ref)
    ref_bf = np.asarray(ref.astype(jnp.bfloat16).astype(jnp.float32))

    # 1) Auto depth-tile (single tile at this small size).
    fwd_auto = jax.jit(upblock3d_forward)
    out_auto = jax.block_until_ready(
        fwd_auto(x, conv_weight, bn_gamma, bn_beta, bn_mean, bn_var, skipped=skipped))
    assert out_auto.shape == (N, out_channels, 2 * D, 2 * H, 2 * W)
    np.testing.assert_allclose(np.asarray(out_auto), ref_bf, rtol=2e-2, atol=2e-2)

    # 2) Forced small depth tile: exercises the multi-tile grid and ragged last tile path.
    fwd_tiled = jax.jit(functools.partial(upblock3d_forward, depth_tile=3))
    out_tiled = jax.block_until_ready(
        fwd_tiled(x, conv_weight, bn_gamma, bn_beta, bn_mean, bn_var, skipped=skipped))
    np.testing.assert_allclose(np.asarray(out_tiled), ref_bf, rtol=2e-2, atol=2e-2)

    print("KERNEL_OK")
</pallas_src>

<mosaic_0001>
module attributes {stable_mosaic.version = 11 : i64} {
  func.func @_upblock3d_kernel(%arg0: i32, %arg1: i32, %arg2: memref<1x1x16x1246xbf16, #tpu.memory_space<vmem>>, %arg3: memref<64x432xbf16, #tpu.memory_space<vmem>>, %arg4: memref<64x1xf32, #tpu.memory_space<vmem>>, %arg5: memref<64x1xf32, #tpu.memory_space<vmem>>, %arg6: memref<1x64x1024xbf16, #tpu.memory_space<vmem>>, %arg7: memref<2x432x512xbf16, #tpu.memory_space<vmem>>) attributes {dimension_semantics = [#tpu.dimension_semantics<parallel>, #tpu.dimension_semantics<parallel>], iteration_bounds = array<i64: 2, 1>, scalar_prefetch = 0 : i64, scratch_operands = 1 : i64, tpu.core_type = #tpu.core_type<tc>, window_params = [{transform_indices = @transform_0, window_bounds = array<i64: 1, 1, 16, 1246>}, {pipeline_mode = #tpu.pipeline_mode<synchronous>, transform_indices = @transform_1, window_bounds = array<i64: 64, 432>}, {pipeline_mode = #tpu.pipeline_mode<synchronous>, transform_indices = @transform_2, window_bounds = array<i64: 64, 1>}, {pipeline_mode = #tpu.pipeline_mode<synchronous>, transform_indices = @transform_3, window_bounds = array<i64: 64, 1>}, {transform_indices = @transform_4, window_bounds = array<i64: 1, 64, 1024>}]} {
    %c0 = arith.constant 0 : index
    %c0_0 = arith.constant 0 : index
    %c0_1 = arith.constant 0 : index
    %c0_2 = arith.constant 0 : index
    %0 = vector.load %arg2[%c0, %c0_0, %c0_1, %c0_2] : memref<1x1x16x1246xbf16, #tpu.memory_space<vmem>>, vector<1x1x16x512xbf16>
    %1 = vector.shape_cast %0 : vector<1x1x16x512xbf16> to vector<16x512xbf16>
    %c0_3 = arith.constant 0 : index
    %c0_4 = arith.constant 0 : index
    %c0_5 = arith.constant 0 : index
    %2 = vector.load %arg7[%c0_3, %c0_4, %c0_5] : memref<2x432x512xbf16, #tpu.memory_space<vmem>>, vector<1x16x512xbf16>
    %3 = vector.shape_cast %2 : vector<1x16x512xbf16> to vector<16x512xbf16>
    %4 = vector.shape_cast %1 : vector<16x512xbf16> to vector<1x16x512xbf16>
    tpu.vector_store %arg7[%c0_3, %c0_4, %c0_5], %4 {strides = array<i32>} : memref<2x432x512xbf16, #tpu.memory_space<vmem>>, vector<1x16x512xbf16>,
    %c0_6 = arith.constant 0 : index
    %c0_7 = arith.constant 0 : index
    %c0_8 = arith.constant 0 : index
    %c1 = arith.constant 1 : index
    %5 = vector.load %arg2[%c0_6, %c0_7, %c0_8, %c1] : memref<1x1x16x1246xbf16, #tpu.memory_space<vmem>>, vector<1x1x16x512xbf16>
    %6 = vector.shape_cast %5 : vector<1x1x16x512xbf16> to vector<16x512xbf16>
    %c0_9 = arith.constant 0 : index
    %c16 = arith.constant 16 : index
    %c0_10 = arith.constant 0 : index
    %7 = vector.load %arg7[%c0_9, %c16, %c0_10] : memref<2x432x512xbf16, #tpu.memory_space<vmem>>, vector<1x16x512xbf16>
    %8 = vector.shape_cast %7 : vector<1x16x512xbf16> to vector<16x512xbf16>
    %9 = vector.shape_cast %6 : vector<16x512xbf16> to vector<1x16x512xbf16>
    tpu.vector_store %arg7[%c0_9, %c16, %c0_10], %9 {strides = array<i32>} : memref<2x432x512xbf16, #tpu.memory_space<vmem>>, vector<1x16x512xbf16>,
    %c0_11 = arith.constant 0 : index
    %c0_12 = arith.constant 0 : index
    %c0_13 = arith.constant 0 : index
    %c2 = arith.constant 2 : index
    %10 = vector.load %arg2[%c0_11, %c0_12, %c0_13, %c2] : memref<1x1x16x1246xbf16, #tpu.memory_space<vmem>>, vector<1x1x16x512xbf16>
    %11 = vector.shape_cast %10 : vector<1x1x16x512xbf16> to vector<16x512xbf16>
    %c0_14 = arith.constant 0 : index
    %c32 = arith.constant 32 : index
    %c0_15 = arith.constant 0 : index
    %12 = vector.load %arg7[%c0_14, %c32, %c0_15] : memref<2x432x512xbf16, #tpu.memory_space<vmem>>, vector<1x16x512xbf16>
    %13 = vector.shape_cast %12 : vector<1x16x512xbf16> to vector<16x512xbf16>
    %14 = vector.shape_cast %11 : vector<16x512xbf16> to vector<1x16x512xbf16>
    tpu.vector_store %arg7[%c0_14, %c32, %c0_15], %14 {strides = array<i32>} : memref<2x432x512xbf16, #tpu.memory_space<vmem>>, vector<1x16x512xbf16>,
    %c0_16 = arith.constant 0 : index
    %c0_17 = arith.constant 0 : index
    %c0_18 = arith.constant 0 : index
    %c10 = arith.constant 10 : index
    %15 = vector.load %arg2[%c0_16, %c0_17, %c0_18, %c10] : memref<1x1x16x1246xbf16, #tpu.memory_space<vmem>>, vector<1x1x16x512xbf16>
    %16 = vector.shape_cast %15 : vector<1x1x16x512xbf16> to vector<16x512xbf16>
    %c0_19 = arith.constant 0 : index
    %c48 = arith.constant 48 : index
    %c0_20 = arith.constant 0 : index
    %17 = vector.load %arg7[%c0_19, %c48, %c0_20] : memref<2x432x512xbf16, #tpu.memory_space<vmem>>, vector<1x16x512xbf16>
    %18 = vector.shape_cast %17 : vector<1x16x512xbf16> to vector<16x512xbf16>
    %19 = vector.shape_cast %16 : vector<16x512xbf16> to vector<1x16x512xbf16>
    tpu.vector_store %arg7[%c0_19, %c48, %c0_20], %19 {strides = array<i32>} : memref<2x432x512xbf16, #tpu.memory_space<vmem>>, vector<1x16x512xbf16>,
    %c0_21 = arith.constant 0 : index
    %c0_22 = arith.constant 0 : index
    %c0_23 = arith.constant 0 : index
    %c11 = arith.constant 11 : index
    %20 = vector.load %arg2[%c0_21, %c0_22, %c0_23, %c11] : memref<1x1x16x1246xbf16, #tpu.memory_space<vmem>>, vector<1x1x16x512xbf16>
    %21 = vector.shape_cast %20 : vector<1x1x16x512xbf16> to vector<16x512xbf16>
    %c0_24 = arith.constant 0 : index
    %c64 = arith.constant 64 : index
    %c0_25 = arith.constant 0 : index
    %22 = vector.load %arg7[%c0_24, %c64, %c0_25] : memref<2x432x512xbf16, #tpu.memory_space<vmem>>, vector<1x16x512xbf16>
    %23 = vector.shape_cast %22 : vector<1x16x512xbf16> to vector<16x512xbf16>
    %24 = vector.shape_cast %21 : vector<16x512xbf16> to vector<1x16x512xbf16>
    tpu.vector_store %arg7[%c0_24, %c64, %c0_25], %24 {strides = array<i32>} : memref<2x432x512xbf16, #tpu.memory_space<vmem>>, vector<1x16x512xbf16>,
    %c0_26 = arith.constant 0 : index
    %c0_27 = arith.constant 0 : index
    %c0_28 = arith.constant 0 : index
    %c12 = arith.constant 12 : index
    %25 = vector.load %arg2[%c0_26, %c0_27, %c0_28, %c12] : memref<1x1x16x1246xbf16, #tpu.memory_space<vmem>>, vector<1x1x16x512xbf16>
    %26 = vector.shape_cast %25 : vector<1x1x16x512xbf16> to vector<16x512xbf16>
    %c0_29 = arith.constant 0 : index
    %c80 = arith.constant 80 : index
    %c0_30 = arith.constant 0 : index
    %27 = vector.load %arg7[%c0_29, %c80, %c0_30] : memref<2x432x512xbf16, #tpu.memory_space<vmem>>, vector<1x16x512xbf16>
    %28 = vector.shape_cast %27 : vector<1x16x512xbf16> to vector<16x512xbf16>
    %29 = vector.shape_cast %26 : vector<16x512xbf16> to vector<1x16x512xbf16>
    tpu.vector_store %arg7[%c0_29, %c80, %c0_30], %29 {strides = array<i32>} : memref<2x432x512xbf16, #tpu.memory_space<vmem>>, vector<1x16x512xbf16>,
    %c0_31 = arith.constant 0 : index
    %c0_32 = arith.constant 0 : index
    %c0_33 = arith.constant 0 : index
    %c20 = arith.constant 20 : index
    %30 = vector.load %arg2[%c0_31, %c0_32, %c0_33, %c20] : memref<1x1x16x1246xbf16, #tpu.memory_space<vmem>>, vector<1x1x16x512xbf16>
    %31 = vector.shape_cast %30 : vector<1x1x16x512xbf16> to vector<16x512xbf16>
    %c0_34 = arith.constant 0 : index
    %c96 = arith.constant 96 : index
    %c0_35 = arith.constant 0 : index
    %32 = vector.load %arg7[%c0_34, %c96, %c0_35] : memref<2x432x512xbf16, #tpu.memory_space<vmem>>, vector<1x16x512xbf16>
    %33 = vector.shape_cast %32 : vector<1x16x512xbf16> to vector<16x512xbf16>
    %34 = vector.shape_cast %31 : vector<16x512xbf16> to vector<1x16x512xbf16>
    tpu.vector_store %arg7[%c0_34, %c96, %c0_35], %34 {strides = array<i32>} : memref<2x432x512xbf16, #tpu.memory_space<vmem>>, vector<1x16x512xbf16>,
    %c0_36 = arith.constant 0 : index
    %c0_37 = arith.constant 0 : index
    %c0_38 = arith.constant 0 : index
    %c21 = arith.constant 21 : index
    %35 = vector.load %arg2[%c0_36, %c0_37, %c0_38, %c21] : memref<1x1x16x1246xbf16, #tpu.memory_space<vmem>>, vector<1x1x16x512xbf16>
    %36 = vector.shape_cast %35 : vector<1x1x16x512xbf16> to vector<16x512xbf16>
    %c0_39 = arith.constant 0 : index
    %c112 = arith.constant 112 : index
    %c0_40 = arith.constant 0 : index
    %37 = vector.load %arg7[%c0_39, %c112, %c0_40] : memref<2x432x512xbf16, #tpu.memory_space<vmem>>, vector<1x16x512xbf16>
    %38 = vector.shape_cast %37 : vector<1x16x512xbf16> to vector<16x512xbf16>
    %39 = vector.shape_cast %36 : vector<16x512xbf16> to vector<1x16x512xbf16>
    tpu.vector_store %arg7[%c0_39, %c112, %c0_40], %39 {strides = array<i32>} : memref<2x432x512xbf16, #tpu.memory_space<vmem>>, vector<1x16x512xbf16>,
    %c0_41 = arith.constant 0 : index
    %c0_42 = arith.constant 0 : index
    %c0_43 = arith.constant 0 : index
    %c22 = arith.constant 22 : index
    %40 = vector.load %arg2[%c0_41, %c0_42, %c0_43, %c22] : memref<1x1x16x1246xbf16, #tpu.memory_space<vmem>>, vector<1x1x16x512xbf16>
    %41 = vector.shape_cast %40 : vector<1x1x16x512xbf16> to vector<16x512xbf16>
    %c0_44 = arith.constant 0 : index
    %c128 = arith.constant 128 : index
    %c0_45 = arith.constant 0 : index
    %42 = vector.load %arg7[%c0_44, %c128, %c0_45] : memref<2x432x512xbf16, #tpu.memory_space<vmem>>, vector<1x16x512xbf16>
    %43 = vector.shape_cast %42 : vector<1x16x512xbf16> to vector<16x512xbf16>
    %44 = vector.shape_cast %41 : vector<16x512xbf16> to vector<1x16x512xbf16>
    tpu.vector_store %arg7[%c0_44, %c128, %c0_45], %44 {strides = array<i32>} : memref<2x432x512xbf16, #tpu.memory_space<vmem>>, vector<1x16x512xbf16>,
    %c0_46 = arith.constant 0 : index
    %c0_47 = arith.constant 0 : index
    %c0_48 = arith.constant 0 : index
    %c100 = arith.constant 100 : index
    %45 = vector.load %arg2[%c0_46, %c0_47, %c0_48, %c100] : memref<1x1x16x1246xbf16, #tpu.memory_space<vmem>>, vector<1x1x16x512xbf16>
    %46 = vector.shape_cast %45 : vector<1x1x16x512xbf16> to vector<16x512xbf16>
    %c0_49 = arith.constant 0 : index
    %c144 = arith.constant 144 : index
    %c0_50 = arith.constant 0 : index
    %47 = vector.load %arg7[%c0_49, %c144, %c0_50] : memref<2x432x512xbf16, #tpu.memory_space<vmem>>, vector<1x16x512xbf16>
    %48 = vector.shape_cast %47 : vector<1x16x512xbf16> to vector<16x512xbf16>
    %49 = vector.shape_cast %46 : vector<16x512xbf16> to vector<1x16x512xbf16>
    tpu.vector_store %arg7[%c0_49, %c144, %c0_50], %49 {strides = array<i32>} : memref<2x432x512xbf16, #tpu.memory_space<vmem>>, vector<1x16x512xbf16>,
    %c0_51 = arith.constant 0 : index
    %c0_52 = arith.constant 0 : index
    %c0_53 = arith.constant 0 : index
    %c101 = arith.constant 101 : index
    %50 = vector.load %arg2[%c0_51, %c0_52, %c0_53, %c101] : memref<1x1x16x1246xbf16, #tpu.memory_space<vmem>>, vector<1x1x16x512xbf16>
    %51 = vector.shape_cast %50 : vector<1x1x16x512xbf16> to vector<16x512xbf16>
    %c0_54 = arith.constant 0 : index
    %c160 = arith.constant 160 : index
    %c0_55 = arith.constant 0 : index
    %52 = vector.load %arg7[%c0_54, %c160, %c0_55] : memref<2x432x512xbf16, #tpu.memory_space<vmem>>, vector<1x16x512xbf16>
    %53 = vector.shape_cast %52 : vector<1x16x512xbf16> to vector<16x512xbf16>
    %54 = vector.shape_cast %51 : vector<16x512xbf16> to vector<1x16x512xbf16>
    tpu.vector_store %arg7[%c0_54, %c160, %c0_55], %54 {strides = array<i32>} : memref<2x432x512xbf16, #tpu.memory_space<vmem>>, vector<1x16x512xbf16>,
    %c0_56 = arith.constant 0 : index
    %c0_57 = arith.constant 0 : index
    %c0_58 = arith.constant 0 : index
    %c102 = arith.constant 102 : index
    %55 = vector.load %arg2[%c0_56, %c0_57, %c0_58, %c102] : memref<1x1x16x1246xbf16, #tpu.memory_space<vmem>>, vector<1x1x16x512xbf16>
    %56 = vector.shape_cast %55 : vector<1x1x16x512xbf16> to vector<16x512xbf16>
    %c0_59 = arith.constant 0 : index
    %c176 = arith.constant 176 : index
    %c0_60 = arith.constant 0 : index
    %57 = vector.load %arg7[%c0_59, %c176, %c0_60] : memref<2x432x512xbf16, #tpu.memory_space<vmem>>, vector<1x16x512xbf16>
    %58 = vector.shape_cast %57 : vector<1x16x512xbf16> to vector<16x512xbf16>
    %59 = vector.shape_cast %56 : vector<16x512xbf16> to vector<1x16x512xbf16>
    tpu.vector_store %arg7[%c0_59, %c176, %c0_60], %59 {strides = array<i32>} : memref<2x432x512xbf16, #tpu.memory_space<vmem>>, vector<1x16x512xbf16>,
    %c0_61 = arith.constant 0 : index
    %c0_62 = arith.constant 0 : index
    %c0_63 = arith.constant 0 : index
    %c110 = arith.constant 110 : index
    %60 = vector.load %arg2[%c0_61, %c0_62, %c0_63, %c110] : memref<1x1x16x1246xbf16, #tpu.memory_space<vmem>>, vector<1x1x16x512xbf16>
    %61 = vector.shape_cast %60 : vector<1x1x16x512xbf16> to vector<16x512xbf16>
    %c0_64 = arith.constant 0 : index
    %c192 = arith.constant 192 : index
    %c0_65 = arith.constant 0 : index
    %62 = vector.load %arg7[%c0_64, %c192, %c0_65] : memref<2x432x512xbf16, #tpu.memory_space<vmem>>, vector<1x16x512xbf16>
    %63 = vector.shape_cast %62 : vector<1x16x512xbf16> to vector<16x512xbf16>
    %64 = vector.shape_cast %61 : vector<16x512xbf16> to vector<1x16x512xbf16>
    tpu.vector_store %arg7[%c0_64, %c192, %c0_65], %64 {strides = array<i32>} : memref<2x432x512xbf16, #tpu.memory_space<vmem>>, vector<1x16x512xbf16>,
    %c0_66 = arith.constant 0 : index
    %c0_67 = arith.constant 0 : index
    %c0_68 = arith.constant 0 : index
    %c111 = arith.constant 111 : index
    %65 = vector.load %arg2[%c0_66, %c0_67, %c0_68, %c111] : memref<1x1x16x1246xbf16, #tpu.memory_space<vmem>>, vector<1x1x16x512xbf16>
    %66 = vector.shape_cast %65 : vector<1x1x16x512xbf16> to vector<16x512xbf16>
    %c0_69 = arith.constant 0 : index
    %c208 = arith.constant 208 : index
    %c0_70 = arith.constant 0 : index
    %67 = vector.load %arg7[%c0_69, %c208, %c0_70] : memref<2x432x512xbf16, #tpu.memory_space<vmem>>, vector<1x16x512xbf16>
    %68 = vector.shape_cast %67 : vector<1x16x512xbf16> to vector<16x512xbf16>
    %69 = vector.shape_cast %66 : vector<16x512xbf16> to vector<1x16x512xbf16>
    tpu.vector_store %arg7[%c0_69, %c208, %c0_70], %69 {strides = array<i32>} : memref<2x432x512xbf16, #tpu.memory_space<vmem>>, vector<1x16x512xbf16>,
    %c0_71 = arith.constant 0 : index
    %c0_72 = arith.constant 0 : index
    %c0_73 = arith.constant 0 : index
    %c112_74 = arith.constant 112 : index
    %70 = vector.load %arg2[%c0_71, %c0_72, %c0_73, %c112_74] : memref<1x1x16x1246xbf16, #tpu.memory_space<vmem>>, vector<1x1x16x512xbf16>
    %71 = vector.shape_cast %70 : vector<1x1x16x512xbf16> to vector<16x512xbf16>
    %c0_75 = arith.constant 0 : index
    %c224 = arith.constant 224 : index
    %c0_76 = arith.constant 0 : index
    %72 = vector.load %arg7[%c0_75, %c224, %c0_76] : memref<2x432x512xbf16, #tpu.memory_space<vmem>>, vector<1x16x512xbf16>
    %73 = vector.shape_cast %72 : vector<1x16x512xbf16> to vector<16x512xbf16>
    %74 = vector.shape_cast %71 : vector<16x512xbf16> to vector<1x16x512xbf16>
    tpu.vector_store %arg7[%c0_75, %c224, %c0_76], %74 {strides = array<i32>} : memref<2x432x512xbf16, #tpu.memory_space<vmem>>, vector<1x16x512xbf16>,
    %c0_77 = arith.constant 0 : index
    %c0_78 = arith.constant 0 : index
    %c0_79 = arith.constant 0 : index
    %c120 = arith.constant 120 : index
    %75 = vector.load %arg2[%c0_77, %c0_78, %c0_79, %c120] : memref<1x1x16x1246xbf16, #tpu.memory_space<vmem>>, vector<1x1x16x512xbf16>
    %76 = vector.shape_cast %75 : vector<1x1x16x512xbf16> to vector<16x512xbf16>
    %c0_80 = arith.constant 0 : index
    %c240 = arith.constant 240 : index
    %c0_81 = arith.constant 0 : index
    %77 = vector.load %arg7[%c0_80, %c240, %c0_81] : memref<2x432x512xbf16, #tpu.memory_space<vmem>>, vector<1x16x512xbf16>
    %78 = vector.shape_cast %77 : vector<1x16x512xbf16> to vector<16x512xbf16>
    %79 = vector.shape_cast %76 : vector<16x512xbf16> to vector<1x16x512xbf16>
    tpu.vector_store %arg7[%c0_80, %c240, %c0_81], %79 {strides = array<i32>} : memref<2x432x512xbf16, #tpu.memory_space<vmem>>, vector<1x16x512xbf16>,
    %c0_82 = arith.constant 0 : index
    %c0_83 = arith.constant 0 : index
    %c0_84 = arith.constant 0 : index
    %c121 = arith.constant 121 : index
    %80 = vector.load %arg2[%c0_82, %c0_83, %c0_84, %c121] : memref<1x1x16x1246xbf16, #tpu.memory_space<vmem>>, vector<1x1x16x512xbf16>
    %81 = vector.shape_cast %80 : vector<1x1x16x512xbf16> to vector<16x512xbf16>
    %c0_85 = arith.constant 0 : index
    %c256 = arith.constant 256 : index
    %c0_86 = arith.constant 0 : index
    %82 = vector.load %arg7[%c0_85, %c256, %c0_86] : memref<2x432x512xbf16, #tpu.memory_space<vmem>>, vector<1x16x512xbf16>
    %83 = vector.shape_cast %82 : vector<1x16x512xbf16> to vector<16x512xbf16>
    %84 = vector.shape_cast %81 : vector<16x512xbf16> to vector<1x16x512xbf16>
    tpu.vector_store %arg7[%c0_85, %c256, %c0_86], %84 {strides = array<i32>} : memref<2x432x512xbf16, #tpu.memory_space<vmem>>, vector<1x16x512xbf16>,
    %c0_87 = arith.constant 0 : index
    %c0_88 = arith.constant 0 : index
    %c0_89 = arith.constant 0 : index
    %c122 = arith.constant 122 : index
    %85 = vector.load %arg2[%c0_87, %c0_88, %c0_89, %c122] : memref<1x1x16x1246xbf16, #tpu.memory_space<vmem>>, vector<1x1x16x512xbf16>
    %86 = vector.shape_cast %85 : vector<1x1x16x512xbf16> to vector<16x512xbf16>
    %c0_90 = arith.constant 0 : index
    %c272 = arith.constant 272 : index
    %c0_91 = arith.constant 0 : index
    %87 = vector.load %arg7[%c0_90, %c272, %c0_91] : memref<2x432x512xbf16, #tpu.memory_space<vmem>>, vector<1x16x512xbf16>
    %88 = vector.shape_cast %87 : vector<1x16x512xbf16> to vector<16x512xbf16>
    %89 = vector.shape_cast %86 : vector<16x512xbf16> to vector<1x16x512xbf16>
    tpu.vector_store %arg7[%c0_90, %c272, %c0_91], %89 {strides = array<i32>} : memref<2x432x512xbf16, #tpu.memory_space<vmem>>, vector<1x16x512xbf16>,
    %c0_92 = arith.constant 0 : index
    %c0_93 = arith.constant 0 : index
    %c0_94 = arith.constant 0 : index
    %c200 = arith.constant 200 : index
    %90 = vector.load %arg2[%c0_92, %c0_93, %c0_94, %c200] : memref<1x1x16x1246xbf16, #tpu.memory_space<vmem>>, vector<1x1x16x512xbf16>
    %91 = vector.shape_cast %90 : vector<1x1x16x512xbf16> to vector<16x512xbf16>
    %c0_95 = arith.constant 0 : index
    %c288 = arith.constant 288 : index
    %c0_96 = arith.constant 0 : index
    %92 = vector.load %arg7[%c0_95, %c288, %c0_96] : memref<2x432x512xbf16, #tpu.memory_space<vmem>>, vector<1x16x512xbf16>
    %93 = vector.shape_cast %92 : vector<1x16x512xbf16> to vector<16x512xbf16>
    %94 = vector.shape_cast %91 : vector<16x512xbf16> to vector<1x16x512xbf16>
    tpu.vector_store %arg7[%c0_95, %c288, %c0_96], %94 {strides = array<i32>} : memref<2x432x512xbf16, #tpu.memory_space<vmem>>, vector<1x16x512xbf16>,
    %c0_97 = arith.constant 0 : index
    %c0_98 = arith.constant 0 : index
    %c0_99 = arith.constant 0 : index
    %c201 = arith.constant 201 : index
    %95 = vector.load %arg2[%c0_97, %c0_98, %c0_99, %c201] : memref<1x1x16x1246xbf16, #tpu.memory_space<vmem>>, vector<1x1x16x512xbf16>
    %96 = vector.shape_cast %95 : vector<1x1x16x512xbf16> to vector<16x512xbf16>
    %c0_100 = arith.constant 0 : index
    %c304 = arith.constant 304 : index
    %c0_101 = arith.constant 0 : index
    %97 = vector.load %arg7[%c0_100, %c304, %c0_101] : memref<2x432x512xbf16, #tpu.memory_space<vmem>>, vector<1x16x512xbf16>
    %98 = vector.shape_cast %97 : vector<1x16x512xbf16> to vector<16x512xbf16>
    %99 = vector.shape_cast %96 : vector<16x512xbf16> to vector<1x16x512xbf16>
    tpu.vector_store %arg7[%c0_100, %c304, %c0_101], %99 {strides = array<i32>} : memref<2x432x512xbf16, #tpu.memory_space<vmem>>, vector<1x16x512xbf16>,
    %c0_102 = arith.constant 0 : index
    %c0_103 = arith.constant 0 : index
    %c0_104 = arith.constant 0 : index
    %c202 = arith.constant 202 : index
    %100 = vector.load %arg2[%c0_102, %c0_103, %c0_104, %c202] : memref<1x1x16x1246xbf16, #tpu.memory_space<vmem>>, vector<1x1x16x512xbf16>
    %101 = vector.shape_cast %100 : vector<1x1x16x512xbf16> to vector<16x512xbf16>
    %c0_105 = arith.constant 0 : index
    %c320 = arith.constant 320 : index
    %c0_106 = arith.constant 0 : index
    %102 = vector.load %arg7[%c0_105, %c320, %c0_106] : memref<2x432x512xbf16, #tpu.memory_space<vmem>>, vector<1x16x512xbf16>
    %103 = vector.shape_cast %102 : vector<1x16x512xbf16> to vector<16x512xbf16>
    %104 = vector.shape_cast %101 : vector<16x512xbf16> to vector<1x16x512xbf16>
    tpu.vector_store %arg7[%c0_105, %c320, %c0_106], %104 {strides = array<i32>} : memref<2x432x512xbf16, #tpu.memory_space<vmem>>, vector<1x16x512xbf16>,
    %c0_107 = arith.constant 0 : index
    %c0_108 = arith.constant 0 : index
    %c0_109 = arith.constant 0 : index
    %c210 = arith.constant 210 : index
    %105 = vector.load %arg2[%c0_107, %c0_108, %c0_109, %c210] : memref<1x1x16x1246xbf16, #tpu.memory_space<vmem>>, vector<1x1x16x512xbf16>
    %106 = vector.shape_cast %105 : vector<1x1x16x512xbf16> to vector<16x512xbf16>
    %c0_110 = arith.constant 0 : index
    %c336 = arith.constant 336 : index
    %c0_111 = arith.constant 0 : index
    %107 = vector.load %arg7[%c0_110, %c336, %c0_111] : memref<2x432x512xbf16, #tpu.memory_space<vmem>>, vector<1x16x512xbf16>
    %108 = vector.shape_cast %107 : vector<1x16x512xbf16> to vector<16x512xbf16>
    %109 = vector.shape_cast %106 : vector<16x512xbf16> to vector<1x16x512xbf16>
    tpu.vector_store %arg7[%c0_110, %c336, %c0_111], %109 {strides = array<i32>} : memref<2x432x512xbf16, #tpu.memory_space<vmem>>, vector<1x16x512xbf16>,
    %c0_112 = arith.constant 0 : index
    %c0_113 = arith.constant 0 : index
    %c0_114 = arith.constant 0 : index
    %c211 = arith.constant 211 : index
    %110 = vector.load %arg2[%c0_112, %c0_113, %c0_114, %c211] : memref<1x1x16x1246xbf16, #tpu.memory_space<vmem>>, vector<1x1x16x512xbf16>
    %111 = vector.shape_cast %110 : vector<1x1x16x512xbf16> to vector<16x512xbf16>
    %c0_115 = arith.constant 0 : index
    %c352 = arith.constant 352 : index
    %c0_116 = arith.constant 0 : index
    %112 = vector.load %arg7[%c0_115, %c352, %c0_116] : memref<2x432x512xbf16, #tpu.memory_space<vmem>>, vector<1x16x512xbf16>
    %113 = vector.shape_cast %112 : vector<1x16x512xbf16> to vector<16x512xbf16>
    %114 = vector.shape_cast %111 : vector<16x512xbf16> to vector<1x16x512xbf16>
    tpu.vector_store %arg7[%c0_115, %c352, %c0_116], %114 {strides = array<i32>} : memref<2x432x512xbf16, #tpu.memory_space<vmem>>, vector<1x16x512xbf16>,
    %c0_117 = arith.constant 0 : index
    %c0_118 = arith.constant 0 : index
    %c0_119 = arith.constant 0 : index
    %c212 = arith.constant 212 : index
    %115 = vector.load %arg2[%c0_117, %c0_118, %c0_119, %c212] : memref<1x1x16x1246xbf16, #tpu.memory_space<vmem>>, vector<1x1x16x512xbf16>
    %116 = vector.shape_cast %115 : vector<1x1x16x512xbf16> to vector<16x512xbf16>
    %c0_120 = arith.constant 0 : index
    %c368 = arith.constant 368 : index
    %c0_121 = arith.constant 0 : index
    %117 = vector.load %arg7[%c0_120, %c368, %c0_121] : memref<2x432x512xbf16, #tpu.memory_space<vmem>>, vector<1x16x512xbf16>
    %118 = vector.shape_cast %117 : vector<1x16x512xbf16> to vector<16x512xbf16>
    %119 = vector.shape_cast %116 : vector<16x512xbf16> to vector<1x16x512xbf16>
    tpu.vector_store %arg7[%c0_120, %c368, %c0_121], %119 {strides = array<i32>} : memref<2x432x512xbf16, #tpu.memory_space<vmem>>, vector<1x16x512xbf16>,
    %c0_122 = arith.constant 0 : index
    %c0_123 = arith.constant 0 : index
    %c0_124 = arith.constant 0 : index
    %c220 = arith.constant 220 : index
    %120 = vector.load %arg2[%c0_122, %c0_123, %c0_124, %c220] : memref<1x1x16x1246xbf16, #tpu.memory_space<vmem>>, vector<1x1x16x512xbf16>
    %121 = vector.shape_cast %120 : vector<1x1x16x512xbf16> to vector<16x512xbf16>
    %c0_125 = arith.constant 0 : index
    %c384 = arith.constant 384 : index
    %c0_126 = arith.constant 0 : index
    %122 = vector.load %arg7[%c0_125, %c384, %c0_126] : memref<2x432x512xbf16, #tpu.memory_space<vmem>>, vector<1x16x512xbf16>
    %123 = vector.shape_cast %122 : vector<1x16x512xbf16> to vector<16x512xbf16>
    %124 = vector.shape_cast %121 : vector<16x512xbf16> to vector<1x16x512xbf16>
    tpu.vector_store %arg7[%c0_125, %c384, %c0_126], %124 {strides = array<i32>} : memref<2x432x512xbf16, #tpu.memory_space<vmem>>, vector<1x16x512xbf16>,
    %c0_127 = arith.constant 0 : index
    %c0_128 = arith.constant 0 : index
    %c0_129 = arith.constant 0 : index
    %c221 = arith.constant 221 : index
    %125 = vector.load %arg2[%c0_127, %c0_128, %c0_129, %c221] : memref<1x1x16x1246xbf16, #tpu.memory_space<vmem>>, vector<1x1x16x512xbf16>
    %126 = vector.shape_cast %125 : vector<1x1x16x512xbf16> to vector<16x512xbf16>
    %c0_130 = arith.constant 0 : index
    %c400 = arith.constant 400 : index
    %c0_131 = arith.constant 0 : index
    %127 = vector.load %arg7[%c0_130, %c400, %c0_131] : memref<2x432x512xbf16, #tpu.memory_space<vmem>>, vector<1x16x512xbf16>
    %128 = vector.shape_cast %127 : vector<1x16x512xbf16> to vector<16x512xbf16>
    %129 = vector.shape_cast %126 : vector<16x512xbf16> to vector<1x16x512xbf16>
    tpu.vector_store %arg7[%c0_130, %c400, %c0_131], %129 {strides = array<i32>} : memref<2x432x512xbf16, #tpu.memory_space<vmem>>, vector<1x16x512xbf16>,
    %c0_132 = arith.constant 0 : index
    %c0_133 = arith.constant 0 : index
    %c0_134 = arith.constant 0 : index
    %c222 = arith.constant 222 : index
    %130 = vector.load %arg2[%c0_132, %c0_133, %c0_134, %c222] : memref<1x1x16x1246xbf16, #tpu.memory_space<vmem>>, vector<1x1x16x512xbf16>
    %131 = vector.shape_cast %130 : vector<1x1x16x512xbf16> to vector<16x512xbf16>
    %c0_135 = arith.constant 0 : index
    %c416 = arith.constant 416 : index
    %c0_136 = arith.constant 0 : index
    %132 = vector.load %arg7[%c0_135, %c416, %c0_136] : memref<2x432x512xbf16, #tpu.memory_space<vmem>>, vector<1x16x512xbf16>
    %133 = vector.shape_cast %132 : vector<1x16x512xbf16> to vector<16x512xbf16>
    %134 = vector.shape_cast %131 : vector<16x512xbf16> to vector<1x16x512xbf16>
    tpu.vector_store %arg7[%c0_135, %c416, %c0_136], %134 {strides = array<i32>} : memref<2x432x512xbf16, #tpu.memory_space<vmem>>, vector<1x16x512xbf16>,
    %c0_137 = arith.constant 0 : index
    %c0_138 = arith.constant 0 : index
    %135 = vector.load %arg3[%c0_137, %c0_138] : memref<64x432xbf16, #tpu.memory_space<vmem>>, vector<64x432xbf16>
    %c0_139 = arith.constant 0 : index
    %c0_140 = arith.constant 0 : index
    %c0_141 = arith.constant 0 : index
    %136 = vector.load %arg7[%c0_139, %c0_140, %c0_141] : memref<2x432x512xbf16, #tpu.memory_space<vmem>>, vector<1x432x512xbf16>
    %137 = vector.shape_cast %136 : vector<1x432x512xbf16> to vector<432x512xbf16>
    %cst = arith.constant dense<0.000000e+00> : vector<64x512xf32>
    %138 = tpu.matmul %135, %137, %cst {dimension_numbers = #tpu.dot_dimension_numbers<[1], [0], [0], [1], [0, 0, 1, 1], [], []>} : vector<64x432xbf16>, vector<432x512xbf16>, vector<64x512xf32> -> vector<64x512xf32>
    %c0_142 = arith.constant 0 : index
    %c0_143 = arith.constant 0 : index
    %139 = vector.load %arg4[%c0_142, %c0_143] : memref<64x1xf32, #tpu.memory_space<vmem>>, vector<64x1xf32>
    %140 = vector.broadcast %139 : vector<64x1xf32> to vector<64x512xf32>
    %141 = arith.mulf %138, %140 : vector<64x512xf32>
    %c0_144 = arith.constant 0 : index
    %c0_145 = arith.constant 0 : index
    %142 = vector.load %arg5[%c0_144, %c0_145] : memref<64x1xf32, #tpu.memory_space<vmem>>, vector<64x1xf32>
    %143 = vector.broadcast %142 : vector<64x1xf32> to vector<64x512xf32>
    %144 = arith.addf %141, %143 : vector<64x512xf32>
    %cst_146 = arith.constant 0.000000e+00 : f32
    %145 = vector.broadcast %cst_146 : f32 to vector<64x512xf32>
    %146 = arith.maximumf %144, %145 : vector<64x512xf32>
    %147 = arith.truncf %146 : vector<64x512xf32> to vector<64x512xbf16>
    %c0_147 = arith.constant 0 : index
    %c0_148 = arith.constant 0 : index
    %c0_149 = arith.constant 0 : index
    %148 = vector.load %arg6[%c0_147, %c0_148, %c0_149] : memref<1x64x1024xbf16, #tpu.memory_space<vmem>>, vector<1x64x512xbf16>
    %149 = vector.shape_cast %148 : vector<1x64x512xbf16> to vector<64x512xbf16>
    %150 = vector.shape_cast %147 : vector<64x512xbf16> to vector<1x64x512xbf16>
    tpu.vector_store %arg6[%c0_147, %c0_148, %c0_149], %150 {strides = array<i32>} : memref<1x64x1024xbf16, #tpu.memory_space<vmem>>, vector<1x64x512xbf16>,
    %c0_150 = arith.constant 0 : index
    %c0_151 = arith.constant 0 : index
    %c0_152 = arith.constant 0 : index
    %c512 = arith.constant 512 : index
    %151 = vector.load %arg2[%c0_150, %c0_151, %c0_152, %c512] : memref<1x1x16x1246xbf16, #tpu.memory_space<vmem>>, vector<1x1x16x512xbf16>
    %152 = vector.shape_cast %151 : vector<1x1x16x512xbf16> to vector<16x512xbf16>
    %c1_153 = arith.constant 1 : index
    %c0_154 = arith.constant 0 : index
    %c0_155 = arith.constant 0 : index
    %153 = vector.load %arg7[%c1_153, %c0_154, %c0_155] : memref<2x432x512xbf16, #tpu.memory_space<vmem>>, vector<1x16x512xbf16>
    %154 = vector.shape_cast %153 : vector<1x16x512xbf16> to vector<16x512xbf16>
    %155 = vector.shape_cast %152 : vector<16x512xbf16> to vector<1x16x512xbf16>
    tpu.vector_store %arg7[%c1_153, %c0_154, %c0_155], %155 {strides = array<i32>} : memref<2x432x512xbf16, #tpu.memory_space<vmem>>, vector<1x16x512xbf16>,
    %c0_156 = arith.constant 0 : index
    %c0_157 = arith.constant 0 : index
    %c0_158 = arith.constant 0 : index
    %c513 = arith.constant 513 : index
    %156 = vector.load %arg2[%c0_156, %c0_157, %c0_158, %c513] : memref<1x1x16x1246xbf16, #tpu.memory_space<vmem>>, vector<1x1x16x512xbf16>
    %157 = vector.shape_cast %156 : vector<1x1x16x512xbf16> to vector<16x512xbf16>
    %c1_159 = arith.constant 1 : index
    %c16_160 = arith.constant 16 : index
    %c0_161 = arith.constant 0 : index
    %158 = vector.load %arg7[%c1_159, %c16_160, %c0_161] : memref<2x432x512xbf16, #tpu.memory_space<vmem>>, vector<1x16x512xbf16>
    %159 = vector.shape_cast %158 : vector<1x16x512xbf16> to vector<16x512xbf16>
    %160 = vector.shape_cast %157 : vector<16x512xbf16> to vector<1x16x512xbf16>
    tpu.vector_store %arg7[%c1_159, %c16_160, %c0_161], %160 {strides = array<i32>} : memref<2x432x512xbf16, #tpu.memory_space<vmem>>, vector<1x16x512xbf16>,
    %c0_162 = arith.constant 0 : index
    %c0_163 = arith.constant 0 : index
    %c0_164 = arith.constant 0 : index
    %c514 = arith.constant 514 : index
    %161 = vector.load %arg2[%c0_162, %c0_163, %c0_164, %c514] : memref<1x1x16x1246xbf16, #tpu.memory_space<vmem>>, vector<1x1x16x512xbf16>
    %162 = vector.shape_cast %161 : vector<1x1x16x512xbf16> to vector<16x512xbf16>
    %c1_165 = arith.constant 1 : index
    %c32_166 = arith.constant 32 : index
    %c0_167 = arith.constant 0 : index
    %163 = vector.load %arg7[%c1_165, %c32_166, %c0_167] : memref<2x432x512xbf16, #tpu.memory_space<vmem>>, vector<1x16x512xbf16>
    %164 = vector.shape_cast %163 : vector<1x16x512xbf16> to vector<16x512xbf16>
    %165 = vector.shape_cast %162 : vector<16x512xbf16> to vector<1x16x512xbf16>
    tpu.vector_store %arg7[%c1_165, %c32_166, %c0_167], %165 {strides = array<i32>} : memref<2x432x512xbf16, #tpu.memory_space<vmem>>, vector<1x16x512xbf16>,
    %c0_168 = arith.constant 0 : index
    %c0_169 = arith.constant 0 : index
    %c0_170 = arith.constant 0 : index
    %c522 = arith.constant 522 : index
    %166 = vector.load %arg2[%c0_168, %c0_169, %c0_170, %c522] : memref<1x1x16x1246xbf16, #tpu.memory_space<vmem>>, vector<1x1x16x512xbf16>
    %167 = vector.shape_cast %166 : vector<1x1x16x512xbf16> to vector<16x512xbf16>
    %c1_171 = arith.constant 1 : index
    %c48_172 = arith.constant 48 : index
    %c0_173 = arith.constant 0 : index
    %168 = vector.load %arg7[%c1_171, %c48_172, %c0_173] : memref<2x432x512xbf16, #tpu.memory_space<vmem>>, vector<1x16x512xbf16>
    %169 = vector.shape_cast %168 : vector<1x16x512xbf16> to vector<16x512xbf16>
    %170 = vector.shape_cast %167 : vector<16x512xbf16> to vector<1x16x512xbf16>
    tpu.vector_store %arg7[%c1_171, %c48_172, %c0_173], %170 {strides = array<i32>} : memref<2x432x512xbf16, #tpu.memory_space<vmem>>, vector<1x16x512xbf16>,
    %c0_174 = arith.constant 0 : index
    %c0_175 = arith.constant 0 : index
    %c0_176 = arith.constant 0 : index
    %c523 = arith.constant 523 : index
    %171 = vector.load %arg2[%c0_174, %c0_175, %c0_176, %c523] : memref<1x1x16x1246xbf16, #tpu.memory_space<vmem>>, vector<1x1x16x512xbf16>
    %172 = vector.shape_cast %171 : vector<1x1x16x512xbf16> to vector<16x512xbf16>
    %c1_177 = arith.constant 1 : index
    %c64_178 = arith.constant 64 : index
    %c0_179 = arith.constant 0 : index
    %173 = vector.load %arg7[%c1_177, %c64_178, %c0_179] : memref<2x432x512xbf16, #tpu.memory_space<vmem>>, vector<1x16x512xbf16>
    %174 = vector.shape_cast %173 : vector<1x16x512xbf16> to vector<16x512xbf16>
    %175 = vector.shape_cast %172 : vector<16x512xbf16> to vector<1x16x512xbf16>
    tpu.vector_store %arg7[%c1_177, %c64_178, %c0_179], %175 {strides = array<i32>} : memref<2x432x512xbf16, #tpu.memory_space<vmem>>, vector<1x16x512xbf16>,
    %c0_180 = arith.constant 0 : index
    %c0_181 = arith.constant 0 : index
    %c0_182 = arith.constant 0 : index
    %c524 = arith.constant 524 : index
    %176 = vector.load %arg2[%c0_180, %c0_181, %c0_182, %c524] : memref<1x1x16x1246xbf16, #tpu.memory_space<vmem>>, vector<1x1x16x512xbf16>
    %177 = vector.shape_cast %176 : vector<1x1x16x512xbf16> to vector<16x512xbf16>
    %c1_183 = arith.constant 1 : index
    %c80_184 = arith.constant 80 : index
    %c0_185 = arith.constant 0 : index
    %178 = vector.load %arg7[%c1_183, %c80_184, %c0_185] : memref<2x432x512xbf16, #tpu.memory_space<vmem>>, vector<1x16x512xbf16>
    %179 = vector.shape_cast %178 : vector<1x16x512xbf16> to vector<16x512xbf16>
    %180 = vector.shape_cast %177 : vector<16x512xbf16> to vector<1x16x512xbf16>
    tpu.vector_store %arg7[%c1_183, %c80_184, %c0_185], %180 {strides = array<i32>} : memref<2x432x512xbf16, #tpu.memory_space<vmem>>, vector<1x16x512xbf16>,
    %c0_186 = arith.constant 0 : index
    %c0_187 = arith.constant 0 : index
    %c0_188 = arith.constant 0 : index
    %c532 = arith.constant 532 : index
    %181 = vector.load %arg2[%c0_186, %c0_187, %c0_188, %c532] : memref<1x1x16x1246xbf16, #tpu.memory_space<vmem>>, vector<1x1x16x512xbf16>
    %182 = vector.shape_cast %181 : vector<1x1x16x512xbf16> to vector<16x512xbf16>
    %c1_189 = arith.constant 1 : index
    %c96_190 = arith.constant 96 : index
    %c0_191 = arith.constant 0 : index
    %183 = vector.load %arg7[%c1_189, %c96_190, %c0_191] : memref<2x432x512xbf16, #tpu.memory_space<vmem>>, vector<1x16x512xbf16>
    %184 = vector.shape_cast %183 : vector<1x16x512xbf16> to vector<16x512xbf16>
    %185 = vector.shape_cast %182 : vector<16x512xbf16> to vector<1x16x512xbf16>
    tpu.vector_store %arg7[%c1_189, %c96_190, %c0_191], %185 {strides = array<i32>} : memref<2x432x512xbf16, #tpu.memory_space<vmem>>, vector<1x16x512xbf16>,
    %c0_192 = arith.constant 0 : index
    %c0_193 = arith.constant 0 : index
    %c0_194 = arith.constant 0 : index
    %c533 = arith.constant 533 : index
    %186 = vector.load %arg2[%c0_192, %c0_193, %c0_194, %c533] : memref<1x1x16x1246xbf16, #tpu.memory_space<vmem>>, vector<1x1x16x512xbf16>
    %187 = vector.shape_cast %186 : vector<1x1x16x512xbf16> to vector<16x512xbf16>
    %c1_195 = arith.constant 1 : index
    %c112_196 = arith.constant 112 : index
    %c0_197 = arith.constant 0 : index
    %188 = vector.load %arg7[%c1_195, %c112_196, %c0_197] : memref<2x432x512xbf16, #tpu.memory_space<vmem>>, vector<1x16x512xbf16>
    %189 = vector.shape_cast %188 : vector<1x16x512xbf16> to vector<16x512xbf16>
    %190 = vector.shape_cast %187 : vector<16x512xbf16> to vector<1x16x512xbf16>
    tpu.vector_store %arg7[%c1_195, %c112_196, %c0_197], %190 {strides = array<i32>} : memref<2x432x512xbf16, #tpu.memory_space<vmem>>, vector<1x16x512xbf16>,
    %c0_198 = arith.constant 0 : index
    %c0_199 = arith.constant 0 : index
    %c0_200 = arith.constant 0 : index
    %c534 = arith.constant 534 : index
    %191 = vector.load %arg2[%c0_198, %c0_199, %c0_200, %c534] : memref<1x1x16x1246xbf16, #tpu.memory_space<vmem>>, vector<1x1x16x512xbf16>
    %192 = vector.shape_cast %191 : vector<1x1x16x512xbf16> to vector<16x512xbf16>
    %c1_201 = arith.constant 1 : index
    %c128_202 = arith.constant 128 : index
    %c0_203 = arith.constant 0 : index
    %193 = vector.load %arg7[%c1_201, %c128_202, %c0_203] : memref<2x432x512xbf16, #tpu.memory_space<vmem>>, vector<1x16x512xbf16>
    %194 = vector.shape_cast %193 : vector<1x16x512xbf16> to vector<16x512xbf16>
    %195 = vector.shape_cast %192 : vector<16x512xbf16> to vector<1x16x512xbf16>
    tpu.vector_store %arg7[%c1_201, %c128_202, %c0_203], %195 {strides = array<i32>} : memref<2x432x512xbf16, #tpu.memory_space<vmem>>, vector<1x16x512xbf16>,
    %c0_204 = arith.constant 0 : index
    %c0_205 = arith.constant 0 : index
    %c0_206 = arith.constant 0 : index
    %c612 = arith.constant 612 : index
    %196 = vector.load %arg2[%c0_204, %c0_205, %c0_206, %c612] : memref<1x1x16x1246xbf16, #tpu.memory_space<vmem>>, vector<1x1x16x512xbf16>
    %197 = vector.shape_cast %196 : vector<1x1x16x512xbf16> to vector<16x512xbf16>
    %c1_207 = arith.constant 1 : index
    %c144_208 = arith.constant 144 : index
    %c0_209 = arith.constant 0 : index
    %198 = vector.load %arg7[%c1_207, %c144_208, %c0_209] : memref<2x432x512xbf16, #tpu.memory_space<vmem>>, vector<1x16x512xbf16>
    %199 = vector.shape_cast %198 : vector<1x16x512xbf16> to vector<16x512xbf16>
    %200 = vector.shape_cast %197 : vector<16x512xbf16> to vector<1x16x512xbf16>
    tpu.vector_store %arg7[%c1_207, %c144_208, %c0_209], %200 {strides = array<i32>} : memref<2x432x512xbf16, #tpu.memory_space<vmem>>, vector<1x16x512xbf16>,
    %c0_210 = arith.constant 0 : index
    %c0_211 = arith.constant 0 : index
    %c0_212 = arith.constant 0 : index
    %c613 = arith.constant 613 : index
    %201 = vector.load %arg2[%c0_210, %c0_211, %c0_212, %c613] : memref<1x1x16x1246xbf16, #tpu.memory_space<vmem>>, vector<1x1x16x512xbf16>
    %202 = vector.shape_cast %201 : vector<1x1x16x512xbf16> to vector<16x512xbf16>
    %c1_213 = arith.constant 1 : index
    %c160_214 = arith.constant 160 : index
    %c0_215 = arith.constant 0 : index
    %203 = vector.load %arg7[%c1_213, %c160_214, %c0_215] : memref<2x432x512xbf16, #tpu.memory_space<vmem>>, vector<1x16x512xbf16>
    %204 = vector.shape_cast %203 : vector<1x16x512xbf16> to vector<16x512xbf16>
    %205 = vector.shape_cast %202 : vector<16x512xbf16> to vector<1x16x512xbf16>
    tpu.vector_store %arg7[%c1_213, %c160_214, %c0_215], %205 {strides = array<i32>} : memref<2x432x512xbf16, #tpu.memory_space<vmem>>, vector<1x16x512xbf16>,
    %c0_216 = arith.constant 0 : index
    %c0_217 = arith.constant 0 : index
    %c0_218 = arith.constant 0 : index
    %c614 = arith.constant 614 : index
    %206 = vector.load %arg2[%c0_216, %c0_217, %c0_218, %c614] : memref<1x1x16x1246xbf16, #tpu.memory_space<vmem>>, vector<1x1x16x512xbf16>
    %207 = vector.shape_cast %206 : vector<1x1x16x512xbf16> to vector<16x512xbf16>
    %c1_219 = arith.constant 1 : index
    %c176_220 = arith.constant 176 : index
    %c0_221 = arith.constant 0 : index
    %208 = vector.load %arg7[%c1_219, %c176_220, %c0_221] : memref<2x432x512xbf16, #tpu.memory_space<vmem>>, vector<1x16x512xbf16>
    %209 = vector.shape_cast %208 : vector<1x16x512xbf16> to vector<16x512xbf16>
    %210 = vector.shape_cast %207 : vector<16x512xbf16> to vector<1x16x512xbf16>
    tpu.vector_store %arg7[%c1_219, %c176_220, %c0_221], %210 {strides = array<i32>} : memref<2x432x512xbf16, #tpu.memory_space<vmem>>, vector<1x16x512xbf16>,
    %c0_222 = arith.constant 0 : index
    %c0_223 = arith.constant 0 : index
    %c0_224 = arith.constant 0 : index
    %c622 = arith.constant 622 : index
    %211 = vector.load %arg2[%c0_222, %c0_223, %c0_224, %c622] : memref<1x1x16x1246xbf16, #tpu.memory_space<vmem>>, vector<1x1x16x512xbf16>
    %212 = vector.shape_cast %211 : vector<1x1x16x512xbf16> to vector<16x512xbf16>
    %c1_225 = arith.constant 1 : index
    %c192_226 = arith.constant 192 : index
    %c0_227 = arith.constant 0 : index
    %213 = vector.load %arg7[%c1_225, %c192_226, %c0_227] : memref<2x432x512xbf16, #tpu.memory_space<vmem>>, vector<1x16x512xbf16>
    %214 = vector.shape_cast %213 : vector<1x16x512xbf16> to vector<16x512xbf16>
    %215 = vector.shape_cast %212 : vector<16x512xbf16> to vector<1x16x512xbf16>
    tpu.vector_store %arg7[%c1_225, %c192_226, %c0_227], %215 {strides = array<i32>} : memref<2x432x512xbf16, #tpu.memory_space<vmem>>, vector<1x16x512xbf16>,
    %c0_228 = arith.constant 0 : index
    %c0_229 = arith.constant 0 : index
    %c0_230 = arith.constant 0 : index
    %c623 = arith.constant 623 : index
    %216 = vector.load %arg2[%c0_228, %c0_229, %c0_230, %c623] : memref<1x1x16x1246xbf16, #tpu.memory_space<vmem>>, vector<1x1x16x512xbf16>
    %217 = vector.shape_cast %216 : vector<1x1x16x512xbf16> to vector<16x512xbf16>
    %c1_231 = arith.constant 1 : index
    %c208_232 = arith.constant 208 : index
    %c0_233 = arith.constant 0 : index
    %218 = vector.load %arg7[%c1_231, %c208_232, %c0_233] : memref<2x432x512xbf16, #tpu.memory_space<vmem>>, vector<1x16x512xbf16>
    %219 = vector.shape_cast %218 : vector<1x16x512xbf16> to vector<16x512xbf16>
    %220 = vector.shape_cast %217 : vector<16x512xbf16> to vector<1x16x512xbf16>
    tpu.vector_store %arg7[%c1_231, %c208_232, %c0_233], %220 {strides = array<i32>} : memref<2x432x512xbf16, #tpu.memory_space<vmem>>, vector<1x16x512xbf16>,
    %c0_234 = arith.constant 0 : index
    %c0_235 = arith.constant 0 : index
    %c0_236 = arith.constant 0 : index
    %c624 = arith.constant 624 : index
    %221 = vector.load %arg2[%c0_234, %c0_235, %c0_236, %c624] : memref<1x1x16x1246xbf16, #tpu.memory_space<vmem>>, vector<1x1x16x512xbf16>
    %222 = vector.shape_cast %221 : vector<1x1x16x512xbf16> to vector<16x512xbf16>
    %c1_237 = arith.constant 1 : index
    %c224_238 = arith.constant 224 : index
    %c0_239 = arith.constant 0 : index
    %223 = vector.load %arg7[%c1_237, %c224_238, %c0_239] : memref<2x432x512xbf16, #tpu.memory_space<vmem>>, vector<1x16x512xbf16>
    %224 = vector.shape_cast %223 : vector<1x16x512xbf16> to vector<16x512xbf16>
    %225 = vector.shape_cast %222 : vector<16x512xbf16> to vector<1x16x512xbf16>
    tpu.vector_store %arg7[%c1_237, %c224_238, %c0_239], %225 {strides = array<i32>} : memref<2x432x512xbf16, #tpu.memory_space<vmem>>, vector<1x16x512xbf16>,
    %c0_240 = arith.constant 0 : index
    %c0_241 = arith.constant 0 : index
    %c0_242 = arith.constant 0 : index
    %c632 = arith.constant 632 : index
    %226 = vector.load %arg2[%c0_240, %c0_241, %c0_242, %c632] : memref<1x1x16x1246xbf16, #tpu.memory_space<vmem>>, vector<1x1x16x512xbf16>
    %227 = vector.shape_cast %226 : vector<1x1x16x512xbf16> to vector<16x512xbf16>
    %c1_243 = arith.constant 1 : index
    %c240_244 = arith.constant 240 : index
    %c0_245 = arith.constant 0 : index
    %228 = vector.load %arg7[%c1_243, %c240_244, %c0_245] : memref<2x432x512xbf16, #tpu.memory_space<vmem>>, vector<1x16x512xbf16>
    %229 = vector.shape_cast %228 : vector<1x16x512xbf16> to vector<16x512xbf16>
    %230 = vector.shape_cast %227 : vector<16x512xbf16> to vector<1x16x512xbf16>
    tpu.vector_store %arg7[%c1_243, %c240_244, %c0_245], %230 {strides = array<i32>} : memref<2x432x512xbf16, #tpu.memory_space<vmem>>, vector<1x16x512xbf16>,
    %c0_246 = arith.constant 0 : index
    %c0_247 = arith.constant 0 : index
    %c0_248 = arith.constant 0 : index
    %c633 = arith.constant 633 : index
    %231 = vector.load %arg2[%c0_246, %c0_247, %c0_248, %c633] : memref<1x1x16x1246xbf16, #tpu.memory_space<vmem>>, vector<1x1x16x512xbf16>
    %232 = vector.shape_cast %231 : vector<1x1x16x512xbf16> to vector<16x512xbf16>
    %c1_249 = arith.constant 1 : index
    %c256_250 = arith.constant 256 : index
    %c0_251 = arith.constant 0 : index
    %233 = vector.load %arg7[%c1_249, %c256_250, %c0_251] : memref<2x432x512xbf16, #tpu.memory_space<vmem>>, vector<1x16x512xbf16>
    %234 = vector.shape_cast %233 : vector<1x16x512xbf16> to vector<16x512xbf16>
    %235 = vector.shape_cast %232 : vector<16x512xbf16> to vector<1x16x512xbf16>
    tpu.vector_store %arg7[%c1_249, %c256_250, %c0_251], %235 {strides = array<i32>} : memref<2x432x512xbf16, #tpu.memory_space<vmem>>, vector<1x16x512xbf16>,
    %c0_252 = arith.constant 0 : index
    %c0_253 = arith.constant 0 : index
    %c0_254 = arith.constant 0 : index
    %c634 = arith.constant 634 : index
    %236 = vector.load %arg2[%c0_252, %c0_253, %c0_254, %c634] : memref<1x1x16x1246xbf16, #tpu.memory_space<vmem>>, vector<1x1x16x512xbf16>
    %237 = vector.shape_cast %236 : vector<1x1x16x512xbf16> to vector<16x512xbf16>
    %c1_255 = arith.constant 1 : index
    %c272_256 = arith.constant 272 : index
    %c0_257 = arith.constant 0 : index
    %238 = vector.load %arg7[%c1_255, %c272_256, %c0_257] : memref<2x432x512xbf16, #tpu.memory_space<vmem>>, vector<1x16x512xbf16>
    %239 = vector.shape_cast %238 : vector<1x16x512xbf16> to vector<16x512xbf16>
    %240 = vector.shape_cast %237 : vector<16x512xbf16> to vector<1x16x512xbf16>
    tpu.vector_store %arg7[%c1_255, %c272_256, %c0_257], %240 {strides = array<i32>} : memref<2x432x512xbf16, #tpu.memory_space<vmem>>, vector<1x16x512xbf16>,
    %c0_258 = arith.constant 0 : index
    %c0_259 = arith.constant 0 : index
    %c0_260 = arith.constant 0 : index
    %c712 = arith.constant 712 : index
    %241 = vector.load %arg2[%c0_258, %c0_259, %c0_260, %c712] : memref<1x1x16x1246xbf16, #tpu.memory_space<vmem>>, vector<1x1x16x512xbf16>
    %242 = vector.shape_cast %241 : vector<1x1x16x512xbf16> to vector<16x512xbf16>
    %c1_261 = arith.constant 1 : index
    %c288_262 = arith.constant 288 : index
    %c0_263 = arith.constant 0 : index
    %243 = vector.load %arg7[%c1_261, %c288_262, %c0_263] : memref<2x432x512xbf16, #tpu.memory_space<vmem>>, vector<1x16x512xbf16>
    %244 = vector.shape_cast %243 : vector<1x16x512xbf16> to vector<16x512xbf16>
    %245 = vector.shape_cast %242 : vector<16x512xbf16> to vector<1x16x512xbf16>
    tpu.vector_store %arg7[%c1_261, %c288_262, %c0_263], %245 {strides = array<i32>} : memref<2x432x512xbf16, #tpu.memory_space<vmem>>, vector<1x16x512xbf16>,
    %c0_264 = arith.constant 0 : index
    %c0_265 = arith.constant 0 : index
    %c0_266 = arith.constant 0 : index
    %c713 = arith.constant 713 : index
    %246 = vector.load %arg2[%c0_264, %c0_265, %c0_266, %c713] : memref<1x1x16x1246xbf16, #tpu.memory_space<vmem>>, vector<1x1x16x512xbf16>
    %247 = vector.shape_cast %246 : vector<1x1x16x512xbf16> to vector<16x512xbf16>
    %c1_267 = arith.constant 1 : index
    %c304_268 = arith.constant 304 : index
    %c0_269 = arith.constant 0 : index
    %248 = vector.load %arg7[%c1_267, %c304_268, %c0_269] : memref<2x432x512xbf16, #tpu.memory_space<vmem>>, vector<1x16x512xbf16>
    %249 = vector.shape_cast %248 : vector<1x16x512xbf16> to vector<16x512xbf16>
    %250 = vector.shape_cast %247 : vector<16x512xbf16> to vector<1x16x512xbf16>
    tpu.vector_store %arg7[%c1_267, %c304_268, %c0_269], %250 {strides = array<i32>} : memref<2x432x512xbf16, #tpu.memory_space<vmem>>, vector<1x16x512xbf16>,
    %c0_270 = arith.constant 0 : index
    %c0_271 = arith.constant 0 : index
    %c0_272 = arith.constant 0 : index
    %c714 = arith.constant 714 : index
    %251 = vector.load %arg2[%c0_270, %c0_271, %c0_272, %c714] : memref<1x1x16x1246xbf16, #tpu.memory_space<vmem>>, vector<1x1x16x512xbf16>
    %252 = vector.shape_cast %251 : vector<1x1x16x512xbf16> to vector<16x512xbf16>
    %c1_273 = arith.constant 1 : index
    %c320_274 = arith.constant 320 : index
    %c0_275 = arith.constant 0 : index
    %253 = vector.load %arg7[%c1_273, %c320_274, %c0_275] : memref<2x432x512xbf16, #tpu.memory_space<vmem>>, vector<1x16x512xbf16>
    %254 = vector.shape_cast %253 : vector<1x16x512xbf16> to vector<16x512xbf16>
    %255 = vector.shape_cast %252 : vector<16x512xbf16> to vector<1x16x512xbf16>
    tpu.vector_store %arg7[%c1_273, %c320_274, %c0_275], %255 {strides = array<i32>} : memref<2x432x512xbf16, #tpu.memory_space<vmem>>, vector<1x16x512xbf16>,
    %c0_276 = arith.constant 0 : index
    %c0_277 = arith.constant 0 : index
    %c0_278 = arith.constant 0 : index
    %c722 = arith.constant 722 : index
    %256 = vector.load %arg2[%c0_276, %c0_277, %c0_278, %c722] : memref<1x1x16x1246xbf16, #tpu.memory_space<vmem>>, vector<1x1x16x512xbf16>
    %257 = vector.shape_cast %256 : vector<1x1x16x512xbf16> to vector<16x512xbf16>
    %c1_279 = arith.constant 1 : index
    %c336_280 = arith.constant 336 : index
    %c0_281 = arith.constant 0 : index
    %258 = vector.load %arg7[%c1_279, %c336_280, %c0_281] : memref<2x432x512xbf16, #tpu.memory_space<vmem>>, vector<1x16x512xbf16>
    %259 = vector.shape_cast %258 : vector<1x16x512xbf16> to vector<16x512xbf16>
    %260 = vector.shape_cast %257 : vector<16x512xbf16> to vector<1x16x512xbf16>
    tpu.vector_store %arg7[%c1_279, %c336_280, %c0_281], %260 {strides = array<i32>} : memref<2x432x512xbf16, #tpu.memory_space<vmem>>, vector<1x16x512xbf16>,
    %c0_282 = arith.constant 0 : index
    %c0_283 = arith.constant 0 : index
    %c0_284 = arith.constant 0 : index
    %c723 = arith.constant 723 : index
    %261 = vector.load %arg2[%c0_282, %c0_283, %c0_284, %c723] : memref<1x1x16x1246xbf16, #tpu.memory_space<vmem>>, vector<1x1x16x512xbf16>
    %262 = vector.shape_cast %261 : vector<1x1x16x512xbf16> to vector<16x512xbf16>
    %c1_285 = arith.constant 1 : index
    %c352_286 = arith.constant 352 : index
    %c0_287 = arith.constant 0 : index
    %263 = vector.load %arg7[%c1_285, %c352_286, %c0_287] : memref<2x432x512xbf16, #tpu.memory_space<vmem>>, vector<1x16x512xbf16>
    %264 = vector.shape_cast %263 : vector<1x16x512xbf16> to vector<16x512xbf16>
    %265 = vector.shape_cast %262 : vector<16x512xbf16> to vector<1x16x512xbf16>
    tpu.vector_store %arg7[%c1_285, %c352_286, %c0_287], %265 {strides = array<i32>} : memref<2x432x512xbf16, #tpu.memory_space<vmem>>, vector<1x16x512xbf16>,
    %c0_288 = arith.constant 0 : index
    %c0_289 = arith.constant 0 : index
    %c0_290 = arith.constant 0 : index
    %c724 = arith.constant 724 : index
    %266 = vector.load %arg2[%c0_288, %c0_289, %c0_290, %c724] : memref<1x1x16x1246xbf16, #tpu.memory_space<vmem>>, vector<1x1x16x512xbf16>
    %267 = vector.shape_cast %266 : vector<1x1x16x512xbf16> to vector<16x512xbf16>
    %c1_291 = arith.constant 1 : index
    %c368_292 = arith.constant 368 : index
    %c0_293 = arith.constant 0 : index
    %268 = vector.load %arg7[%c1_291, %c368_292, %c0_293] : memref<2x432x512xbf16, #tpu.memory_space<vmem>>, vector<1x16x512xbf16>
    %269 = vector.shape_cast %268 : vector<1x16x512xbf16> to vector<16x512xbf16>
    %270 = vector.shape_cast %267 : vector<16x512xbf16> to vector<1x16x512xbf16>
    tpu.vector_store %arg7[%c1_291, %c368_292, %c0_293], %270 {strides = array<i32>} : memref<2x432x512xbf16, #tpu.memory_space<vmem>>, vector<1x16x512xbf16>,
    %c0_294 = arith.constant 0 : index
    %c0_295 = arith.constant 0 : index
    %c0_296 = arith.constant 0 : index
    %c732 = arith.constant 732 : index
    %271 = vector.load %arg2[%c0_294, %c0_295, %c0_296, %c732] : memref<1x1x16x1246xbf16, #tpu.memory_space<vmem>>, vector<1x1x16x512xbf16>
    %272 = vector.shape_cast %271 : vector<1x1x16x512xbf16> to vector<16x512xbf16>
    %c1_297 = arith.constant 1 : index
    %c384_298 = arith.constant 384 : index
    %c0_299 = arith.constant 0 : index
    %273 = vector.load %arg7[%c1_297, %c384_298, %c0_299] : memref<2x432x512xbf16, #tpu.memory_space<vmem>>, vector<1x16x512xbf16>
    %274 = vector.shape_cast %273 : vector<1x16x512xbf16> to vector<16x512xbf16>
    %275 = vector.shape_cast %272 : vector<16x512xbf16> to vector<1x16x512xbf16>
    tpu.vector_store %arg7[%c1_297, %c384_298, %c0_299], %275 {strides = array<i32>} : memref<2x432x512xbf16, #tpu.memory_space<vmem>>, vector<1x16x512xbf16>,
    %c0_300 = arith.constant 0 : index
    %c0_301 = arith.constant 0 : index
    %c0_302 = arith.constant 0 : index
    %c733 = arith.constant 733 : index
    %276 = vector.load %arg2[%c0_300, %c0_301, %c0_302, %c733] : memref<1x1x16x1246xbf16, #tpu.memory_space<vmem>>, vector<1x1x16x512xbf16>
    %277 = vector.shape_cast %276 : vector<1x1x16x512xbf16> to vector<16x512xbf16>
    %c1_303 = arith.constant 1 : index
    %c400_304 = arith.constant 400 : index
    %c0_305 = arith.constant 0 : index
    %278 = vector.load %arg7[%c1_303, %c400_304, %c0_305] : memref<2x432x512xbf16, #tpu.memory_space<vmem>>, vector<1x16x512xbf16>
    %279 = vector.shape_cast %278 : vector<1x16x512xbf16> to vector<16x512xbf16>
    %280 = vector.shape_cast %277 : vector<16x512xbf16> to vector<1x16x512xbf16>
    tpu.vector_store %arg7[%c1_303, %c400_304, %c0_305], %280 {strides = array<i32>} : memref<2x432x512xbf16, #tpu.memory_space<vmem>>, vector<1x16x512xbf16>,
    %c0_306 = arith.constant 0 : index
    %c0_307 = arith.constant 0 : index
    %c0_308 = arith.constant 0 : index
    %c734 = arith.constant 734 : index
    %281 = vector.load %arg2[%c0_306, %c0_307, %c0_308, %c734] : memref<1x1x16x1246xbf16, #tpu.memory_space<vmem>>, vector<1x1x16x512xbf16>
    %282 = vector.shape_cast %281 : vector<1x1x16x512xbf16> to vector<16x512xbf16>
    %c1_309 = arith.constant 1 : index
    %c416_310 = arith.constant 416 : index
    %c0_311 = arith.constant 0 : index
    %283 = vector.load %arg7[%c1_309, %c416_310, %c0_311] : memref<2x432x512xbf16, #tpu.memory_space<vmem>>, vector<1x16x512xbf16>
    %284 = vector.shape_cast %283 : vector<1x16x512xbf16> to vector<16x512xbf16>
    %285 = vector.shape_cast %282 : vector<16x512xbf16> to vector<1x16x512xbf16>
    tpu.vector_store %arg7[%c1_309, %c416_310, %c0_311], %285 {strides = array<i32>} : memref<2x432x512xbf16, #tpu.memory_space<vmem>>, vector<1x16x512xbf16>,
    %c0_312 = arith.constant 0 : index
    %c0_313 = arith.constant 0 : index
    %286 = vector.load %arg3[%c0_312, %c0_313] : memref<64x432xbf16, #tpu.memory_space<vmem>>, vector<64x432xbf16>
    %c1_314 = arith.constant 1 : index
    %c0_315 = arith.constant 0 : index
    %c0_316 = arith.constant 0 : index
    %287 = vector.load %arg7[%c1_314, %c0_315, %c0_316] : memref<2x432x512xbf16, #tpu.memory_space<vmem>>, vector<1x432x512xbf16>
    %288 = vector.shape_cast %287 : vector<1x432x512xbf16> to vector<432x512xbf16>
    %cst_317 = arith.constant dense<0.000000e+00> : vector<64x512xf32>
    %289 = tpu.matmul %286, %288, %cst_317 {dimension_numbers = #tpu.dot_dimension_numbers<[1], [0], [0], [1], [0, 0, 1, 1], [], []>} : vector<64x432xbf16>, vector<432x512xbf16>, vector<64x512xf32> -> vector<64x512xf32>
    %c0_318 = arith.constant 0 : index
    %c0_319 = arith.constant 0 : index
    %290 = vector.load %arg4[%c0_318, %c0_319] : memref<64x1xf32, #tpu.memory_space<vmem>>, vector<64x1xf32>
    %291 = vector.broadcast %290 : vector<64x1xf32> to vector<64x512xf32>
    %292 = arith.mulf %289, %291 : vector<64x512xf32>
    %c0_320 = arith.constant 0 : index
    %c0_321 = arith.constant 0 : index
    %293 = vector.load %arg5[%c0_320, %c0_321] : memref<64x1xf32, #tpu.memory_space<vmem>>, vector<64x1xf32>
    %294 = vector.broadcast %293 : vector<64x1xf32> to vector<64x512xf32>
    %295 = arith.addf %292, %294 : vector<64x512xf32>
    %cst_322 = arith.constant 0.000000e+00 : f32
    %296 = vector.broadcast %cst_322 : f32 to vector<64x512xf32>
    %297 = arith.maximumf %295, %296 : vector<64x512xf32>
    %298 = arith.truncf %297 : vector<64x512xf32> to vector<64x512xbf16>
    %c0_323 = arith.constant 0 : index
    %c0_324 = arith.constant 0 : index
    %c512_325 = arith.constant 512 : index
    %299 = vector.load %arg6[%c0_323, %c0_324, %c512_325] : memref<1x64x1024xbf16, #tpu.memory_space<vmem>>, vector<1x64x512xbf16>
    %300 = vector.shape_cast %299 : vector<1x64x512xbf16> to vector<64x512xbf16>
    %301 = vector.shape_cast %298 : vector<64x512xbf16> to vector<1x64x512xbf16>
    tpu.vector_store %arg6[%c0_323, %c0_324, %c512_325], %301 {strides = array<i32>} : memref<1x64x1024xbf16, #tpu.memory_space<vmem>>, vector<1x64x512xbf16>,
    return
  }
  func.func @transform_0(%arg0: i32, %arg1: i32) -> (i32, i32, i32, i32) {
    %c0_i32 = arith.constant 0 : i32
    %c0_i32_0 = arith.constant 0 : i32
    %c0_i32_1 = arith.constant 0 : i32
    return %arg0, %arg1, %c0_i32, %c0_i32_0 : i32, i32, i32, i32
  }
  func.func @transform_1(%arg0: i32, %arg1: i32) -> (i32, i32) {
    %c0_i32 = arith.constant 0 : i32
    %c0_i32_0 = arith.constant 0 : i32
    %c0_i32_1 = arith.constant 0 : i32
    return %c0_i32, %c0_i32_0 : i32, i32
  }
  func.func @transform_2(%arg0: i32, %arg1: i32) -> (i32, i32) {
    %c0_i32 = arith.constant 0 : i32
    %c0_i32_0 = arith.constant 0 : i32
    %c0_i32_1 = arith.constant 0 : i32
    return %c0_i32, %c0_i32_0 : i32, i32
  }
  func.func @transform_3(%arg0: i32, %arg1: i32) -> (i32, i32) {
    %c0_i32 = arith.constant 0 : i32
    %c0_i32_0 = arith.constant 0 : i32
    %c0_i32_1 = arith.constant 0 : i32
    return %c0_i32, %c0_i32_0 : i32, i32
  }
  func.func @transform_4(%arg0: i32, %arg1: i32) -> (i32, i32, i32) {
    %c0_i32 = arith.constant 0 : i32
    %c0_i32_0 = arith.constant 0 : i32
    return %arg0, %c0_i32, %arg1 : i32, i32, i32
  }
}

</mosaic_0001>

<llo_original>
// kernel: tile.0
$region0: #{tile.0}
  %s0 = inlined_call_operand.vmem [shape: f32[8,8], index: 0, kind: input, shape index: {}]
  %s1 = inlined_call_operand.vmem [shape: f32[64,1], index: 1, kind: output, shape index: {}]
  %v2 = vld [vmem:[%s0] sm:$0xff]
  %vm3 = vcmask 7168
  %4 = vst.msk [vmem:[%s1] ss:$8 sm:$0xf] %vm3, %v2
  %5 = vst.msk [vmem:[%s1] ss:$8 sm:$0xf0] %vm3, %v2
  %v6 = vld [vmem:[%s0] sm:$0xff]
  %7 = vrot.lane.b32.xlu0 %v6, 127
  %v8 = vpop.permute.xlu0 %7
  %vm9 = vcmask 7168
  %s10 = scalar_lea.vmem %s1, 1
  %11 = vst.msk [vmem:[%s10] ss:$8 sm:$0xf] %vm9, %v8
  %s12 = scalar_lea.vmem %s1, 1
  %13 = vst.msk [vmem:[%s12] ss:$8 sm:$0xf0] %vm9, %v8
  %v14 = vld [vmem:[%s0] sm:$0xff]
  %15 = vrot.lane.b32.xlu0 %v14, 126
  %v16 = vpop.permute.xlu0 %15
  %vm17 = vcmask 7168
  %s18 = scalar_lea.vmem %s1, 2
  %19 = vst.msk [vmem:[%s18] ss:$8 sm:$0xf] %vm17, %v16
  %s20 = scalar_lea.vmem %s1, 2
  %21 = vst.msk [vmem:[%s20] ss:$8 sm:$0xf0] %vm17, %v16
  %v22 = vld [vmem:[%s0] sm:$0xff]
  %23 = vrot.lane.b32.xlu0 %v22, 125
  %v24 = vpop.permute.xlu0 %23
  %vm25 = vcmask 7168
  %s26 = scalar_lea.vmem %s1, 3
  %27 = vst.msk [vmem:[%s26] ss:$8 sm:$0xf] %vm25, %v24
  %s28 = scalar_lea.vmem %s1, 3
  %29 = vst.msk [vmem:[%s28] ss:$8 sm:$0xf0] %vm25, %v24
  %v30 = vld [vmem:[%s0] sm:$0xff]
  %31 = vrot.lane.b32.xlu0 %v30, 124
  %v32 = vpop.permute.xlu0 %31
  %vm33 = vcmask 7168
  %s34 = scalar_lea.vmem %s1, 4
  %35 = vst.msk [vmem:[%s34] ss:$8 sm:$0xf] %vm33, %v32
  %s36 = scalar_lea.vmem %s1, 4
  %37 = vst.msk [vmem:[%s36] ss:$8 sm:$0xf0] %vm33, %v32
  %v38 = vld [vmem:[%s0] sm:$0xff]
  %39 = vrot.lane.b32.xlu0 %v38, 123
  %v40 = vpop.permute.xlu0 %39
  %vm41 = vcmask 7168
  %s42 = scalar_lea.vmem %s1, 5
  %43 = vst.msk [vmem:[%s42] ss:$8 sm:$0xf] %vm41, %v40
  %s44 = scalar_lea.vmem %s1, 5
  %45 = vst.msk [vmem:[%s44] ss:$8 sm:$0xf0] %vm41, %v40
  %v46 = vld [vmem:[%s0] sm:$0xff]
  %47 = vrot.lane.b32.xlu0 %v46, 122
  %v48 = vpop.permute.xlu0 %47
  %vm49 = vcmask 7168
  %s50 = scalar_lea.vmem %s1, 6
  %51 = vst.msk [vmem:[%s50] ss:$8 sm:$0xf] %vm49, %v48
  %s52 = scalar_lea.vmem %s1, 6
  %53 = vst.msk [vmem:[%s52] ss:$8 sm:$0xf0] %vm49, %v48
  %v54 = vld [vmem:[%s0] sm:$0xff]
  %55 = vrot.lane.b32.xlu0 %v54, 121
  %v56 = vpop.permute.xlu0 %55
  %vm57 = vcmask 7168
  %s58 = scalar_lea.vmem %s1, 7
  %59 = vst.msk [vmem:[%s58] ss:$8 sm:$0xf] %vm57, %v56
  %s60 = scalar_lea.vmem %s1, 7
  %61 = vst.msk [vmem:[%s60] ss:$8 sm:$0xf0] %vm57, %v56

// kernel: tile.18
$region0: #{tile.18}
  #allocation0 [shape = 's32[1]{0}', space=sflag, size = 0x4, scoped, tag = 'scoped memory for tile.18']
  %s0 = inlined_call_operand.vmem [shape: f32[8], index: 0, kind: input, shape index: {}]
  %s1 = inlined_call_operand.vmem [shape: f32[8,8], index: 1, kind: output, shape index: {}]
  // Predicated region
  $region2: #{tile.18} parent=0 // pred_check
    _
  $region3: #{tile.18} parent=0 // pred_check_branch
    %3 = sbr.rel (0) target = $region5
  $region4: #{tile.18} parent=0 // pred_region
    _
  $region5: #{tile.18} parent=0 // pred_fallthru
    _
  %v4 = vld [vmem:[%s0] ss:$0 sm:$0xff]
  %5 = vst [vmem:[%s1] sm:$0xff] %v4

// kernel: upblock3d_forward.1
$region0: #{upblock3d_forward.1}
  #allocation0 [shape = 'u32[]', space=smem, size = 0x4, offset = 0x4, fixed_abs, tag = 'smem constant byte address 0x4 - core index']
  #allocation1 [shape = 'u32[144,128]{1,0:T(1,128)}', space=vmem, size = 0x12000, scoped, tag = 'internal scratch']
  #allocation2 [shape = 'bf16[2,432,512]{2,1,0:T(16,128)(2,1)}', space=vmem, size = 0xd8000, scoped, tag = 'scratch operand']
  %s0 = inlined_call_operand.vmem [shape: bf16[2,1,16,1246], index: 0, kind: input, shape index: {}]
  %s1 = inlined_call_operand.vmem [shape: bf16[64,432], index: 1, kind: input, shape index: {}]
  %s2 = inlined_call_operand.vmem [shape: f32[64,1], index: 2, kind: input, shape index: {}]
  %s3 = inlined_call_operand.vmem [shape: f32[64,1], index: 3, kind: input, shape index: {}]
  %s4 = inlined_call_operand.vmem [shape: bf16[2,64,1024], index: 4, kind: output, shape index: {}]
  %s5 = sld [smem:[#allocation0]]
  $region49: #{upblock3d_forward.1} parent=0
    _
  %s7 = ssub.s32 1, %s5
  %s8 = scalar_select 0, %s7, %s5
  loop: start=0, step=1, limit=4
  $region2: #{upblock3d_forward.1} parent=0 // loop_pre_header
    _
  $region3: #{upblock3d_forward.1} parent=0 // loop_header
    %s10 = sphi 0, %s14
    %p11 = scmp.ge.s32.totalorder %s10, 4
    %s17 = sphi 0, %s29
    %s18 = sphi 0, %s25
    %s19 = sphi 0, %s17
    %s20 = sphi 0, %s18
    %s21 = sphi 0, %s19
    %s22 = sphi 0, %s20
    %s34 = sphi 0, %s36
    %s37 = sphi 0, %s34
    %s38 = sphi 0, %s37
    %s54 = sphi 0, %s38
    %s58 = sphi 0, %s58
    %s60 = sphi 0, %s58
    %s61 = sphi 0, %s60
    %s75 = sphi 0, %s61
    %s79 = sphi 0, %s79
    %s81 = sphi 0, %s79
    %s82 = sphi 0, %s81
    %s96 = sphi 0, %s82
    %s100 = sphi 0, %s100
    %s102 = sphi 0, %s100
    %s103 = sphi 0, %s102
    %s117 = sphi 0, %s103
    %s125 = sphi 0, %s127
    %s128 = sphi 0, %s125
    %s129 = sphi 0, %s128
    %s145 = sphi 0, %s129
  $region4: #{upblock3d_forward.1} parent=0 // loop_header_branch
    %13 = sbr.rel (%p11) target = $region8
  $region5: #{upblock3d_forward.1} parent=0 // loop_body
    %s15 = ssub.s32 %s10, 1
    %s16 = ssub.s32 %s10, 2
    %s23 = sadd.s32 1, %s18
    %p24 = scmp.ge.s32.totalorder %s23, 1
    %s25 = scalar_select %p24, 0, %s23
    %s26 = sadd.s32 1, %s17
    %s27 = scalar_select %p24, %s26, %s17
    %p28 = scmp.ge.s32.totalorder %s27, 2
    %s29 = scalar_select %p28, 0, %s27
    %s30 = ssub.s32 %s17, %s29
    %s31 = ssub.s32 %s18, %s25
    %s32 = sor.u32 %s30, %s31
    %p33 = scmp.eq.s32.totalorder %s32, 0
    %s35 = sadd.s32 %s34, 1
    %s36 = scalar_select %p33, %s34, %s35
    %p39 = pneg %p33
    %p40 = scmp.eq.s32.totalorder %s10, 1
    %p41 = por %p39, %p40
    %p42 = scmp.ne.s32.totalorder %s34, %s37
    %p43 = scmp.eq.s32.totalorder %s10, 0
    %p44 = por %p42, %p43
    %p45 = scmp.ne.s32.totalorder %s34, %s37
    %p46 = scmp.eq.s32.totalorder %s15, 1
    %p47 = por %p45, %p46
    %p48 = scmp.ne.s32.totalorder %s37, %s38
    %p49 = scmp.eq.s32.totalorder %s15, 0
    %p50 = por %p48, %p49
    %p51 = scmp.ne.s32.totalorder %s37, %s38
    %p52 = scmp.eq.s32.totalorder %s16, 1
    %p53 = por %p51, %p52
    %p55 = scmp.ne.s32.totalorder %s38, %s54
    %p56 = scmp.eq.s32.totalorder %s16, 0
    %p57 = por %p55, %p56
    %s59 = sadd.s32 %s58, 1
    %p62 = scmp.eq.s32.totalorder %s10, 1
    %p63 = scmp.ne.s32.totalorder %s58, %s60
    %p64 = scmp.eq.s32.totalorder %s10, 0
    %p65 = por %p63, %p64
    %p66 = scmp.ne.s32.totalorder %s58, %s60
    %p67 = scmp.eq.s32.totalorder %s15, 1
    %p68 = por %p66, %p67
    %p69 = scmp.ne.s32.totalorder %s60, %s61
    %p70 = scmp.eq.s32.totalorder %s15, 0
    %p71 = por %p69, %p70
    %p72 = scmp.ne.s32.totalorder %s60, %s61
    %p73 = scmp.eq.s32.totalorder %s16, 1
    %p74 = por %p72, %p73
    %p76 = scmp.ne.s32.totalorder %s61, %s75
    %p77 = scmp.eq.s32.totalorder %s16, 0
    %p78 = por %p76, %p77
    %s80 = sadd.s32 %s79, 1
    %p83 = scmp.eq.s32.totalorder %s10, 1
    %p84 = scmp.ne.s32.totalorder %s79, %s81
    %p85 = scmp.eq.s32.totalorder %s10, 0
    %p86 = por %p84, %p85
    %p87 = scmp.ne.s32.totalorder %s79, %s81
    %p88 = scmp.eq.s32.totalorder %s15, 1
    %p89 = por %p87, %p88
    %p90 = scmp.ne.s32.totalorder %s81, %s82
    %p91 = scmp.eq.s32.totalorder %s15, 0
    %p92 = por %p90, %p91
    %p93 = scmp.ne.s32.totalorder %s81, %s82
    %p94 = scmp.eq.s32.totalorder %s16, 1
    %p95 = por %p93, %p94
    %p97 = scmp.ne.s32.totalorder %s82, %s96
    %p98 = scmp.eq.s32.totalorder %s16, 0
    %p99 = por %p97, %p98
    %s101 = sadd.s32 %s100, 1
    %p104 = scmp.eq.s32.totalorder %s10, 1
    %p105 = scmp.ne.s32.totalorder %s100, %s102
    %p106 = scmp.eq.s32.totalorder %s10, 0
    %p107 = por %p105, %p106
    %p108 = scmp.ne.s32.totalorder %s100, %s102
    %p109 = scmp.eq.s32.totalorder %s15, 1
    %p110 = por %p108, %p109
    %p111 = scmp.ne.s32.totalorder %s102, %s103
    %p112 = scmp.eq.s32.totalorder %s15, 0
    %p113 = por %p111, %p112
    %p114 = scmp.ne.s32.totalorder %s102, %s103
    %p115 = scmp.eq.s32.totalorder %s16, 1
    %p116 = por %p114, %p115
    %p118 = scmp.ne.s32.totalorder %s103, %s117
    %p119 = scmp.eq.s32.totalorder %s16, 0
    %p120 = por %p118, %p119
    %s121 = ssub.s32 %s17, %s29
    %s122 = ssub.s32 %s18, %s25
    %s123 = sor.u32 %s121, %s122
    %p124 = scmp.eq.s32.totalorder %s123, 0
    %s126 = sadd.s32 %s125, 1
    %s127 = scalar_select %p124, %s125, %s126
    %p130 = pneg %p124
    %p131 = scmp.eq.s32.totalorder %s10, 1
    %p132 = por %p130, %p131
    %p133 = scmp.ne.s32.totalorder %s125, %s128
    %p134 = scmp.eq.s32.totalorder %s10, 0
    %p135 = por %p133, %p134
    %p136 = scmp.ne.s32.totalorder %s125, %s128
    %p137 = scmp.eq.s32.totalorder %s15, 1
    %p138 = por %p136, %p137
    %p139 = scmp.ne.s32.totalorder %s128, %s129
    %p140 = scmp.eq.s32.totalorder %s15, 0
    %p141 = por %p139, %p140
    %p142 = scmp.ne.s32.totalorder %s128, %s129
    %p143 = scmp.eq.s32.totalorder %s16, 1
    %p144 = por %p142, %p143
    %p146 = scmp.ne.s32.totalorder %s129, %s145
    %p147 = scmp.eq.s32.totalorder %s16, 0
    %p148 = por %p146, %p147
    %p149 = scmp.le.s32.totalorder 1, %s10
    %p150 = scmp.lt.s32.totalorder %s10, 3
    %p151 = pnand %p149, %p150
    %p152 = pneg %p151
    // Predicated region
    $region9: #{upblock3d_forward.1} parent=5 // pred_check
      _
    $region10: #{upblock3d_forward.1} parent=5 // pred_check_branch
      %154 = sbr.rel (%p151) target = $region12
    $region11: #{upblock3d_forward.1} parent=5 // pred_region
      %s155 = ssub.s32 %s10, 1
      // Predicated region
      $region13: #{upblock3d_forward.1} parent=11 // pred_check
        %p156 = pneg %p71
      $region14: #{upblock3d_forward.1} parent=11 // pred_check_branch
        %158 = sbr.rel (%p156) target = $region16
      $region15: #{upblock3d_forward.1} parent=11 // pred_region
        _
      $region16: #{upblock3d_forward.1} parent=11 // pred_fallthru
        _
      // Predicated region
      $region17: #{upblock3d_forward.1} parent=11 // pred_check
        %p159 = pneg %p92
      $region18: #{upblock3d_forward.1} parent=11 // pred_check_branch
        %161 = sbr.rel (%p159) target = $region20
      $region19: #{upblock3d_forward.1} parent=11 // pred_region
        _
      $region20: #{upblock3d_forward.1} parent=11 // pred_fallthru
        _
      // Predicated region
      $region21: #{upblock3d_forward.1} parent=11 // pred_check
        %p162 = pneg %p113
      $region22: #{upblock3d_forward.1} parent=11 // pred_check_branch
        %164 = sbr.rel (%p162) target = $region24
      $region23: #{upblock3d_forward.1} parent=11 // pred_region
        _
      $region24: #{upblock3d_forward.1} parent=11 // pred_fallthru
        _
    $region12: #{upblock3d_forward.1} parent=5 // pred_fallthru
      _
    %p165 = scmp.lt.s32.totalorder %s10, 2
    // Predicated region
    $region25: #{upblock3d_forward.1} parent=5 // pred_check
      %p166 = pneg %p165
    $region26: #{upblock3d_forward.1} parent=5 // pred_check_branch
      %168 = sbr.rel (%p166) target = $region28
    $region27: #{upblock3d_forward.1} parent=5 // pred_region
      // Predicated region
      $region29: #{upblock3d_forward.1} parent=27 // pred_check
        %p169 = pneg %p44
      $region30: #{upblock3d_forward.1} parent=27 // pred_check_branch
        %171 = sbr.rel (%p169) target = $region32
      $region31: #{upblock3d_forward.1} parent=27 // pred_region
        %p172 = scmp.lt.s32.totalorder %s17, 1
        %s173 = scalar_select %p172, %s17, 1
        %p174 = scmp.lt.s32.totalorder %s18, 0
        %s175 = scalar_select %p174, %s18, 0
        %s176 = smul.addr %s175, 20
        %s177 = smul.addr %s173, 20
        %s178 = sadd.s32 %s176, %s177
        %s179 = smul.addr %s178, 4
        %s180 = scalar_lea.vmem %s0, %s179
      $region32: #{upblock3d_forward.1} parent=27 // pred_fallthru
        _
    $region28: #{upblock3d_forward.1} parent=5 // pred_fallthru
      _
    %p181 = scmp.le.s32.totalorder 1, %s10
    %p182 = scmp.lt.s32.totalorder %s10, 3
    %p183 = pnand %p181, %p182
    %p184 = pneg %p183
    // Predicated region
    $region33: #{upblock3d_forward.1} parent=5 // pred_check
      _
    $region34: #{upblock3d_forward.1} parent=5 // pred_check_branch
      %186 = sbr.rel (%p183) target = $region36
    $region35: #{upblock3d_forward.1} parent=5 // pred_region
      %s187 = ssub.s32 %s10, 1
      %p188 = scmp.lt.s32.totalorder %s19, 1
      %s189 = scalar_select %p188, %s19, 1
      %p190 = scmp.lt.s32.totalorder %s20, 0
      %s191 = scalar_select %p190, %s20, 0
      %s192 = smul.addr %s191, 20
      %s193 = smul.addr %s189, 20
      %s194 = sadd.s32 %s192, %s193
      %s195 = smul.addr %s194, 4
      %s196 = scalar_lea.vmem %s0, %s195
      %p197 = pneg %p50
      %p198 = pneg %p47
      %p199 = pneg %p71
      %p200 = pneg %p68
      %p201 = pneg %p92
      %p202 = pneg %p89
      %p203 = pneg %p113
      %p204 = pneg %p110
      %p205 = pneg %p141
      %p206 = pneg %p138
      %s207 = smul.u32 8, %s20
      %p208 = scmp.lt.s32.totalorder %s19, 1
      %s209 = scalar_select %p208, %s19, 1
      %p210 = scmp.lt.s32.totalorder %s207, 7
      %s211 = scalar_select %p210, %s207, 7
      %s212 = smul.addr %s209, 64
      %s213 = sadd.s32 %s211, %s212
      %s214 = smul.addr %s213, 4
      %s215 = scalar_lea.vmem %s4, %s214
      %p216 = scmp.lt.s32.totalorder %s19, 1
      %s217 = scalar_select %p216, %s19, 1
      %p218 = scmp.lt.s32.totalorder %s20, 0
      %s219 = scalar_select %p218, %s20, 0
      %s220 = smul.addr %s219, 20
      %s221 = smul.addr %s217, 20
      %s222 = sadd.s32 %s220, %s221
      %s223 = smul.addr %s222, 4
      %s224 = scalar_lea.vmem %s0, %s223
      %s225 = smul.u32 8, %s20
      %p226 = scmp.lt.s32.totalorder %s19, 1
      %s227 = scalar_select %p226, %s19, 1
      %p228 = scmp.lt.s32.totalorder %s225, 7
      %s229 = scalar_select %p228, %s225, 7
      %s230 = smul.addr %s227, 64
      %s231 = sadd.s32 %s229, %s230
      %s232 = smul.addr %s231, 4
      %s233 = scalar_lea.vmem %s4, %s232
      %s234 = smul.u32 8, %s20
      %v236 = vld [vmem:[%s224] sm:$0xff]
      %v237 = vld [vmem:[%s224 + $0x8] sm:$0xff]
      %v238 = vld [vmem:[%s224 + $0x28] sm:$0xff]
      %v239 = vld [vmem:[%s224 + $0x30] sm:$0xff]
      %v244 = vunpack.c.l.b16 %v236
      %v245 = vunpack.c.h.b16 %v236
      %v246 = vunpack.c.l.b16 %v237
      %v247 = vunpack.c.h.b16 %v237
      %v248 = vunpack.c.l.b16 %v238
      %v249 = vunpack.c.h.b16 %v238
      %v250 = vunpack.c.l.b16 %v239
      %v251 = vunpack.c.h.b16 %v239
      %v252 = vpack.c.b16 %v248, %v244
      %v253 = vpack.c.b16 %v249, %v245
      %v254 = vpack.c.b16 %v250, %v246
      %v255 = vpack.c.b16 %v251, %v247
      %260 = vst [vmem:[#allocation2] sm:$0xff] %v252
      %261 = vst [vmem:[#allocation2 + $0x8] sm:$0xff] %v253
      %262 = vst [vmem:[#allocation2 + $0x10] sm:$0xff] %v254
      %263 = vst [vmem:[#allocation2 + $0x18] sm:$0xff] %v255
      %v264 = vld [vmem:[%s224] sm:$0xff]
      %v265 = vld [vmem:[%s224 + $0x8] sm:$0xff]
      %v266 = vld [vmem:[%s224 + $0x10] sm:$0xf]
      %v267 = vld [vmem:[%s224 + $0x28] sm:$0xff]
      %v268 = vld [vmem:[%s224 + $0x30] sm:$0xff]
      %v269 = vld [vmem:[%s224 + $0x38] sm:$0xf]
      %v276 = vunpack.c.l.b16 %v264
      %v277 = vunpack.c.h.b16 %v264
      %v278 = vunpack.c.l.b16 %v265
      %v279 = vunpack.c.h.b16 %v265
      %v280 = vunpack.c.l.b16 %v266
      %v281 = vunpack.c.l.b16 %v267
      %v282 = vunpack.c.h.b16 %v267
      %v283 = vunpack.c.l.b16 %v268
      %v284 = vunpack.c.h.b16 %v268
      %v285 = vunpack.c.l.b16 %v269
      %v286 = vpack.c.b16 %v281, %v276
      %v287 = vpack.c.b16 %v282, %v277
      %v288 = vpack.c.b16 %v283, %v278
      %v289 = vpack.c.b16 %v284, %v279
      %v290 = vpack.c.b16 %v285, %v280
      %291 = vrot.lane.b32.xlu0 %v286, 127
      %v292 = vpop.permute.xlu0 %291
      %293 = vrot.lane.b32.xlu0 %v287, 127
      %v294 = vpop.permute.xlu0 %293
      %295 = vrot.lane.b32.xlu0 %v288, 127
      %v296 = vpop.permute.xlu0 %295
      %297 = vrot.lane.b32.xlu0 %v289, 127
      %v298 = vpop.permute.xlu0 %297
      %299 = vrot.lane.b32.xlu0 %v290, 127
      %v300 = vpop.permute.xlu0 %299
      %vm301 = vcmask 1039360
      %v302 = vsel %vm301, %v292, %v294
      %v303 = vsel %vm301, %v294, %v296
      %v304 = vsel %vm301, %v296, %v298
      %v305 = vsel %vm301, %v298, %v300
      %310 = vst [vmem:[#allocation2 + $0x20] sm:$0xff] %v302
      %311 = vst [vmem:[#allocation2 + $0x28] sm:$0xff] %v303
      %312 = vst [vmem:[#allocation2 + $0x30] sm:$0xff] %v304
      %313 = vst [vmem:[#allocation2 + $0x38] sm:$0xff] %v305
      %v314 = vld [vmem:[%s224] sm:$0xff]
      %v315 = vld [vmem:[%s224 + $0x8] sm:$0xff]
      %v316 = vld [vmem:[%s224 + $0x10] sm:$0xf]
      %v317 = vld [vmem:[%s224 + $0x28] sm:$0xff]
      %v318 = vld [vmem:[%s224 + $0x30] sm:$0xff]
      %v319 = vld [vmem:[%s224 + $0x38] sm:$0xf]
      %v326 = vunpack.c.l.b16 %v314
      %v327 = vunpack.c.h.b16 %v314
      %v328 = vunpack.c.l.b16 %v315
      %v329 = vunpack.c.h.b16 %v315
      %v330 = vunpack.c.l.b16 %v316
      %v331 = vunpack.c.l.b16 %v317
      %v332 = vunpack.c.h.b16 %v317
      %v333 = vunpack.c.l.b16 %v318
      %v334 = vunpack.c.h.b16 %v318
      %v335 = vunpack.c.l.b16 %v319
      %v336 = vpack.c.b16 %v331, %v326
      %v337 = vpack.c.b16 %v332, %v327
      %v338 = vpack.c.b16 %v333, %v328
      %v339 = vpack.c.b16 %v334, %v329
      %v340 = vpack.c.b16 %v335, %v330
      %341 = vrot.lane.b32.xlu0 %v336, 126
      %v342 = vpop.permute.xlu0 %341
      %343 = vrot.lane.b32.xlu0 %v337, 126
      %v344 = vpop.permute.xlu0 %343
      %345 = vrot.lane.b32.xlu0 %v338, 126
      %v346 = vpop.permute.xlu0 %345
      %347 = vrot.lane.b32.xlu0 %v339, 126
      %v348 = vpop.permute.xlu0 %347
      %349 = vrot.lane.b32.xlu0 %v340, 126
      %v350 = vpop.permute.xlu0 %349
      %vm351 = vcmask 1031168
      %v352 = vsel %vm351, %v342, %v344
      %v353 = vsel %vm351, %v344, %v346
      %v354 = vsel %vm351, %v346, %v348
      %v355 = vsel %vm351, %v348, %v350
      %360 = vst [vmem:[#allocation2 + $0x40] sm:$0xff] %v352
      %361 = vst [vmem:[#allocation2 + $0x48] sm:$0xff] %v353
      %362 = vst [vmem:[#allocation2 + $0x50] sm:$0xff] %v354
      %363 = vst [vmem:[#allocation2 + $0x58] sm:$0xff] %v355
      %v364 = vld [vmem:[%s224] sm:$0xff]
      %v365 = vld [vmem:[%s224 + $0x8] sm:$0xff]
      %v366 = vld [vmem:[%s224 + $0x10] sm:$0xf]
      %v367 = vld [vmem:[%s224 + $0x28] sm:$0xff]
      %v368 = vld [vmem:[%s224 + $0x30] sm:$0xff]
      %v369 = vld [vmem:[%s224 + $0x38] sm:$0xf]
      %v376 = vunpack.c.l.b16 %v364
      %v377 = vunpack.c.h.b16 %v364
      %v378 = vunpack.c.l.b16 %v365
      %v379 = vunpack.c.h.b16 %v365
      %v380 = vunpack.c.l.b16 %v366
      %v381 = vunpack.c.l.b16 %v367
      %v382 = vunpack.c.h.b16 %v367
      %v383 = vunpack.c.l.b16 %v368
      %v384 = vunpack.c.h.b16 %v368
      %v385 = vunpack.c.l.b16 %v369
      %v386 = vpack.c.b16 %v381, %v376
      %v387 = vpack.c.b16 %v382, %v377
      %v388 = vpack.c.b16 %v383, %v378
      %v389 = vpack.c.b16 %v384, %v379
      %v390 = vpack.c.b16 %v385, %v380
      %391 = vrot.lane.b32.xlu0 %v386, 118
      %v392 = vpop.permute.xlu0 %391
      %393 = vrot.lane.b32.xlu0 %v387, 118
      %v394 = vpop.permute.xlu0 %393
      %395 = vrot.lane.b32.xlu0 %v388, 118
      %v396 = vpop.permute.xlu0 %395
      %397 = vrot.lane.b32.xlu0 %v389, 118
      %v398 = vpop.permute.xlu0 %397
      %399 = vrot.lane.b32.xlu0 %v390, 118
      %v400 = vpop.permute.xlu0 %399
      %vm401 = vcmask 965632
      %v402 = vsel %vm401, %v392, %v394
      %v403 = vsel %vm401, %v394, %v396
      %v404 = vsel %vm401, %v396, %v398
      %v405 = vsel %vm401, %v398, %v400
      %410 = vst [vmem:[#allocation2 + $0x60] sm:$0xff] %v402
      %411 = vst [vmem:[#allocation2 + $0x68] sm:$0xff] %v403
      %412 = vst [vmem:[#allocation2 + $0x70] sm:$0xff] %v404
      %413 = vst [vmem:[#allocation2 + $0x78] sm:$0xff] %v405
      %v414 = vld [vmem:[%s224] sm:$0xff]
      %v415 = vld [vmem:[%s224 + $0x8] sm:$0xff]
      %v416 = vld [vmem:[%s224 + $0x10] sm:$0xf]
      %v417 = vld [vmem:[%s224 + $0x28] sm:$0xff]
      %v418 = vld [vmem:[%s224 + $0x30] sm:$0xff]
      %v419 = vld [vmem:[%s224 + $0x38] sm:$0xf]
      %v426 = vunpack.c.l.b16 %v414
      %v427 = vunpack.c.h.b16 %v414
      %v428 = vunpack.c.l.b16 %v415
      %v429 = vunpack.c.h.b16 %v415
      %v430 = vunpack.c.l.b16 %v416
      %v431 = vunpack.c.l.b16 %v417
      %v432 = vunpack.c.h.b16 %v417
      %v433 = vunpack.c.l.b16 %v418
      %v434 = vunpack.c.h.b16 %v418
      %v435 = vunpack.c.l.b16 %v419
      %v436 = vpack.c.b16 %v431, %v426
      %v437 = vpack.c.b16 %v432, %v427
      %v438 = vpack.c.b16 %v433, %v428
      %v439 = vpack.c.b16 %v434, %v429
      %v440 = vpack.c.b16 %v435, %v430
      %441 = vrot.lane.b32.xlu0 %v436, 117
      %v442 = vpop.permute.xlu0 %441
      %443 = vrot.lane.b32.xlu0 %v437, 117
      %v444 = vpop.permute.xlu0 %443
      %445 = vrot.lane.b32.xlu0 %v438, 117
      %v446 = vpop.permute.xlu0 %445
      %447 = vrot.lane.b32.xlu0 %v439, 117
      %v448 = vpop.permute.xlu0 %447
      %449 = vrot.lane.b32.xlu0 %v440, 117
      %v450 = vpop.permute.xlu0 %449
      %vm451 = vcmask 957440
      %v452 = vsel %vm451, %v442, %v444
      %v453 = vsel %vm451, %v444, %v446
      %v454 = vsel %vm451, %v446, %v448
      %v455 = vsel %vm451, %v448, %v450
      %460 = vst [vmem:[#allocation2 + $0x80] sm:$0xff] %v452
      %461 = vst [vmem:[#allocation2 + $0x88] sm:$0xff] %v453
      %462 = vst [vmem:[#allocation2 + $0x90] sm:$0xff] %v454
      %463 = vst [vmem:[#allocation2 + $0x98] sm:$0xff] %v455
      %v464 = vld [vmem:[%s224] sm:$0xff]
      %v465 = vld [vmem:[%s224 + $0x8] sm:$0xff]
      %v466 = vld [vmem:[%s224 + $0x10] sm:$0xf]
      %v467 = vld [vmem:[%s224 + $0x28] sm:$0xff]
      %v468 = vld [vmem:[%s224 + $0x30] sm:$0xff]
      %v469 = vld [vmem:[%s224 + $0x38] sm:$0xf]
      %v476 = vunpack.c.l.b16 %v464
      %v477 = vunpack.c.h.b16 %v464
      %v478 = vunpack.c.l.b16 %v465
      %v479 = vunpack.c.h.b16 %v465
      %v480 = vunpack.c.l.b16 %v466
      %v481 = vunpack.c.l.b16 %v467
      %v482 = vunpack.c.h.b16 %v467
      %v483 = vunpack.c.l.b16 %v468
      %v484 = vunpack.c.h.b16 %v468
      %v485 = vunpack.c.l.b16 %v469
      %v486 = vpack.c.b16 %v481, %v476
      %v487 = vpack.c.b16 %v482, %v477
      %v488 = vpack.c.b16 %v483, %v478
      %v489 = vpack.c.b16 %v484, %v479
      %v490 = vpack.c.b16 %v485, %v480
      %491 = vrot.lane.b32.xlu0 %v486, 116
      %v492 = vpop.permute.xlu0 %491
      %493 = vrot.lane.b32.xlu0 %v487, 116
      %v494 = vpop.permute.xlu0 %493
      %495 = vrot.lane.b32.xlu0 %v488, 116
      %v496 = vpop.permute.xlu0 %495
      %497 = vrot.lane.b32.xlu0 %v489, 116
      %v498 = vpop.permute.xlu0 %497
      %499 = vrot.lane.b32.xlu0 %v490, 116
      %v500 = vpop.permute.xlu0 %499
      %vm501 = vcmask 949248
      %v502 = vsel %vm501, %v492, %v494
      %v503 = vsel %vm501, %v494, %v496
      %v504 = vsel %vm501, %v496, %v498
      %v505 = vsel %vm501, %v498, %v500
      %510 = vst [vmem:[#allocation2 + $0xa0] sm:$0xff] %v502
      %511 = vst [vmem:[#allocation2 + $0xa8] sm:$0xff] %v503
      %512 = vst [vmem:[#allocation2 + $0xb0] sm:$0xff] %v504
      %513 = vst [vmem:[#allocation2 + $0xb8] sm:$0xff] %v505
      %v514 = vld [vmem:[%s224] sm:$0xff]
      %v515 = vld [vmem:[%s224 + $0x8] sm:$0xff]
      %v516 = vld [vmem:[%s224 + $0x10] sm:$0xf]
      %v517 = vld [vmem:[%s224 + $0x28] sm:$0xff]
      %v518 = vld [vmem:[%s224 + $0x30] sm:$0xff]
      %v519 = vld [vmem:[%s224 + $0x38] sm:$0xf]
      %v526 = vunpack.c.l.b16 %v514
      %v527 = vunpack.c.h.b16 %v514
      %v528 = vunpack.c.l.b16 %v515
      %v529 = vunpack.c.h.b16 %v515
      %v530 = vunpack.c.l.b16 %v516
      %v531 = vunpack.c.l.b16 %v517
      %v532 = vunpack.c.h.b16 %v517
      %v533 = vunpack.c.l.b16 %v518
      %v534 = vunpack.c.h.b16 %v518
      %v535 = vunpack.c.l.b16 %v519
      %v536 = vpack.c.b16 %v531, %v526
      %v537 = vpack.c.b16 %v532, %v527
      %v538 = vpack.c.b16 %v533, %v528
      %v539 = vpack.c.b16 %v534, %v529
      %v540 = vpack.c.b16 %v535, %v530
      %541 = vrot.lane.b32.xlu0 %v536, 108
      %v542 = vpop.permute.xlu0 %541
      %543 = vrot.lane.b32.xlu0 %v537, 108
      %v544 = vpop.permute.xlu0 %543
      %545 = vrot.lane.b32.xlu0 %v538, 108
      %v546 = vpop.permute.xlu0 %545
      %547 = vrot.lane.b32.xlu0 %v539, 108
      %v548 = vpop.permute.xlu0 %547
      %549 = vrot.lane.b32.xlu0 %v540, 108
      %v550 = vpop.permute.xlu0 %549
      %vm551 = vcmask 883712
      %v552 = vsel %vm551, %v542, %v544
      %v553 = vsel %vm551, %v544, %v546
      %v554 = vsel %vm551, %v546, %v548
      %v555 = vsel %vm551, %v548, %v550
      %560 = vst [vmem:[#allocation2 + $0xc0] sm:$0xff] %v552
      %561 = vst [vmem:[#allocation2 + $0xc8] sm:$0xff] %v553
      %562 = vst [vmem:[#allocation2 + $0xd0] sm:$0xff] %v554
      %563 = vst [vmem:[#allocation2 + $0xd8] sm:$0xff] %v555
      %v564 = vld [vmem:[%s224] sm:$0xff]
      %v565 = vld [vmem:[%s224 + $0x8] sm:$0xff]
      %v566 = vld [vmem:[%s224 + $0x10] sm:$0xf]
      %v567 = vld [vmem:[%s224 + $0x28] sm:$0xff]
      %v568 = vld [vmem:[%s224 + $0x30] sm:$0xff]
      %v569 = vld [vmem:[%s224 + $0x38] sm:$0xf]
      %v576 = vunpack.c.l.b16 %v564
      %v577 = vunpack.c.h.b16 %v564
      %v578 = vunpack.c.l.b16 %v565
      %v579 = vunpack.c.h.b16 %v565
      %v580 = vunpack.c.l.b16 %v566
      %v581 = vunpack.c.l.b16 %v567
      %v582 = vunpack.c.h.b16 %v567
      %v583 = vunpack.c.l.b16 %v568
      %v584 = vunpack.c.h.b16 %v568
      %v585 = vunpack.c.l.b16 %v569
      %v586 = vpack.c.b16 %v581, %v576
      %v587 = vpack.c.b16 %v582, %v577
      %v588 = vpack.c.b16 %v583, %v578
      %v589 = vpack.c.b16 %v584, %v579
      %v590 = vpack.c.b16 %v585, %v580
      %591 = vrot.lane.b32.xlu0 %v586, 107
      %v592 = vpop.permute.xlu0 %591
      %593 = vrot.lane.b32.xlu0 %v587, 107
      %v594 = vpop.permute.xlu0 %593
      %595 = vrot.lane.b32.xlu0 %v588, 107
      %v596 = vpop.permute.xlu0 %595
      %597 = vrot.lane.b32.xlu0 %v589, 107
      %v598 = vpop.permute.xlu0 %597
      %599 = vrot.lane.b32.xlu0 %v590, 107
      %v600 = vpop.permute.xlu0 %599
      %vm601 = vcmask 875520
      %v602 = vsel %vm601, %v592, %v594
      %v603 = vsel %vm601, %v594, %v596
      %v604 = vsel %vm601, %v596, %v598
      %v605 = vsel %vm601, %v598, %v600
      %610 = vst [vmem:[#allocation2 + $0xe0] sm:$0xff] %v602
      %611 = vst [vmem:[#allocation2 + $0xe8] sm:$0xff] %v603
      %612 = vst [vmem:[#allocation2 + $0xf0] sm:$0xff] %v604
      %613 = vst [vmem:[#allocation2 + $0xf8] sm:$0xff] %v605
      %v614 = vld [vmem:[%s224] sm:$0xff]
      %v615 = vld [vmem:[%s224 + $0x8] sm:$0xff]
      %v616 = vld [vmem:[%s224 + $0x10] sm:$0xf]
      %v617 = vld [vmem:[%s224 + $0x28] sm:$0xff]
      %v618 = vld [vmem:[%s224 + $0x30] sm:$0xff]
      %v619 = vld [vmem:[%s224 + $0x38] sm:$0xf]
      %v626 = vunpack.c.l.b16 %v614
      %v627 = vunpack.c.h.b16 %v614
      %v628 = vunpack.c.l.b16 %v615
      %v629 = vunpack.c.h.b16 %v615
      %v630 = vunpack.c.l.b16 %v616
      %v631 = vunpack.c.l.b16 %v617
      %v632 = vunpack.c.h.b16 %v617
      %v633 = vunpack.c.l.b16 %v618
      %v634 = vunpack.c.h.b16 %v618
      %v635 = vunpack.c.l.b16 %v619
      %v636 = vpack.c.b16 %v631, %v626
      %v637 = vpack.c.b16 %v632, %v627
      %v638 = vpack.c.b16 %v633, %v628
      %v639 = vpack.c.b16 %v634, %v629
      %v640 = vpack.c.b16 %v635, %v630
      %641 = vrot.lane.b32.xlu0 %v636, 106
      %v642 = vpop.permute.xlu0 %641
      %643 = vrot.lane.b32.xlu0 %v637, 106
      %v644 = vpop.permute.xlu0 %643
      %645 = vrot.lane.b32.xlu0 %v638, 106
      %v646 = vpop.permute.xlu0 %645
      %647 = vrot.lane.b32.xlu0 %v639, 106
      %v648 = vpop.permute.xlu0 %647
      %649 = vrot.lane.b32.xlu0 %v640, 106
      %v650 = vpop.permute.xlu0 %649
      %vm651 = vcmask 867328
      %v652 = vsel %vm651, %v642, %v644
      %v653 = vsel %vm651, %v644, %v646
      %v654 = vsel %vm651, %v646, %v648
      %v655 = vsel %vm651, %v648, %v650
      %660 = vst [vmem:[#allocation2 + $0x100] sm:$0xff] %v652
      %661 = vst [vmem:[#allocation2 + $0x108] sm:$0xff] %v653
      %662 = vst [vmem:[#allocation2 + $0x110] sm:$0xff] %v654
      %663 = vst [vmem:[#allocation2 + $0x118] sm:$0xff] %v655
      %v664 = vld [vmem:[%s224] sm:$0xff]
      %v665 = vld [vmem:[%s224 + $0x8] sm:$0xff]
      %v666 = vld [vmem:[%s224 + $0x10] sm:$0xf]
      %v667 = vld [vmem:[%s224 + $0x28] sm:$0xff]
      %v668 = vld [vmem:[%s224 + $0x30] sm:$0xff]
      %v669 = vld [vmem:[%s224 + $0x38] sm:$0xf]
      %v676 = vunpack.c.l.b16 %v664
      %v677 = vunpack.c.h.b16 %v664
      %v678 = vunpack.c.l.b16 %v665
      %v679 = vunpack.c.h.b16 %v665
      %v680 = vunpack.c.l.b16 %v666
      %v681 = vunpack.c.l.b16 %v667
      %v682 = vunpack.c.h.b16 %v667
      %v683 = vunpack.c.l.b16 %v668
      %v684 = vunpack.c.h.b16 %v668
      %v685 = vunpack.c.l.b16 %v669
      %v686 = vpack.c.b16 %v681, %v676
      %v687 = vpack.c.b16 %v682, %v677
      %v688 = vpack.c.b16 %v683, %v678
      %v689 = vpack.c.b16 %v684, %v679
      %v690 = vpack.c.b16 %v685, %v680
      %691 = vrot.lane.b32.xlu0 %v686, 28
      %v692 = vpop.permute.xlu0 %691
      %693 = vrot.lane.b32.xlu0 %v687, 28
      %v694 = vpop.permute.xlu0 %693
      %695 = vrot.lane.b32.xlu0 %v688, 28
      %v696 = vpop.permute.xlu0 %695
      %697 = vrot.lane.b32.xlu0 %v689, 28
      %v698 = vpop.permute.xlu0 %697
      %699 = vrot.lane.b32.xlu0 %v690, 28
      %v700 = vpop.permute.xlu0 %699
      %vm701 = vcmask 228352
      %v702 = vsel %vm701, %v692, %v694
      %v703 = vsel %vm701, %v694, %v696
      %v704 = vsel %vm701, %v696, %v698
      %v705 = vsel %vm701, %v698, %v700
      %710 = vst [vmem:[#allocation2 + $0x120] sm:$0xff] %v702
      %711 = vst [vmem:[#allocation2 + $0x128] sm:$0xff] %v703
      %712 = vst [vmem:[#allocation2 + $0x130] sm:$0xff] %v704
      %713 = vst [vmem:[#allocation2 + $0x138] sm:$0xff] %v705
      %v714 = vld [vmem:[%s224] sm:$0xff]
      %v715 = vld [vmem:[%s224 + $0x8] sm:$0xff]
      %v716 = vld [vmem:[%s224 + $0x10] sm:$0xf]
      %v717 = vld [vmem:[%s224 + $0x28] sm:$0xff]
      %v718 = vld [vmem:[%s224 + $0x30] sm:$0xff]
      %v719 = vld [vmem:[%s224 + $0x38] sm:$0xf]
      %v726 = vunpack.c.l.b16 %v714
      %v727 = vunpack.c.h.b16 %v714
      %v728 = vunpack.c.l.b16 %v715
      %v729 = vunpack.c.h.b16 %v715
      %v730 = vunpack.c.l.b16 %v716
      %v731 = vunpack.c.l.b16 %v717
      %v732 = vunpack.c.h.b16 %v717
      %v733 = vunpack.c.l.b16 %v718
      %v734 = vunpack.c.h.b16 %v718
      %v735 = vunpack.c.l.b16 %v719
      %v736 = vpack.c.b16 %v731, %v726
      %v737 = vpack.c.b16 %v732, %v727
      %v738 = vpack.c.b16 %v733, %v728
      %v739 = vpack.c.b16 %v734, %v729
      %v740 = vpack.c.b16 %v735, %v730
      %741 = vrot.lane.b32.xlu0 %v736, 27
      %v742 = vpop.permute.xlu0 %741
      %743 = vrot.lane.b32.xlu0 %v737, 27
      %v744 = vpop.permute.xlu0 %743
      %745 = vrot.lane.b32.xlu0 %v738, 27
      %v746 = vpop.permute.xlu0 %745
      %747 = vrot.lane.b32.xlu0 %v739, 27
      %v748 = vpop.permute.xlu0 %747
      %749 = vrot.lane.b32.xlu0 %v740, 27
      %v750 = vpop.permute.xlu0 %749
      %vm751 = vcmask 220160
      %v752 = vsel %vm751, %v742, %v744
      %v753 = vsel %vm751, %v744, %v746
      %v754 = vsel %vm751, %v746, %v748
      %v755 = vsel %vm751, %v748, %v750
      %760 = vst [vmem:[#allocation2 + $0x140] sm:$0xff] %v752
      %761 = vst [vmem:[#allocation2 + $0x148] sm:$0xff] %v753
      %762 = vst [vmem:[#allocation2 + $0x150] sm:$0xff] %v754
      %763 = vst [vmem:[#allocation2 + $0x158] sm:$0xff] %v755
      %v764 = vld [vmem:[%s224] sm:$0xff]
      %v765 = vld [vmem:[%s224 + $0x8] sm:$0xff]
      %v766 = vld [vmem:[%s224 + $0x10] sm:$0xf]
      %v767 = vld [vmem:[%s224 + $0x28] sm:$0xff]
      %v768 = vld [vmem:[%s224 + $0x30] sm:$0xff]
      %v769 = vld [vmem:[%s224 + $0x38] sm:$0xf]
      %v776 = vunpack.c.l.b16 %v764
      %v777 = vunpack.c.h.b16 %v764
      %v778 = vunpack.c.l.b16 %v765
      %v779 = vunpack.c.h.b16 %v765
      %v780 = vunpack.c.l.b16 %v766
      %v781 = vunpack.c.l.b16 %v767
      %v782 = vunpack.c.h.b16 %v767
      %v783 = vunpack.c.l.b16 %v768
      %v784 = vunpack.c.h.b16 %v768
      %v785 = vunpack.c.l.b16 %v769
      %v786 = vpack.c.b16 %v781, %v776
      %v787 = vpack.c.b16 %v782, %v777
      %v788 = vpack.c.b16 %v783, %v778
      %v789 = vpack.c.b16 %v784, %v779
      %v790 = vpack.c.b16 %v785, %v780
      %791 = vrot.lane.b32.xlu0 %v786, 26
      %v792 = vpop.permute.xlu0 %791
      %793 = vrot.lane.b32.xlu0 %v787, 26
      %v794 = vpop.permute.xlu0 %793
      %795 = vrot.lane.b32.xlu0 %v788, 26
      %v796 = vpop.permute.xlu0 %795
      %797 = vrot.lane.b32.xlu0 %v789, 26
      %v798 = vpop.permute.xlu0 %797
      %799 = vrot.lane.b32.xlu0 %v790, 26
      %v800 = vpop.permute.xlu0 %799
      %vm801 = vcmask 211968
      %v802 = vsel %vm801, %v792, %v794
      %v803 = vsel %vm801, %v794, %v796
      %v804 = vsel %vm801, %v796, %v798
      %v805 = vsel %vm801, %v798, %v800
      %810 = vst [vmem:[#allocation2 + $0x160] sm:$0xff] %v802
      %811 = vst [vmem:[#allocation2 + $0x168] sm:$0xff] %v803
      %812 = vst [vmem:[#allocation2 + $0x170] sm:$0xff] %v804
      %813 = vst [vmem:[#allocation2 + $0x178] sm:$0xff] %v805
      %v814 = vld [vmem:[%s224] sm:$0xff]
      %v815 = vld [vmem:[%s224 + $0x8] sm:$0xff]
      %v816 = vld [vmem:[%s224 + $0x10] sm:$0xf]
      %v817 = vld [vmem:[%s224 + $0x28] sm:$0xff]
      %v818 = vld [vmem:[%s224 + $0x30] sm:$0xff]
      %v819 = vld [vmem:[%s224 + $0x38] sm:$0xf]
      %v826 = vunpack.c.l.b16 %v814
      %v827 = vunpack.c.h.b16 %v814
      %v828 = vunpack.c.l.b16 %v815
      %v829 = vunpack.c.h.b16 %v815
      %v830 = vunpack.c.l.b16 %v816
      %v831 = vunpack.c.l.b16 %v817
      %v832 = vunpack.c.h.b16 %v817
      %v833 = vunpack.c.l.b16 %v818
      %v834 = vunpack.c.h.b16 %v818
      %v835 = vunpack.c.l.b16 %v819
      %v836 = vpack.c.b16 %v831, %v826
      %v837 = vpack.c.b16 %v832, %v827
      %v838 = vpack.c.b16 %v833, %v828
      %v839 = vpack.c.b16 %v834, %v829
      %v840 = vpack.c.b16 %v835, %v830
      %841 = vrot.lane.b32.xlu0 %v836, 18
      %v842 = vpop.permute.xlu0 %841
      %843 = vrot.lane.b32.xlu0 %v837, 18
      %v844 = vpop.permute.xlu0 %843
      %845 = vrot.lane.b32.xlu0 %v838, 18
      %v846 = vpop.permute.xlu0 %845
      %847 = vrot.lane.b32.xlu0 %v839, 18
      %v848 = vpop.permute.xlu0 %847
      %849 = vrot.lane.b32.xlu0 %v840, 18
      %v850 = vpop.permute.xlu0 %849
      %vm851 = vcmask 146432
      %v852 = vsel %vm851, %v842, %v844
      %v853 = vsel %vm851, %v844, %v846
      %v854 = vsel %vm851, %v846, %v848
      %v855 = vsel %vm851, %v848, %v850
      %860 = vst [vmem:[#allocation2 + $0x180] sm:$0xff] %v852
      %861 = vst [vmem:[#allocation2 + $0x188] sm:$0xff] %v853
      %862 = vst [vmem:[#allocation2 + $0x190] sm:$0xff] %v854
      %863 = vst [vmem:[#allocation2 + $0x198] sm:$0xff] %v855
      %v864 = vld [vmem:[%s224] sm:$0xff]
      %v865 = vld [vmem:[%s224 + $0x8] sm:$0xff]
      %v866 = vld [vmem:[%s224 + $0x10] sm:$0xf]
      %v867 = vld [vmem:[%s224 + $0x28] sm:$0xff]
      %v868 = vld [vmem:[%s224 + $0x30] sm:$0xff]
      %v869 = vld [vmem:[%s224 + $0x38] sm:$0xf]
      %v876 = vunpack.c.l.b16 %v864
      %v877 = vunpack.c.h.b16 %v864
      %v878 = vunpack.c.l.b16 %v865
      %v879 = vunpack.c.h.b16 %v865
      %v880 = vunpack.c.l.b16 %v866
      %v881 = vunpack.c.l.b16 %v867
      %v882 = vunpack.c.h.b16 %v867
      %v883 = vunpack.c.l.b16 %v868
      %v884 = vunpack.c.h.b16 %v868
      %v885 = vunpack.c.l.b16 %v869
      %v886 = vpack.c.b16 %v881, %v876
      %v887 = vpack.c.b16 %v882, %v877
      %v888 = vpack.c.b16 %v883, %v878
      %v889 = vpack.c.b16 %v884, %v879
      %v890 = vpack.c.b16 %v885, %v880
      %891 = vrot.lane.b32.xlu0 %v886, 17
      %v892 = vpop.permute.xlu0 %891
      %893 = vrot.lane.b32.xlu0 %v887, 17
      %v894 = vpop.permute.xlu0 %893
      %895 = vrot.lane.b32.xlu0 %v888, 17
      %v896 = vpop.permute.xlu0 %895
      %897 = vrot.lane.b32.xlu0 %v889, 17
      %v898 = vpop.permute.xlu0 %897
      %899 = vrot.lane.b32.xlu0 %v890, 17
      %v900 = vpop.permute.xlu0 %899
      %vm901 = vcmask 138240
      %v902 = vsel %vm901, %v892, %v894
      %v903 = vsel %vm901, %v894, %v896
      %v904 = vsel %vm901, %v896, %v898
      %v905 = vsel %vm901, %v898, %v900
      %910 = vst [vmem:[#allocation2 + $0x1a0] sm:$0xff] %v902
      %911 = vst [vmem:[#allocation2 + $0x1a8] sm:$0xff] %v903
      %912 = vst [vmem:[#allocation2 + $0x1b0] sm:$0xff] %v904
      %913 = vst [vmem:[#allocation2 + $0x1b8] sm:$0xff] %v905
      %v914 = vld [vmem:[%s224] sm:$0xff]
      %v915 = vld [vmem:[%s224 + $0x8] sm:$0xff]
      %v916 = vld [vmem:[%s224 + $0x10] sm:$0xf]
      %v917 = vld [vmem:[%s224 + $0x28] sm:$0xff]
      %v918 = vld [vmem:[%s224 + $0x30] sm:$0xff]
      %v919 = vld [vmem:[%s224 + $0x38] sm:$0xf]
      %v926 = vunpack.c.l.b16 %v914
      %v927 = vunpack.c.h.b16 %v914
      %v928 = vunpack.c.l.b16 %v915
      %v929 = vunpack.c.h.b16 %v915
      %v930 = vunpack.c.l.b16 %v916
      %v931 = vunpack.c.l.b16 %v917
      %v932 = vunpack.c.h.b16 %v917
      %v933 = vunpack.c.l.b16 %v918
      %v934 = vunpack.c.h.b16 %v918
      %v935 = vunpack.c.l.b16 %v919
      %v936 = vpack.c.b16 %v931, %v926
      %v937 = vpack.c.b16 %v932, %v927
      %v938 = vpack.c.b16 %v933, %v928
      %v939 = vpack.c.b16 %v934, %v929
      %v940 = vpack.c.b16 %v935, %v930
      %941 = vrot.lane.b32.xlu0 %v936, 16
      %v942 = vpop.permute.xlu0 %941
      %943 = vrot.lane.b32.xlu0 %v937, 16
      %v944 = vpop.permute.xlu0 %943
      %945 = vrot.lane.b32.xlu0 %v938, 16
      %v946 = vpop.permute.xlu0 %945
      %947 = vrot.lane.b32.xlu0 %v939, 16
      %v948 = vpop.permute.xlu0 %947
      %949 = vrot.lane.b32.xlu0 %v940, 16
      %v950 = vpop.permute.xlu0 %949
      %vm951 = vcmask 130048
      %v952 = vsel %vm951, %v942, %v944
      %v953 = vsel %vm951, %v944, %v946
      %v954 = vsel %vm951, %v946, %v948
      %v955 = vsel %vm951, %v948, %v950
      %960 = vst [vmem:[#allocation2 + $0x1c0] sm:$0xff] %v952
      %961 = vst [vmem:[#allocation2 + $0x1c8] sm:$0xff] %v953
      %962 = vst [vmem:[#allocation2 + $0x1d0] sm:$0xff] %v954
      %963 = vst [vmem:[#allocation2 + $0x1d8] sm:$0xff] %v955
      %v964 = vld [vmem:[%s224] sm:$0xff]
      %v965 = vld [vmem:[%s224 + $0x8] sm:$0xff]
      %v966 = vld [vmem:[%s224 + $0x10] sm:$0xf]
      %v967 = vld [vmem:[%s224 + $0x28] sm:$0xff]
      %v968 = vld [vmem:[%s224 + $0x30] sm:$0xff]
      %v969 = vld [vmem:[%s224 + $0x38] sm:$0xf]
      %v976 = vunpack.c.l.b16 %v964
      %v977 = vunpack.c.h.b16 %v964
      %v978 = vunpack.c.l.b16 %v965
      %v979 = vunpack.c.h.b16 %v965
      %v980 = vunpack.c.l.b16 %v966
      %v981 = vunpack.c.l.b16 %v967
      %v982 = vunpack.c.h.b16 %v967
      %v983 = vunpack.c.l.b16 %v968
      %v984 = vunpack.c.h.b16 %v968
      %v985 = vunpack.c.l.b16 %v969
      %v986 = vpack.c.b16 %v981, %v976
      %v987 = vpack.c.b16 %v982, %v977
      %v988 = vpack.c.b16 %v983, %v978
      %v989 = vpack.c.b16 %v984, %v979
      %v990 = vpack.c.b16 %v985, %v980
      %991 = vrot.lane.b32.xlu0 %v986, 8
      %v992 = vpop.permute.xlu0 %991
      %993 = vrot.lane.b32.xlu0 %v987, 8
      %v994 = vpop.permute.xlu0 %993
      %995 = vrot.lane.b32.xlu0 %v988, 8
      %v996 = vpop.permute.xlu0 %995
      %997 = vrot.lane.b32.xlu0 %v989, 8
      %v998 = vpop.permute.xlu0 %997
      %999 = vrot.lane.b32.xlu0 %v990, 8
      %v1000 = vpop.permute.xlu0 %999
      %vm1001 = vcmask 64512
      %v1002 = vsel %vm1001, %v992, %v994
      %v1003 = vsel %vm1001, %v994, %v996
      %v1004 = vsel %vm1001, %v996, %v998
      %v1005 = vsel %vm1001, %v998, %v1000
      %1010 = vst [vmem:[#allocation2 + $0x1e0] sm:$0xff] %v1002
      %1011 = vst [vmem:[#allocation2 + $0x1e8] sm:$0xff] %v1003
      %1012 = vst [vmem:[#allocation2 + $0x1f0] sm:$0xff] %v1004
      %1013 = vst [vmem:[#allocation2 + $0x1f8] sm:$0xff] %v1005
      %v1014 = vld [vmem:[%s224] sm:$0xff]
      %v1015 = vld [vmem:[%s224 + $0x8] sm:$0xff]
      %v1016 = vld [vmem:[%s224 + $0x10] sm:$0xf]
      %v1017 = vld [vmem:[%s224 + $0x28] sm:$0xff]
      %v1018 = vld [vmem:[%s224 + $0x30] sm:$0xff]
      %v1019 = vld [vmem:[%s224 + $0x38] sm:$0xf]
      %v1026 = vunpack.c.l.b16 %v1014
      %v1027 = vunpack.c.h.b16 %v1014
      %v1028 = vunpack.c.l.b16 %v1015
      %v1029 = vunpack.c.h.b16 %v1015
      %v1030 = vunpack.c.l.b16 %v1016
      %v1031 = vunpack.c.l.b16 %v1017
      %v1032 = vunpack.c.h.b16 %v1017
      %v1033 = vunpack.c.l.b16 %v1018
      %v1034 = vunpack.c.h.b16 %v1018
      %v1035 = vunpack.c.l.b16 %v1019
      %v1036 = vpack.c.b16 %v1031, %v1026
      %v1037 = vpack.c.b16 %v1032, %v1027
      %v1038 = vpack.c.b16 %v1033, %v1028
      %v1039 = vpack.c.b16 %v1034, %v1029
      %v1040 = vpack.c.b16 %v1035, %v1030
      %1041 = vrot.lane.b32.xlu0 %v1036, 7
      %v1042 = vpop.permute.xlu0 %1041
      %1043 = vrot.lane.b32.xlu0 %v1037, 7
      %v1044 = vpop.permute.xlu0 %1043
      %1045 = vrot.lane.b32.xlu0 %v1038, 7
      %v1046 = vpop.permute.xlu0 %1045
      %1047 = vrot.lane.b32.xlu0 %v1039, 7
      %v1048 = vpop.permute.xlu0 %1047
      %1049 = vrot.lane.b32.xlu0 %v1040, 7
      %v1050 = vpop.permute.xlu0 %1049
      %vm1051 = vcmask 56320
      %v1052 = vsel %vm1051, %v1042, %v1044
      %v1053 = vsel %vm1051, %v1044, %v1046
      %v1054 = vsel %vm1051, %v1046, %v1048
      %v1055 = vsel %vm1051, %v1048, %v1050
      %1060 = vst [vmem:[#allocation2 + $0x200] sm:$0xff] %v1052
      %1061 = vst [vmem:[#allocation2 + $0x208] sm:$0xff] %v1053
      %1062 = vst [vmem:[#allocation2 + $0x210] sm:$0xff] %v1054
      %1063 = vst [vmem:[#allocation2 + $0x218] sm:$0xff] %v1055
      %v1064 = vld [vmem:[%s224] sm:$0xff]
      %v1065 = vld [vmem:[%s224 + $0x8] sm:$0xff]
      %v1066 = vld [vmem:[%s224 + $0x10] sm:$0xf]
      %v1067 = vld [vmem:[%s224 + $0x28] sm:$0xff]
      %v1068 = vld [vmem:[%s224 + $0x30] sm:$0xff]
      %v1069 = vld [vmem:[%s224 + $0x38] sm:$0xf]
      %v1076 = vunpack.c.l.b16 %v1064
      %v1077 = vunpack.c.h.b16 %v1064
      %v1078 = vunpack.c.l.b16 %v1065
      %v1079 = vunpack.c.h.b16 %v1065
      %v1080 = vunpack.c.l.b16 %v1066
      %v1081 = vunpack.c.l.b16 %v1067
      %v1082 = vunpack.c.h.b16 %v1067
      %v1083 = vunpack.c.l.b16 %v1068
      %v1084 = vunpack.c.h.b16 %v1068
      %v1085 = vunpack.c.l.b16 %v1069
      %v1086 = vpack.c.b16 %v1081, %v1076
      %v1087 = vpack.c.b16 %v1082, %v1077
      %v1088 = vpack.c.b16 %v1083, %v1078
      %v1089 = vpack.c.b16 %v1084, %v1079
      %v1090 = vpack.c.b16 %v1085, %v1080
      %1091 = vrot.lane.b32.xlu0 %v1086, 6
      %v1092 = vpop.permute.xlu0 %1091
      %1093 = vrot.lane.b32.xlu0 %v1087, 6
      %v1094 = vpop.permute.xlu0 %1093
      %1095 = vrot.lane.b32.xlu0 %v1088, 6
      %v1096 = vpop.permute.xlu0 %1095
      %1097 = vrot.lane.b32.xlu0 %v1089, 6
      %v1098 = vpop.permute.xlu0 %1097
      %1099 = vrot.lane.b32.xlu0 %v1090, 6
      %v1100 = vpop.permute.xlu0 %1099
      %vm1101 = vcmask 48128
      %v1102 = vsel %vm1101, %v1092, %v1094
      %v1103 = vsel %vm1101, %v1094, %v1096
      %v1104 = vsel %vm1101, %v1096, %v1098
      %v1105 = vsel %vm1101, %v1098, %v1100
      %1110 = vst [vmem:[#allocation2 + $0x220] sm:$0xff] %v1102
      %1111 = vst [vmem:[#allocation2 + $0x228] sm:$0xff] %v1103
      %1112 = vst [vmem:[#allocation2 + $0x230] sm:$0xff] %v1104
      %1113 = vst [vmem:[#allocation2 + $0x238] sm:$0xff] %v1105
      %v1114 = vld [vmem:[%s224 + $0x4] sm:$0xff]
      %v1115 = vld [vmem:[%s224 + $0xc] sm:$0xff]
      %v1116 = vld [vmem:[%s224 + $0x14] sm:$0xf]
      %v1117 = vld [vmem:[%s224 + $0x2c] sm:$0xff]
      %v1118 = vld [vmem:[%s224 + $0x34] sm:$0xff]
      %v1119 = vld [vmem:[%s224 + $0x3c] sm:$0xf]
      %v1126 = vunpack.c.l.b16 %v1114
      %v1127 = vunpack.c.h.b16 %v1114
      %v1128 = vunpack.c.l.b16 %v1115
      %v1129 = vunpack.c.h.b16 %v1115
      %v1130 = vunpack.c.l.b16 %v1116
      %v1131 = vunpack.c.l.b16 %v1117
      %v1132 = vunpack.c.h.b16 %v1117
      %v1133 = vunpack.c.l.b16 %v1118
      %v1134 = vunpack.c.h.b16 %v1118
      %v1135 = vunpack.c.l.b16 %v1119
      %v1136 = vpack.c.b16 %v1131, %v1126
      %v1137 = vpack.c.b16 %v1132, %v1127
      %v1138 = vpack.c.b16 %v1133, %v1128
      %v1139 = vpack.c.b16 %v1134, %v1129
      %v1140 = vpack.c.b16 %v1135, %v1130
      %1141 = vrot.lane.b32.xlu0 %v1136, 56
      %v1142 = vpop.permute.xlu0 %1141
      %1143 = vrot.lane.b32.xlu0 %v1137, 56
      %v1144 = vpop.permute.xlu0 %1143
      %1145 = vrot.lane.b32.xlu0 %v1138, 56
      %v1146 = vpop.permute.xlu0 %1145
      %1147 = vrot.lane.b32.xlu0 %v1139, 56
      %v1148 = vpop.permute.xlu0 %1147
      %1149 = vrot.lane.b32.xlu0 %v1140, 56
      %v1150 = vpop.permute.xlu0 %1149
      %vm1151 = vcmask 457728
      %v1152 = vsel %vm1151, %v1142, %v1144
      %v1153 = vsel %vm1151, %v1144, %v1146
      %v1154 = vsel %vm1151, %v1146, %v1148
      %v1155 = vsel %vm1151, %v1148, %v1150
      %1160 = vst [vmem:[#allocation2 + $0x240] sm:$0xff] %v1152
      %1161 = vst [vmem:[#allocation2 + $0x248] sm:$0xff] %v1153
      %1162 = vst [vmem:[#allocation2 + $0x250] sm:$0xff] %v1154
      %1163 = vst [vmem:[#allocation2 + $0x258] sm:$0xff] %v1155
      %v1164 = vld [vmem:[%s224 + $0x4] sm:$0xff]
      %v1165 = vld [vmem:[%s224 + $0xc] sm:$0xff]
      %v1166 = vld [vmem:[%s224 + $0x14] sm:$0xf]
      %v1167 = vld [vmem:[%s224 + $0x2c] sm:$0xff]
      %v1168 = vld [vmem:[%s224 + $0x34] sm:$0xff]
      %v1169 = vld [vmem:[%s224 + $0x3c] sm:$0xf]
      %v1176 = vunpack.c.l.b16 %v1164
      %v1177 = vunpack.c.h.b16 %v1164
      %v1178 = vunpack.c.l.b16 %v1165
      %v1179 = vunpack.c.h.b16 %v1165
      %v1180 = vunpack.c.l.b16 %v1166
      %v1181 = vunpack.c.l.b16 %v1167
      %v1182 = vunpack.c.h.b16 %v1167
      %v1183 = vunpack.c.l.b16 %v1168
      %v1184 = vunpack.c.h.b16 %v1168
      %v1185 = vunpack.c.l.b16 %v1169
      %v1186 = vpack.c.b16 %v1181, %v1176
      %v1187 = vpack.c.b16 %v1182, %v1177
      %v1188 = vpack.c.b16 %v1183, %v1178
      %v1189 = vpack.c.b16 %v1184, %v1179
      %v1190 = vpack.c.b16 %v1185, %v1180
      %1191 = vrot.lane.b32.xlu0 %v1186, 55
      %v1192 = vpop.permute.xlu0 %1191
      %1193 = vrot.lane.b32.xlu0 %v1187, 55
      %v1194 = vpop.permute.xlu0 %1193
      %1195 = vrot.lane.b32.xlu0 %v1188, 55
      %v1196 = vpop.permute.xlu0 %1195
      %1197 = vrot.lane.b32.xlu0 %v1189, 55
      %v1198 = vpop.permute.xlu0 %1197
      %1199 = vrot.lane.b32.xlu0 %v1190, 55
      %v1200 = vpop.permute.xlu0 %1199
      %vm1201 = vcmask 449536
      %v1202 = vsel %vm1201, %v1192, %v1194
      %v1203 = vsel %vm1201, %v1194, %v1196
      %v1204 = vsel %vm1201, %v1196, %v1198
      %v1205 = vsel %vm1201, %v1198, %v1200
      %1210 = vst [vmem:[#allocation2 + $0x260] sm:$0xff] %v1202
      %1211 = vst [vmem:[#allocation2 + $0x268] sm:$0xff] %v1203
      %1212 = vst [vmem:[#allocation2 + $0x270] sm:$0xff] %v1204
      %1213 = vst [vmem:[#allocation2 + $0x278] sm:$0xff] %v1205
      %v1214 = vld [vmem:[%s224 + $0x4] sm:$0xff]
      %v1215 = vld [vmem:[%s224 + $0xc] sm:$0xff]
      %v1216 = vld [vmem:[%s224 + $0x14] sm:$0xf]
      %v1217 = vld [vmem:[%s224 + $0x2c] sm:$0xff]
      %v1218 = vld [vmem:[%s224 + $0x34] sm:$0xff]
      %v1219 = vld [vmem:[%s224 + $0x3c] sm:$0xf]
      %v1226 = vunpack.c.l.b16 %v1214
      %v1227 = vunpack.c.h.b16 %v1214
      %v1228 = vunpack.c.l.b16 %v1215
      %v1229 = vunpack.c.h.b16 %v1215
      %v1230 = vunpack.c.l.b16 %v1216
      %v1231 = vunpack.c.l.b16 %v1217
      %v1232 = vunpack.c.h.b16 %v1217
      %v1233 = vunpack.c.l.b16 %v1218
      %v1234 = vunpack.c.h.b16 %v1218
      %v1235 = vunpack.c.l.b16 %v1219
      %v1236 = vpack.c.b16 %v1231, %v1226
      %v1237 = vpack.c.b16 %v1232, %v1227
      %v1238 = vpack.c.b16 %v1233, %v1228
      %v1239 = vpack.c.b16 %v1234, %v1229
      %v1240 = vpack.c.b16 %v1235, %v1230
      %1241 = vrot.lane.b32.xlu0 %v1236, 54
      %v1242 = vpop.permute.xlu0 %1241
      %1243 = vrot.lane.b32.xlu0 %v1237, 54
      %v1244 = vpop.permute.xlu0 %1243
      %1245 = vrot.lane.b32.xlu0 %v1238, 54
      %v1246 = vpop.permute.xlu0 %1245
      %1247 = vrot.lane.b32.xlu0 %v1239, 54
      %v1248 = vpop.permute.xlu0 %1247
      %1249 = vrot.lane.b32.xlu0 %v1240, 54
      %v1250 = vpop.permute.xlu0 %1249
      %vm1251 = vcmask 441344
      %v1252 = vsel %vm1251, %v1242, %v1244
      %v1253 = vsel %vm1251, %v1244, %v1246
      %v1254 = vsel %vm1251, %v1246, %v1248
      %v1255 = vsel %vm1251, %v1248, %v1250
      %1260 = vst [vmem:[#allocation2 + $0x280] sm:$0xff] %v1252
      %1261 = vst [vmem:[#allocation2 + $0x288] sm:$0xff] %v1253
      %1262 = vst [vmem:[#allocation2 + $0x290] sm:$0xff] %v1254
      %1263 = vst [vmem:[#allocation2 + $0x298] sm:$0xff] %v1255
      %v1264 = vld [vmem:[%s224 + $0x4] sm:$0xff]
      %v1265 = vld [vmem:[%s224 + $0xc] sm:$0xff]
      %v1266 = vld [vmem:[%s224 + $0x14] sm:$0xf]
      %v1267 = vld [vmem:[%s224 + $0x2c] sm:$0xff]
      %v1268 = vld [vmem:[%s224 + $0x34] sm:$0xff]
      %v1269 = vld [vmem:[%s224 + $0x3c] sm:$0xf]
      %v1276 = vunpack.c.l.b16 %v1264
      %v1277 = vunpack.c.h.b16 %v1264
      %v1278 = vunpack.c.l.b16 %v1265
      %v1279 = vunpack.c.h.b16 %v1265
      %v1280 = vunpack.c.l.b16 %v1266
      %v1281 = vunpack.c.l.b16 %v1267
      %v1282 = vunpack.c.h.b16 %v1267
      %v1283 = vunpack.c.l.b16 %v1268
      %v1284 = vunpack.c.h.b16 %v1268
      %v1285 = vunpack.c.l.b16 %v1269
      %v1286 = vpack.c.b16 %v1281, %v1276
      %v1287 = vpack.c.b16 %v1282, %v1277
      %v1288 = vpack.c.b16 %v1283, %v1278
      %v1289 = vpack.c.b16 %v1284, %v1279
      %v1290 = vpack.c.b16 %v1285, %v1280
      %1291 = vrot.lane.b32.xlu0 %v1286, 46
      %v1292 = vpop.permute.xlu0 %1291
      %1293 = vrot.lane.b32.xlu0 %v1287, 46
      %v1294 = vpop.permute.xlu0 %1293
      %1295 = vrot.lane.b32.xlu0 %v1288, 46
      %v1296 = vpop.permute.xlu0 %1295
      %1297 = vrot.lane.b32.xlu0 %v1289, 46
      %v1298 = vpop.permute.xlu0 %1297
      %1299 = vrot.lane.b32.xlu0 %v1290, 46
      %v1300 = vpop.permute.xlu0 %1299
      %vm1301 = vcmask 375808
      %v1302 = vsel %vm1301, %v1292, %v1294
      %v1303 = vsel %vm1301, %v1294, %v1296
      %v1304 = vsel %vm1301, %v1296, %v1298
      %v1305 = vsel %vm1301, %v1298, %v1300
      %1310 = vst [vmem:[#allocation2 + $0x2a0] sm:$0xff] %v1302
      %1311 = vst [vmem:[#allocation2 + $0x2a8] sm:$0xff] %v1303
      %1312 = vst [vmem:[#allocation2 + $0x2b0] sm:$0xff] %v1304
      %1313 = vst [vmem:[#allocation2 + $0x2b8] sm:$0xff] %v1305
      %v1314 = vld [vmem:[%s224 + $0x4] sm:$0xff]
      %v1315 = vld [vmem:[%s224 + $0xc] sm:$0xff]
      %v1316 = vld [vmem:[%s224 + $0x14] sm:$0xf]
      %v1317 = vld [vmem:[%s224 + $0x2c] sm:$0xff]
      %v1318 = vld [vmem:[%s224 + $0x34] sm:$0xff]
      %v1319 = vld [vmem:[%s224 + $0x3c] sm:$0xf]
      %v1326 = vunpack.c.l.b16 %v1314
      %v1327 = vunpack.c.h.b16 %v1314
      %v1328 = vunpack.c.l.b16 %v1315
      %v1329 = vunpack.c.h.b16 %v1315
      %v1330 = vunpack.c.l.b16 %v1316
      %v1331 = vunpack.c.l.b16 %v1317
      %v1332 = vunpack.c.h.b16 %v1317
      %v1333 = vunpack.c.l.b16 %v1318
      %v1334 = vunpack.c.h.b16 %v1318
      %v1335 = vunpack.c.l.b16 %v1319
      %v1336 = vpack.c.b16 %v1331, %v1326
      %v1337 = vpack.c.b16 %v1332, %v1327
      %v1338 = vpack.c.b16 %v1333, %v1328
      %v1339 = vpack.c.b16 %v1334, %v1329
      %v1340 = vpack.c.b16 %v1335, %v1330
      %1341 = vrot.lane.b32.xlu0 %v1336, 45
      %v1342 = vpop.permute.xlu0 %1341
      %1343 = vrot.lane.b32.xlu0 %v1337, 45
      %v1344 = vpop.permute.xlu0 %1343
      %1345 = vrot.lane.b32.xlu0 %v1338, 45
      %v1346 = vpop.permute.xlu0 %1345
      %1347 = vrot.lane.b32.xlu0 %v1339, 45
      %v1348 = vpop.permute.xlu0 %1347
      %1349 = vrot.lane.b32.xlu0 %v1340, 45
      %v1350 = vpop.permute.xlu0 %1349
      %vm1351 = vcmask 367616
      %v1352 = vsel %vm1351, %v1342, %v1344
      %v1353 = vsel %vm1351, %v1344, %v1346
      %v1354 = vsel %vm1351, %v1346, %v1348
      %v1355 = vsel %vm1351, %v1348, %v1350
      %1360 = vst [vmem:[#allocation2 + $0x2c0] sm:$0xff] %v1352
      %1361 = vst [vmem:[#allocation2 + $0x2c8] sm:$0xff] %v1353
      %1362 = vst [vmem:[#allocation2 + $0x2d0] sm:$0xff] %v1354
      %1363 = vst [vmem:[#allocation2 + $0x2d8] sm:$0xff] %v1355
      %v1364 = vld [vmem:[%s224 + $0x4] sm:$0xff]
      %v1365 = vld [vmem:[%s224 + $0xc] sm:$0xff]
      %v1366 = vld [vmem:[%s224 + $0x14] sm:$0xf]
      %v1367 = vld [vmem:[%s224 + $0x2c] sm:$0xff]
      %v1368 = vld [vmem:[%s224 + $0x34] sm:$0xff]
      %v1369 = vld [vmem:[%s224 + $0x3c] sm:$0xf]
      %v1376 = vunpack.c.l.b16 %v1364
      %v1377 = vunpack.c.h.b16 %v1364
      %v1378 = vunpack.c.l.b16 %v1365
      %v1379 = vunpack.c.h.b16 %v1365
      %v1380 = vunpack.c.l.b16 %v1366
      %v1381 = vunpack.c.l.b16 %v1367
      %v1382 = vunpack.c.h.b16 %v1367
      %v1383 = vunpack.c.l.b16 %v1368
      %v1384 = vunpack.c.h.b16 %v1368
      %v1385 = vunpack.c.l.b16 %v1369
      %v1386 = vpack.c.b16 %v1381, %v1376
      %v1387 = vpack.c.b16 %v1382, %v1377
      %v1388 = vpack.c.b16 %v1383, %v1378
      %v1389 = vpack.c.b16 %v1384, %v1379
      %v1390 = vpack.c.b16 %v1385, %v1380
      %1391 = vrot.lane.b32.xlu0 %v1386, 44
      %v1392 = vpop.permute.xlu0 %1391
      %1393 = vrot.lane.b32.xlu0 %v1387, 44
      %v1394 = vpop.permute.xlu0 %1393
      %1395 = vrot.lane.b32.xlu0 %v1388, 44
      %v1396 = vpop.permute.xlu0 %1395
      %1397 = vrot.lane.b32.xlu0 %v1389, 44
      %v1398 = vpop.permute.xlu0 %1397
      %1399 = vrot.lane.b32.xlu0 %v1390, 44
      %v1400 = vpop.permute.xlu0 %1399
      %vm1401 = vcmask 359424
      %v1402 = vsel %vm1401, %v1392, %v1394
      %v1403 = vsel %vm1401, %v1394, %v1396
      %v1404 = vsel %vm1401, %v1396, %v1398
      %v1405 = vsel %vm1401, %v1398, %v1400
      %1410 = vst [vmem:[#allocation2 + $0x2e0] sm:$0xff] %v1402
      %1411 = vst [vmem:[#allocation2 + $0x2e8] sm:$0xff] %v1403
      %1412 = vst [vmem:[#allocation2 + $0x2f0] sm:$0xff] %v1404
      %1413 = vst [vmem:[#allocation2 + $0x2f8] sm:$0xff] %v1405
      %v1414 = vld [vmem:[%s224 + $0x4] sm:$0xff]
      %v1415 = vld [vmem:[%s224 + $0xc] sm:$0xff]
      %v1416 = vld [vmem:[%s224 + $0x14] sm:$0xf]
      %v1417 = vld [vmem:[%s224 + $0x2c] sm:$0xff]
      %v1418 = vld [vmem:[%s224 + $0x34] sm:$0xff]
      %v1419 = vld [vmem:[%s224 + $0x3c] sm:$0xf]
      %v1426 = vunpack.c.l.b16 %v1414
      %v1427 = vunpack.c.h.b16 %v1414
      %v1428 = vunpack.c.l.b16 %v1415
      %v1429 = vunpack.c.h.b16 %v1415
      %v1430 = vunpack.c.l.b16 %v1416
      %v1431 = vunpack.c.l.b16 %v1417
      %v1432 = vunpack.c.h.b16 %v1417
      %v1433 = vunpack.c.l.b16 %v1418
      %v1434 = vunpack.c.h.b16 %v1418
      %v1435 = vunpack.c.l.b16 %v1419
      %v1436 = vpack.c.b16 %v1431, %v1426
      %v1437 = vpack.c.b16 %v1432, %v1427
      %v1438 = vpack.c.b16 %v1433, %v1428
      %v1439 = vpack.c.b16 %v1434, %v1429
      %v1440 = vpack.c.b16 %v1435, %v1430
      %1441 = vrot.lane.b32.xlu0 %v1436, 36
      %v1442 = vpop.permute.xlu0 %1441
      %1443 = vrot.lane.b32.xlu0 %v1437, 36
      %v1444 = vpop.permute.xlu0 %1443
      %1445 = vrot.lane.b32.xlu0 %v1438, 36
      %v1446 = vpop.permute.xlu0 %1445
      %1447 = vrot.lane.b32.xlu0 %v1439, 36
      %v1448 = vpop.permute.xlu0 %1447
      %1449 = vrot.lane.b32.xlu0 %v1440, 36
      %v1450 = vpop.permute.xlu0 %1449
      %vm1451 = vcmask 293888
      %v1452 = vsel %vm1451, %v1442, %v1444
      %v1453 = vsel %vm1451, %v1444, %v1446
      %v1454 = vsel %vm1451, %v1446, %v1448
      %v1455 = vsel %vm1451, %v1448, %v1450
      %1460 = vst [vmem:[#allocation2 + $0x300] sm:$0xff] %v1452
      %1461 = vst [vmem:[#allocation2 + $0x308] sm:$0xff] %v1453
      %1462 = vst [vmem:[#allocation2 + $0x310] sm:$0xff] %v1454
      %1463 = vst [vmem:[#allocation2 + $0x318] sm:$0xff] %v1455
      %v1464 = vld [vmem:[%s224 + $0x4] sm:$0xff]
      %v1465 = vld [vmem:[%s224 + $0xc] sm:$0xff]
      %v1466 = vld [vmem:[%s224 + $0x14] sm:$0xf]
      %v1467 = vld [vmem:[%s224 + $0x2c] sm:$0xff]
      %v1468 = vld [vmem:[%s224 + $0x34] sm:$0xff]
      %v1469 = vld [vmem:[%s224 + $0x3c] sm:$0xf]
      %v1476 = vunpack.c.l.b16 %v1464
      %v1477 = vunpack.c.h.b16 %v1464
      %v1478 = vunpack.c.l.b16 %v1465
      %v1479 = vunpack.c.h.b16 %v1465
      %v1480 = vunpack.c.l.b16 %v1466
      %v1481 = vunpack.c.l.b16 %v1467
      %v1482 = vunpack.c.h.b16 %v1467
      %v1483 = vunpack.c.l.b16 %v1468
      %v1484 = vunpack.c.h.b16 %v1468
      %v1485 = vunpack.c.l.b16 %v1469
      %v1486 = vpack.c.b16 %v1481, %v1476
      %v1487 = vpack.c.b16 %v1482, %v1477
      %v1488 = vpack.c.b16 %v1483, %v1478
      %v1489 = vpack.c.b16 %v1484, %v1479
      %v1490 = vpack.c.b16 %v1485, %v1480
      %1491 = vrot.lane.b32.xlu0 %v1486, 35
      %v1492 = vpop.permute.xlu0 %1491
      %1493 = vrot.lane.b32.xlu0 %v1487, 35
      %v1494 = vpop.permute.xlu0 %1493
      %1495 = vrot.lane.b32.xlu0 %v1488, 35
      %v1496 = vpop.permute.xlu0 %1495
      %1497 = vrot.lane.b32.xlu0 %v1489, 35
      %v1498 = vpop.permute.xlu0 %1497
      %1499 = vrot.lane.b32.xlu0 %v1490, 35
      %v1500 = vpop.permute.xlu0 %1499
      %vm1501 = vcmask 285696
      %v1502 = vsel %vm1501, %v1492, %v1494
      %v1503 = vsel %vm1501, %v1494, %v1496
      %v1504 = vsel %vm1501, %v1496, %v1498
      %v1505 = vsel %vm1501, %v1498, %v1500
      %1510 = vst [vmem:[#allocation2 + $0x320] sm:$0xff] %v1502
      %1511 = vst [vmem:[#allocation2 + $0x328] sm:$0xff] %v1503
      %1512 = vst [vmem:[#allocation2 + $0x330] sm:$0xff] %v1504
      %1513 = vst [vmem:[#allocation2 + $0x338] sm:$0xff] %v1505
      %v1514 = vld [vmem:[%s224 + $0x4] sm:$0xff]
      %v1515 = vld [vmem:[%s224 + $0xc] sm:$0xff]
      %v1516 = vld [vmem:[%s224 + $0x14] sm:$0xf]
      %v1517 = vld [vmem:[%s224 + $0x2c] sm:$0xff]
      %v1518 = vld [vmem:[%s224 + $0x34] sm:$0xff]
      %v1519 = vld [vmem:[%s224 + $0x3c] sm:$0xf]
      %v1526 = vunpack.c.l.b16 %v1514
      %v1527 = vunpack.c.h.b16 %v1514
      %v1528 = vunpack.c.l.b16 %v1515
      %v1529 = vunpack.c.h.b16 %v1515
      %v1530 = vunpack.c.l.b16 %v1516
      %v1531 = vunpack.c.l.b16 %v1517
      %v1532 = vunpack.c.h.b16 %v1517
      %v1533 = vunpack.c.l.b16 %v1518
      %v1534 = vunpack.c.h.b16 %v1518
      %v1535 = vunpack.c.l.b16 %v1519
      %v1536 = vpack.c.b16 %v1531, %v1526
      %v1537 = vpack.c.b16 %v1532, %v1527
      %v1538 = vpack.c.b16 %v1533, %v1528
      %v1539 = vpack.c.b16 %v1534, %v1529
      %v1540 = vpack.c.b16 %v1535, %v1530
      %1541 = vrot.lane.b32.xlu0 %v1536, 34
      %v1542 = vpop.permute.xlu0 %1541
      %1543 = vrot.lane.b32.xlu0 %v1537, 34
      %v1544 = vpop.permute.xlu0 %1543
      %1545 = vrot.lane.b32.xlu0 %v1538, 34
      %v1546 = vpop.permute.xlu0 %1545
      %1547 = vrot.lane.b32.xlu0 %v1539, 34
      %v1548 = vpop.permute.xlu0 %1547
      %1549 = vrot.lane.b32.xlu0 %v1540, 34
      %v1550 = vpop.permute.xlu0 %1549
      %vm1551 = vcmask 277504
      %v1552 = vsel %vm1551, %v1542, %v1544
      %v1553 = vsel %vm1551, %v1544, %v1546
      %v1554 = vsel %vm1551, %v1546, %v1548
      %v1555 = vsel %vm1551, %v1548, %v1550
      %1560 = vst [vmem:[#allocation2 + $0x340] sm:$0xff] %v1552
      %1561 = vst [vmem:[#allocation2 + $0x348] sm:$0xff] %v1553
      %1562 = vst [vmem:[#allocation2 + $0x350] sm:$0xff] %v1554
      %1563 = vst [vmem:[#allocation2 + $0x358] sm:$0xff] %v1555
      %v1564 = vld [vmem:[%s1] sm:$0xff]
      %v1565 = vld [vmem:[%s1 + $0x8] sm:$0xff]
      %v1566 = vld [vmem:[%s1 + $0x10] sm:$0xff]
      %v1567 = vld [vmem:[%s1 + $0x18] sm:$0xff]
      %v1568 = vld [vmem:[%s1 + $0x20] sm:$0xff]
      %v1569 = vld [vmem:[%s1 + $0x28] sm:$0xff]
      %v1570 = vld [vmem:[%s1 + $0x30] sm:$0xff]
      %v1571 = vld [vmem:[%s1 + $0x38] sm:$0xff]
      %v1572 = vld [vmem:[%s1 + $0x40] sm:$0xff]
      %v1573 = vld [vmem:[%s1 + $0x48] sm:$0xff]
      %v1574 = vld [vmem:[%s1 + $0x50] sm:$0xff]
      %v1575 = vld [vmem:[%s1 + $0x58] sm:$0xff]
      %v1576 = vld [vmem:[%s1 + $0x60] sm:$0xff]
      %v1577 = vld [vmem:[%s1 + $0x68] sm:$0xff]
      %v1578 = vld [vmem:[%s1 + $0x70] sm:$0xff]
      %v1579 = vld [vmem:[%s1 + $0x78] sm:$0xff]
      %v1580 = vld [vmem:[#allocation2] sm:$0xff]
      %v1581 = vld [vmem:[#allocation2 + $0x8] sm:$0xff]
      %v1582 = vld [vmem:[#allocation2 + $0x10] sm:$0xff]
      %v1583 = vld [vmem:[#allocation2 + $0x18] sm:$0xff]
      %v1584 = vld [vmem:[#allocation2 + $0x20] sm:$0xff]
      %v1585 = vld [vmem:[#allocation2 + $0x28] sm:$0xff]
      %v1586 = vld [vmem:[#allocation2 + $0x30] sm:$0xff]
      %v1587 = vld [vmem:[#allocation2 + $0x38] sm:$0xff]
      %v1588 = vld [vmem:[#allocation2 + $0x40] sm:$0xff]
      %v1589 = vld [vmem:[#allocation2 + $0x48] sm:$0xff]
      %v1590 = vld [vmem:[#allocation2 + $0x50] sm:$0xff]
      %v1591 = vld [vmem:[#allocation2 + $0x58] sm:$0xff]
      %v1592 = vld [vmem:[#allocation2 + $0x60] sm:$0xff]
      %v1593 = vld [vmem:[#allocation2 + $0x68] sm:$0xff]
      %v1594 = vld [vmem:[#allocation2 + $0x70] sm:$0xff]
      %v1595 = vld [vmem:[#allocation2 + $0x78] sm:$0xff]
      %v1596 = vld [vmem:[#allocation2 + $0x80] sm:$0xff]
      %v1597 = vld [vmem:[#allocation2 + $0x88] sm:$0xff]
      %v1598 = vld [vmem:[#allocation2 + $0x90] sm:$0xff]
      %v1599 = vld [vmem:[#allocation2 + $0x98] sm:$0xff]
      %v1600 = vld [vmem:[#allocation2 + $0xa0] sm:$0xff]
      %v1601 = vld [vmem:[#allocation2 + $0xa8] sm:$0xff]
      %v1602 = vld [vmem:[#allocation2 + $0xb0] sm:$0xff]
      %v1603 = vld [vmem:[#allocation2 + $0xb8] sm:$0xff]
      %v1604 = vld [vmem:[#allocation2 + $0xc0] sm:$0xff]
      %v1605 = vld [vmem:[#allocation2 + $0xc8] sm:$0xff]
      %v1606 = vld [vmem:[#allocation2 + $0xd0] sm:$0xff]
      %v1607 = vld [vmem:[#allocation2 + $0xd8] sm:$0xff]
      %v1608 = vld [vmem:[#allocation2 + $0xe0] sm:$0xff]
      %v1609 = vld [vmem:[#allocation2 + $0xe8] sm:$0xff]
      %v1610 = vld [vmem:[#allocation2 + $0xf0] sm:$0xff]
      %v1611 = vld [vmem:[#allocation2 + $0xf8] sm:$0xff]
      %v1612 = vld [vmem:[#allocation2 + $0x100] sm:$0xff]
      %v1613 = vld [vmem:[#allocation2 + $0x108] sm:$0xff]
      %v1614 = vld [vmem:[#allocation2 + $0x110] sm:$0xff]
      %v1615 = vld [vmem:[#allocation2 + $0x118] sm:$0xff]
      %v1616 = vld [vmem:[#allocation2 + $0x120] sm:$0xff]
      %v1617 = vld [vmem:[#allocation2 + $0x128] sm:$0xff]
      %v1618 = vld [vmem:[#allocation2 + $0x130] sm:$0xff]
      %v1619 = vld [vmem:[#allocation2 + $0x138] sm:$0xff]
      %v1620 = vld [vmem:[#allocation2 + $0x140] sm:$0xff]
      %v1621 = vld [vmem:[#allocation2 + $0x148] sm:$0xff]
      %v1622 = vld [vmem:[#allocation2 + $0x150] sm:$0xff]
      %v1623 = vld [vmem:[#allocation2 + $0x158] sm:$0xff]
      %v1624 = vld [vmem:[#allocation2 + $0x160] sm:$0xff]
      %v1625 = vld [vmem:[#allocation2 + $0x168] sm:$0xff]
      %v1626 = vld [vmem:[#allocation2 + $0x170] sm:$0xff]
      %v1627 = vld [vmem:[#allocation2 + $0x178] sm:$0xff]
      %v1628 = vld [vmem:[#allocation2 + $0x180] sm:$0xff]
      %v1629 = vld [vmem:[#allocation2 + $0x188] sm:$0xff]
      %v1630 = vld [vmem:[#allocation2 + $0x190] sm:$0xff]
      %v1631 = vld [vmem:[#allocation2 + $0x198] sm:$0xff]
      %v1632 = vld [vmem:[#allocation2 + $0x1a0] sm:$0xff]
      %v1633 = vld [vmem:[#allocation2 + $0x1a8] sm:$0xff]
      %v1634 = vld [vmem:[#allocation2 + $0x1b0] sm:$0xff]
      %v1635 = vld [vmem:[#allocation2 + $0x1b8] sm:$0xff]
      %v1636 = vld [vmem:[#allocation2 + $0x1c0] sm:$0xff]
      %v1637 = vld [vmem:[#allocation2 + $0x1c8] sm:$0xff]
      %v1638 = vld [vmem:[#allocation2 + $0x1d0] sm:$0xff]
      %v1639 = vld [vmem:[#allocation2 + $0x1d8] sm:$0xff]
      %v1640 = vld [vmem:[#allocation2 + $0x1e0] sm:$0xff]
      %v1641 = vld [vmem:[#allocation2 + $0x1e8] sm:$0xff]
      %v1642 = vld [vmem:[#allocation2 + $0x1f0] sm:$0xff]
      %v1643 = vld [vmem:[#allocation2 + $0x1f8] sm:$0xff]
      %v1644 = vld [vmem:[#allocation2 + $0x200] sm:$0xff]
      %v1645 = vld [vmem:[#allocation2 + $0x208] sm:$0xff]
      %v1646 = vld [vmem:[#allocation2 + $0x210] sm:$0xff]
      %v1647 = vld [vmem:[#allocation2 + $0x218] sm:$0xff]
      %v1648 = vld [vmem:[#allocation2 + $0x220] sm:$0xff]
      %v1649 = vld [vmem:[#allocation2 + $0x228] sm:$0xff]
      %v1650 = vld [vmem:[#allocation2 + $0x230] sm:$0xff]
      %v1651 = vld [vmem:[#allocation2 + $0x238] sm:$0xff]
      %v1652 = vld [vmem:[#allocation2 + $0x240] sm:$0xff]
      %v1653 = vld [vmem:[#allocation2 + $0x248] sm:$0xff]
      %v1654 = vld [vmem:[#allocation2 + $0x250] sm:$0xff]
      %v1655 = vld [vmem:[#allocation2 + $0x258] sm:$0xff]
      %v1656 = vld [vmem:[#allocation2 + $0x260] sm:$0xff]
      %v1657 = vld [vmem:[#allocation2 + $0x268] sm:$0xff]
      %v1658 = vld [vmem:[#allocation2 + $0x270] sm:$0xff]
      %v1659 = vld [vmem:[#allocation2 + $0x278] sm:$0xff]
      %v1660 = vld [vmem:[#allocation2 + $0x280] sm:$0xff]
      %v1661 = vld [vmem:[#allocation2 + $0x288] sm:$0xff]
      %v1662 = vld [vmem:[#allocation2 + $0x290] sm:$0xff]
      %v1663 = vld [vmem:[#allocation2 + $0x298] sm:$0xff]
      %v1664 = vld [vmem:[#allocation2 + $0x2a0] sm:$0xff]
      %v1665 = vld [vmem:[#allocation2 + $0x2a8] sm:$0xff]
      %v1666 = vld [vmem:[#allocation2 + $0x2b0] sm:$0xff]
      %v1667 = vld [vmem:[#allocation2 + $0x2b8] sm:$0xff]
      %v1668 = vld [vmem:[#allocation2 + $0x2c0] sm:$0xff]
      %v1669 = vld [vmem:[#allocation2 + $0x2c8] sm:$0xff]
      %v1670 = vld [vmem:[#allocation2 + $0x2d0] sm:$0xff]
      %v1671 = vld [vmem:[#allocation2 + $0x2d8] sm:$0xff]
      %v1672 = vld [vmem:[#allocation2 + $0x2e0] sm:$0xff]
      %v1673 = vld [vmem:[#allocation2 + $0x2e8] sm:$0xff]
      %v1674 = vld [vmem:[#allocation2 + $0x2f0] sm:$0xff]
      %v1675 = vld [vmem:[#allocation2 + $0x2f8] sm:$0xff]
      %v1676 = vld [vmem:[#allocation2 + $0x300] sm:$0xff]
      %v1677 = vld [vmem:[#allocation2 + $0x308] sm:$0xff]
      %v1678 = vld [vmem:[#allocation2 + $0x310] sm:$0xff]
      %v1679 = vld [vmem:[#allocation2 + $0x318] sm:$0xff]
      %v1680 = vld [vmem:[#allocation2 + $0x320] sm:$0xff]
      %v1681 = vld [vmem:[#allocation2 + $0x328] sm:$0xff]
      %v1682 = vld [vmem:[#allocation2 + $0x330] sm:$0xff]
      %v1683 = vld [vmem:[#allocation2 + $0x338] sm:$0xff]
      %v1684 = vld [vmem:[#allocation2 + $0x340] sm:$0xff]
      %v1685 = vld [vmem:[#allocation2 + $0x348] sm:$0xff]
      %v1686 = vld [vmem:[#allocation2 + $0x350] sm:$0xff]
      %v1687 = vld [vmem:[#allocation2 + $0x358] sm:$0xff]
      %v1704 = vunpack.c.l.b16 %v1564
      %v1705 = vunpack.c.h.b16 %v1564
      %v1706 = vunpack.c.l.b16 %v1565
      %v1707 = vunpack.c.h.b16 %v1565
      %v1708 = vunpack.c.l.b16 %v1566
      %v1709 = vunpack.c.h.b16 %v1566
      %v1710 = vunpack.c.l.b16 %v1567
      %v1711 = vunpack.c.h.b16 %v1567
      %v1712 = vunpack.c.l.b16 %v1568
      %v1713 = vunpack.c.h.b16 %v1568
      %v1714 = vunpack.c.l.b16 %v1569
      %v1715 = vunpack.c.h.b16 %v1569
      %v1716 = vunpack.c.l.b16 %v1570
      %v1717 = vunpack.c.h.b16 %v1570
      %v1718 = vunpack.c.l.b16 %v1571
      %v1719 = vunpack.c.h.b16 %v1571
      %v1720 = vunpack.c.l.b16 %v1572
      %v1721 = vunpack.c.h.b16 %v1572
      %v1722 = vunpack.c.l.b16 %v1573
      %v1723 = vunpack.c.h.b16 %v1573
      %v1724 = vunpack.c.l.b16 %v1574
      %v1725 = vunpack.c.h.b16 %v1574
      %v1726 = vunpack.c.l.b16 %v1575
      %v1727 = vunpack.c.h.b16 %v1575
      %v1728 = vunpack.c.l.b16 %v1576
      %v1729 = vunpack.c.h.b16 %v1576
      %v1730 = vunpack.c.l.b16 %v1577
      %v1731 = vunpack.c.h.b16 %v1577
      %v1732 = vunpack.c.l.b16 %v1578
      %v1733 = vunpack.c.h.b16 %v1578
      %v1734 = vunpack.c.l.b16 %v1579
      %v1735 = vunpack.c.h.b16 %v1579
      %v1736 = vpack.c.b16 %v1708, %v1704
      %v1737 = vpack.c.b16 %v1709, %v1705
      %v1738 = vpack.c.b16 %v1710, %v1706
      %v1739 = vpack.c.b16 %v1711, %v1707
      %v1740 = vpack.c.b16 %v1716, %v1712
      %v1741 = vpack.c.b16 %v1717, %v1713
      %v1742 = vpack.c.b16 %v1718, %v1714
      %v1743 = vpack.c.b16 %v1719, %v1715
      %v1744 = vpack.c.b16 %v1724, %v1720
      %v1745 = vpack.c.b16 %v1725, %v1721
      %v1746 = vpack.c.b16 %v1726, %v1722
      %v1747 = vpack.c.b16 %v1727, %v1723
      %v1748 = vpack.c.b16 %v1732, %v1728
      %v1749 = vpack.c.b16 %v1733, %v1729
      %v1750 = vpack.c.b16 %v1734, %v1730
      %v1751 = vpack.c.b16 %v1735, %v1731
      %vm1764 = vcmask 392192
      %v1766 = vsel %vm1764, %v1739, 0
      %v1769 = vsel %vm1764, %v1743, 0
      %v1772 = vsel %vm1764, %v1747, 0
      %v1775 = vsel %vm1764, %v1751, 0
      %1777 = vmatprep.subr.bf16.mxu0 %v1581
      %1778 = vmatpush1.bf16.msra.mxu0 %v1580
      %1779 = vmatprep.subr.bf16.mxu0 %v1585
      %1780 = vmatpush1.bf16.msra.mxu0 %v1584
      %1781 = vmatprep.subr.bf16.mxu0 %v1589
      %1782 = vmatpush1.bf16.msra.mxu0 %v1588
      %1783 = vmatprep.subr.bf16.mxu0 %v1593
      %1784 = vmatpush1.bf16.msra.mxu0 %v1592
      %1785 = vmatprep.subr.bf16.mxu0 %v1597
      %1786 = vmatpush1.bf16.msra.mxu0 %v1596
      %1787 = vmatprep.subr.bf16.mxu0 %v1601
      %1788 = vmatpush1.bf16.msra.mxu0 %v1600
      %1789 = vmatprep.subr.bf16.mxu0 %v1605
      %1790 = vmatpush1.bf16.msra.mxu0 %v1604
      %1791 = vmatprep.subr.bf16.mxu0 %v1609
      %1792 = vmatpush1.bf16.msra.mxu0 %v1608
      %1793 = vmatprep.subr.bf16.mxu0 %v1613
      %1794 = vmatpush1.bf16.msra.mxu0 %v1612
      %1795 = vmatprep.subr.bf16.mxu0 %v1617
      %1796 = vmatpush1.bf16.msra.mxu0 %v1616
      %1797 = vmatprep.subr.bf16.mxu0 %v1621
      %1798 = vmatpush1.bf16.msra.mxu0 %v1620
      %1799 = vmatprep.subr.bf16.mxu0 %v1625
      %1800 = vmatpush1.bf16.msra.mxu0 %v1624
      %1801 = vmatprep.subr.bf16.mxu0 %v1629
      %1802 = vmatpush1.bf16.msra.mxu0 %v1628
      %1803 = vmatprep.subr.bf16.mxu0 %v1633
      %1804 = vmatpush1.bf16.msra.mxu0 %v1632
      %1805 = vmatprep.subr.bf16.mxu0 %v1637
      %1806 = vmatpush1.bf16.msra.mxu0 %v1636
      %1807 = vmatprep.subr.bf16.mxu0 %v1641
      %1808 = vmatpush1.bf16.msra.mxu0 %v1640
      %1809 = vmatprep.mubr.bf16.mxu0 %v1737
      %1810 = vmatmul.mubr.bf16.gmra.mrb[0].mxu0 %v1736
      %v1811 = vpop.f32.mrb[0].mxu0
      %v1812 = vadd.f32 0.0, %v1811
      %v1813 = vpop.f32.mrb[0].mxu0
      %v1814 = vadd.f32 0.0, %v1813
      %v1815 = vpop.f32.mrb[0].mxu0
      %v1816 = vadd.f32 0.0, %v1815
      %v1817 = vpop.f32.mrb[0].mxu0
      %v1818 = vadd.f32 0.0, %v1817
      %1819 = vmatprep.mubr.bf16.mxu0 %v1741
      %1820 = vmatmul.mubr.bf16.gmra.mrb[0].mxu0 %v1740
      %v1821 = vpop.f32.mrb[0].mxu0
      %v1822 = vadd.f32 0.0, %v1821
      %v1823 = vpop.f32.mrb[0].mxu0
      %v1824 = vadd.f32 0.0, %v1823
      %v1825 = vpop.f32.mrb[0].mxu0
      %v1826 = vadd.f32 0.0, %v1825
      %v1827 = vpop.f32.mrb[0].mxu0
      %v1828 = vadd.f32 0.0, %v1827
      %1829 = vmatprep.mubr.bf16.mxu0 %v1745
      %1830 = vmatmul.mubr.bf16.gmra.mrb[0].mxu0 %v1744
      %v1831 = vpop.f32.mrb[0].mxu0
      %v1832 = vadd.f32 0.0, %v1831
      %v1833 = vpop.f32.mrb[0].mxu0
      %v1834 = vadd.f32 0.0, %v1833
      %v1835 = vpop.f32.mrb[0].mxu0
      %v1836 = vadd.f32 0.0, %v1835
      %v1837 = vpop.f32.mrb[0].mxu0
      %v1838 = vadd.f32 0.0, %v1837
      %1839 = vmatprep.mubr.bf16.mxu0 %v1749
      %1840 = vmatmul.mubr.bf16.gmra.mrb[0].mxu0 %v1748
      %v1841 = vpop.f32.mrb[0].mxu0
      %v1842 = vadd.f32 0.0, %v1841
      %v1843 = vpop.f32.mrb[0].mxu0
      %v1844 = vadd.f32 0.0, %v1843
      %v1845 = vpop.f32.mrb[0].mxu0
      %v1846 = vadd.f32 0.0, %v1845
      %v1847 = vpop.f32.mrb[0].mxu0
      %v1848 = vadd.f32 0.0, %v1847
      %1849 = vdwg.mxu0
      %1850 = vmatprep.subr.bf16.mxu0 %v1645
      %1851 = vmatpush1.bf16.msra.mxu0 %v1644
      %1852 = vmatprep.subr.bf16.mxu0 %v1649
      %1853 = vmatpush1.bf16.msra.mxu0 %v1648
      %1854 = vmatprep.subr.bf16.mxu0 %v1653
      %1855 = vmatpush1.bf16.msra.mxu0 %v1652
      %1856 = vmatprep.subr.bf16.mxu0 %v1657
      %1857 = vmatpush1.bf16.msra.mxu0 %v1656
      %1858 = vmatprep.subr.bf16.mxu0 %v1661
      %1859 = vmatpush1.bf16.msra.mxu0 %v1660
      %1860 = vmatprep.subr.bf16.mxu0 %v1665
      %1861 = vmatpush1.bf16.msra.mxu0 %v1664
      %1862 = vmatprep.subr.bf16.mxu0 %v1669
      %1863 = vmatpush1.bf16.msra.mxu0 %v1668
      %1864 = vmatprep.subr.bf16.mxu0 %v1673
      %1865 = vmatpush1.bf16.msra.mxu0 %v1672
      %1866 = vmatprep.subr.bf16.mxu0 %v1677
      %1867 = vmatpush1.bf16.msra.mxu0 %v1676
      %1868 = vmatprep.subr.bf16.mxu0 %v1681
      %1869 = vmatpush1.bf16.msra.mxu0 %v1680
      %1870 = vmatprep.subr.bf16.mxu0 %v1685
      %1871 = vmatpush1.bf16.msra.mxu0 %v1684
      %1872 = vmatprep.subr.bf16.mxu0 0
      %1873 = vmatpush1.bf16.msra.mxu0 0
      %1874 = vmatprep.subr.bf16.mxu0 0
      %1875 = vmatpush1.bf16.msra.mxu0 0
      %1876 = vmatprep.subr.bf16.mxu0 0
      %1877 = vmatpush1.bf16.msra.mxu0 0
      %1878 = vmatprep.subr.bf16.mxu0 0
      %1879 = vmatpush1.bf16.msra.mxu0 0
      %1880 = vmatprep.subr.bf16.mxu0 0
      %1881 = vmatpush1.bf16.msra.mxu0 0
      %1882 = vmatprep.mubr.bf16.mxu0 %v1766
      %1883 = vmatmul.mubr.bf16.gmra.mrb[0].mxu0 %v1738
      %v1884 = vpop.f32.mrb[0].mxu0
      %v1885 = vadd.f32 %v1812, %v1884
      %v1886 = vpop.f32.mrb[0].mxu0
      %v1887 = vadd.f32 %v1814, %v1886
      %v1888 = vpop.f32.mrb[0].mxu0
      %v1889 = vadd.f32 %v1816, %v1888
      %v1890 = vpop.f32.mrb[0].mxu0
      %v1891 = vadd.f32 %v1818, %v1890
      %1892 = vmatprep.mubr.bf16.mxu0 %v1769
      %1893 = vmatmul.mubr.bf16.gmra.mrb[0].mxu0 %v1742
      %v1894 = vpop.f32.mrb[0].mxu0
      %v1895 = vadd.f32 %v1822, %v1894
      %v1896 = vpop.f32.mrb[0].mxu0
      %v1897 = vadd.f32 %v1824, %v1896
      %v1898 = vpop.f32.mrb[0].mxu0
      %v1899 = vadd.f32 %v1826, %v1898
      %v1900 = vpop.f32.mrb[0].mxu0
      %v1901 = vadd.f32 %v1828, %v1900
      %1902 = vmatprep.mubr.bf16.mxu0 %v1772
      %1903 = vmatmul.mubr.bf16.gmra.mrb[0].mxu0 %v1746
      %v1904 = vpop.f32.mrb[0].mxu0
      %v1905 = vadd.f32 %v1832, %v1904
      %v1906 = vpop.f32.mrb[0].mxu0
      %v1907 = vadd.f32 %v1834, %v1906
      %v1908 = vpop.f32.mrb[0].mxu0
      %v1909 = vadd.f32 %v1836, %v1908
      %v1910 = vpop.f32.mrb[0].mxu0
      %v1911 = vadd.f32 %v1838, %v1910
      %1912 = vmatprep.mubr.bf16.mxu0 %v1775
      %1913 = vmatmul.mubr.bf16.gmra.mrb[0].mxu0 %v1750
      %v1914 = vpop.f32.mrb[0].mxu0
      %v1915 = vadd.f32 %v1842, %v1914
      %v1916 = vpop.f32.mrb[0].mxu0
      %v1917 = vadd.f32 %v1844, %v1916
      %v1918 = vpop.f32.mrb[0].mxu0
      %v1919 = vadd.f32 %v1846, %v1918
      %v1920 = vpop.f32.mrb[0].mxu0
      %v1921 = vadd.f32 %v1848, %v1920
      %1922 = vdwg.mxu0
      %1923 = vmatprep.subr.bf16.mxu0 %v1583
      %1924 = vmatpush1.bf16.msra.mxu0 %v1582
      %1925 = vmatprep.subr.bf16.mxu0 %v1587
      %1926 = vmatpush1.bf16.msra.mxu0 %v1586
      %1927 = vmatprep.subr.bf16.mxu0 %v1591
      %1928 = vmatpush1.bf16.msra.mxu0 %v1590
      %1929 = vmatprep.subr.bf16.mxu0 %v1595
      %1930 = vmatpush1.bf16.msra.mxu0 %v1594
      %1931 = vmatprep.subr.bf16.mxu0 %v1599
      %1932 = vmatpush1.bf16.msra.mxu0 %v1598
      %1933 = vmatprep.subr.bf16.mxu0 %v1603
      %1934 = vmatpush1.bf16.msra.mxu0 %v1602
      %1935 = vmatprep.subr.bf16.mxu0 %v1607
      %1936 = vmatpush1.bf16.msra.mxu0 %v1606
      %1937 = vmatprep.subr.bf16.mxu0 %v1611
      %1938 = vmatpush1.bf16.msra.mxu0 %v1610
      %1939 = vmatprep.subr.bf16.mxu0 %v1615
      %1940 = vmatpush1.bf16.msra.mxu0 %v1614
      %1941 = vmatprep.subr.bf16.mxu0 %v1619
      %1942 = vmatpush1.bf16.msra.mxu0 %v1618
      %1943 = vmatprep.subr.bf16.mxu0 %v1623
      %1944 = vmatpush1.bf16.msra.mxu0 %v1622
      %1945 = vmatprep.subr.bf16.mxu0 %v1627
      %1946 = vmatpush1.bf16.msra.mxu0 %v1626
      %1947 = vmatprep.subr.bf16.mxu0 %v1631
      %1948 = vmatpush1.bf16.msra.mxu0 %v1630
      %1949 = vmatprep.subr.bf16.mxu0 %v1635
      %1950 = vmatpush1.bf16.msra.mxu0 %v1634
      %1951 = vmatprep.subr.bf16.mxu0 %v1639
      %1952 = vmatpush1.bf16.msra.mxu0 %v1638
      %1953 = vmatprep.subr.bf16.mxu0 %v1643
      %1954 = vmatpush1.bf16.msra.mxu0 %v1642
      %1955 = vmatprep.mubr.bf16.mxu0 %v1737
      %1956 = vmatmul.mubr.bf16.gmra.mrb[0].mxu0 %v1736
      %v1957 = vpop.f32.mrb[0].mxu0
      %v1958 = vadd.f32 0.0, %v1957
      %v1959 = vpop.f32.mrb[0].mxu0
      %v1960 = vadd.f32 0.0, %v1959
      %v1961 = vpop.f32.mrb[0].mxu0
      %v1962 = vadd.f32 0.0, %v1961
      %v1963 = vpop.f32.mrb[0].mxu0
      %v1964 = vadd.f32 0.0, %v1963
      %1965 = vmatprep.mubr.bf16.mxu0 %v1741
      %1966 = vmatmul.mubr.bf16.gmra.mrb[0].mxu0 %v1740
      %v1967 = vpop.f32.mrb[0].mxu0
      %v1968 = vadd.f32 0.0, %v1967
      %v1969 = vpop.f32.mrb[0].mxu0
      %v1970 = vadd.f32 0.0, %v1969
      %v1971 = vpop.f32.mrb[0].mxu0
      %v1972 = vadd.f32 0.0, %v1971
      %v1973 = vpop.f32.mrb[0].mxu0
      %v1974 = vadd.f32 0.0, %v1973
      %1975 = vmatprep.mubr.bf16.mxu0 %v1745
      %1976 = vmatmul.mubr.bf16.gmra.mrb[0].mxu0 %v1744
      %v1977 = vpop.f32.mrb[0].mxu0
      %v1978 = vadd.f32 0.0, %v1977
      %v1979 = vpop.f32.mrb[0].mxu0
      %v1980 = vadd.f32 0.0, %v1979
      %v1981 = vpop.f32.mrb[0].mxu0
      %v1982 = vadd.f32 0.0, %v1981
      %v1983 = vpop.f32.mrb[0].mxu0
      %v1984 = vadd.f32 0.0, %v1983
      %1985 = vmatprep.mubr.bf16.mxu0 %v1749
      %1986 = vmatmul.mubr.bf16.gmra.mrb[0].mxu0 %v1748
      %v1987 = vpop.f32.mrb[0].mxu0
      %v1988 = vadd.f32 0.0, %v1987
      %v1989 = vpop.f32.mrb[0].mxu0
      %v1990 = vadd.f32 0.0, %v1989
      %v1991 = vpop.f32.mrb[0].mxu0
      %v1992 = vadd.f32 0.0, %v1991
      %v1993 = vpop.f32.mrb[0].mxu0
      %v1994 = vadd.f32 0.0, %v1993
      %1995 = vdwg.mxu0
      %1996 = vmatprep.subr.bf16.mxu0 %v1647
      %1997 = vmatpush1.bf16.msra.mxu0 %v1646
      %1998 = vmatprep.subr.bf16.mxu0 %v1651
      %1999 = vmatpush1.bf16.msra.mxu0 %v1650
      %2000 = vmatprep.subr.bf16.mxu0 %v1655
      %2001 = vmatpush1.bf16.msra.mxu0 %v1654
      %2002 = vmatprep.subr.bf16.mxu0 %v1659
      %2003 = vmatpush1.bf16.msra.mxu0 %v1658
      %2004 = vmatprep.subr.bf16.mxu0 %v1663
      %2005 = vmatpush1.bf16.msra.mxu0 %v1662
      %2006 = vmatprep.subr.bf16.mxu0 %v1667
      %2007 = vmatpush1.bf16.msra.mxu0 %v1666
      %2008 = vmatprep.subr.bf16.mxu0 %v1671
      %2009 = vmatpush1.bf16.msra.mxu0 %v1670
      %2010 = vmatprep.subr.bf16.mxu0 %v1675
      %2011 = vmatpush1.bf16.msra.mxu0 %v1674
      %2012 = vmatprep.subr.bf16.mxu0 %v1679
      %2013 = vmatpush1.bf16.msra.mxu0 %v1678
      %2014 = vmatprep.subr.bf16.mxu0 %v1683
      %2015 = vmatpush1.bf16.msra.mxu0 %v1682
      %2016 = vmatprep.subr.bf16.mxu0 %v1687
      %2017 = vmatpush1.bf16.msra.mxu0 %v1686
      %2018 = vmatprep.subr.bf16.mxu0 0
      %2019 = vmatpush1.bf16.msra.mxu0 0
      %2020 = vmatprep.subr.bf16.mxu0 0
      %2021 = vmatpush1.bf16.msra.mxu0 0
      %2022 = vmatprep.subr.bf16.mxu0 0
      %2023 = vmatpush1.bf16.msra.mxu0 0
      %2024 = vmatprep.subr.bf16.mxu0 0
      %2025 = vmatpush1.bf16.msra.mxu0 0
      %2026 = vmatprep.subr.bf16.mxu0 0
      %2027 = vmatpush1.bf16.msra.mxu0 0
      %2028 = vmatprep.mubr.bf16.mxu0 %v1766
      %2029 = vmatmul.mubr.bf16.gmra.mrb[0].mxu0 %v1738
      %v2030 = vpop.f32.mrb[0].mxu0
      %v2031 = vadd.f32 %v1958, %v2030
      %v2032 = vpop.f32.mrb[0].mxu0
      %v2033 = vadd.f32 %v1960, %v2032
      %v2034 = vpop.f32.mrb[0].mxu0
      %v2035 = vadd.f32 %v1962, %v2034
      %v2036 = vpop.f32.mrb[0].mxu0
      %v2037 = vadd.f32 %v1964, %v2036
      %2038 = vmatprep.mubr.bf16.mxu0 %v1769
      %2039 = vmatmul.mubr.bf16.gmra.mrb[0].mxu0 %v1742
      %v2040 = vpop.f32.mrb[0].mxu0
      %v2041 = vadd.f32 %v1968, %v2040
      %v2042 = vpop.f32.mrb[0].mxu0
      %v2043 = vadd.f32 %v1970, %v2042
      %v2044 = vpop.f32.mrb[0].mxu0
      %v2045 = vadd.f32 %v1972, %v2044
      %v2046 = vpop.f32.mrb[0].mxu0
      %v2047 = vadd.f32 %v1974, %v2046
      %2048 = vmatprep.mubr.bf16.mxu0 %v1772
      %2049 = vmatmul.mubr.bf16.gmra.mrb[0].mxu0 %v1746
      %v2050 = vpop.f32.mrb[0].mxu0
      %v2051 = vadd.f32 %v1978, %v2050
      %v2052 = vpop.f32.mrb[0].mxu0
      %v2053 = vadd.f32 %v1980, %v2052
      %v2054 = vpop.f32.mrb[0].mxu0
      %v2055 = vadd.f32 %v1982, %v2054
      %v2056 = vpop.f32.mrb[0].mxu0
      %v2057 = vadd.f32 %v1984, %v2056
      %2058 = vmatprep.mubr.bf16.mxu0 %v1775
      %2059 = vmatmul.mubr.bf16.gmra.mrb[0].mxu0 %v1750
      %v2060 = vpop.f32.mrb[0].mxu0
      %v2061 = vadd.f32 %v1988, %v2060
      %v2062 = vpop.f32.mrb[0].mxu0
      %v2063 = vadd.f32 %v1990, %v2062
      %v2064 = vpop.f32.mrb[0].mxu0
      %v2065 = vadd.f32 %v1992, %v2064
      %v2066 = vpop.f32.mrb[0].mxu0
      %v2067 = vadd.f32 %v1994, %v2066
      %2068 = vdwg.mxu0
      %v2069 = vld [vmem:[%s2] sm:$0xff]
      %v2070 = vld [vmem:[%s2 + $0x8] sm:$0xff]
      %v2071 = vld [vmem:[%s2 + $0x10] sm:$0xff]
      %v2072 = vld [vmem:[%s2 + $0x18] sm:$0xff]
      %v2073 = vld [vmem:[%s2 + $0x20] sm:$0xff]
      %v2074 = vld [vmem:[%s2 + $0x28] sm:$0xff]
      %v2075 = vld [vmem:[%s2 + $0x30] sm:$0xff]
      %v2076 = vld [vmem:[%s2 + $0x38] sm:$0xff]
      %2078 = vset.pattern.permute.xlu0 0
      %2079 = vperm.xlu0 %2078, %v2069
      %v2080 = vpop.permute.xlu0 %2079
      %2083 = vset.pattern.permute.xlu0 0
      %2084 = vperm.xlu0 %2083, %v2070
      %v2085 = vpop.permute.xlu0 %2084
      %2088 = vset.pattern.permute.xlu0 0
      %2089 = vperm.xlu0 %2088, %v2071
      %v2090 = vpop.permute.xlu0 %2089
      %2093 = vset.pattern.permute.xlu0 0
      %2094 = vperm.xlu0 %2093, %v2072
      %v2095 = vpop.permute.xlu0 %2094
      %2098 = vset.pattern.permute.xlu0 0
      %2099 = vperm.xlu0 %2098, %v2073
      %v2100 = vpop.permute.xlu0 %2099
      %2103 = vset.pattern.permute.xlu0 0
      %2104 = vperm.xlu0 %2103, %v2074
      %v2105 = vpop.permute.xlu0 %2104
      %2108 = vset.pattern.permute.xlu0 0
      %2109 = vperm.xlu0 %2108, %v2075
      %v2110 = vpop.permute.xlu0 %2109
      %2113 = vset.pattern.permute.xlu0 0
      %2114 = vperm.xlu0 %2113, %v2076
      %v2115 = vpop.permute.xlu0 %2114
      %v2117 = vmul.f32 %v1885, %v2080
      %v2118 = vmul.f32 %v1887, %v2080
      %v2119 = vmul.f32 %v2031, %v2080
      %v2120 = vmul.f32 %v2033, %v2080
      %v2121 = vmul.f32 %v1889, %v2085
      %v2122 = vmul.f32 %v1891, %v2085
      %v2123 = vmul.f32 %v2035, %v2085
      %v2124 = vmul.f32 %v2037, %v2085
      %v2125 = vmul.f32 %v1895, %v2090
      %v2126 = vmul.f32 %v1897, %v2090
      %v2127 = vmul.f32 %v2041, %v2090
      %v2128 = vmul.f32 %v2043, %v2090
      %v2129 = vmul.f32 %v1899, %v2095
      %v2130 = vmul.f32 %v1901, %v2095
      %v2131 = vmul.f32 %v2045, %v2095
      %v2132 = vmul.f32 %v2047, %v2095
      %v2133 = vmul.f32 %v1905, %v2100
      %v2134 = vmul.f32 %v1907, %v2100
      %v2135 = vmul.f32 %v2051, %v2100
      %v2136 = vmul.f32 %v2053, %v2100
      %v2137 = vmul.f32 %v1909, %v2105
      %v2138 = vmul.f32 %v1911, %v2105
      %v2139 = vmul.f32 %v2055, %v2105
      %v2140 = vmul.f32 %v2057, %v2105
      %v2141 = vmul.f32 %v1915, %v2110
      %v2142 = vmul.f32 %v1917, %v2110
      %v2143 = vmul.f32 %v2061, %v2110
      %v2144 = vmul.f32 %v2063, %v2110
      %v2145 = vmul.f32 %v1919, %v2115
      %v2146 = vmul.f32 %v1921, %v2115
      %v2147 = vmul.f32 %v2065, %v2115
      %v2148 = vmul.f32 %v2067, %v2115
      %v2149 = vld [vmem:[%s3] sm:$0xff]
      %v2150 = vld [vmem:[%s3 + $0x8] sm:$0xff]
      %v2151 = vld [vmem:[%s3 + $0x10] sm:$0xff]
      %v2152 = vld [vmem:[%s3 + $0x18] sm:$0xff]
      %v2153 = vld [vmem:[%s3 + $0x20] sm:$0xff]
      %v2154 = vld [vmem:[%s3 + $0x28] sm:$0xff]
      %v2155 = vld [vmem:[%s3 + $0x30] sm:$0xff]
      %v2156 = vld [vmem:[%s3 + $0x38] sm:$0xff]
      %2158 = vset.pattern.permute.xlu0 0
      %2159 = vperm.xlu0 %2158, %v2149
      %v2160 = vpop.permute.xlu0 %2159
      %2163 = vset.pattern.permute.xlu0 0
      %2164 = vperm.xlu0 %2163, %v2150
      %v2165 = vpop.permute.xlu0 %2164
      %2168 = vset.pattern.permute.xlu0 0
      %2169 = vperm.xlu0 %2168, %v2151
      %v2170 = vpop.permute.xlu0 %2169
      %2173 = vset.pattern.permute.xlu0 0
      %2174 = vperm.xlu0 %2173, %v2152
      %v2175 = vpop.permute.xlu0 %2174
      %2178 = vset.pattern.permute.xlu0 0
      %2179 = vperm.xlu0 %2178, %v2153
      %v2180 = vpop.permute.xlu0 %2179
      %2183 = vset.pattern.permute.xlu0 0
      %2184 = vperm.xlu0 %2183, %v2154
      %v2185 = vpop.permute.xlu0 %2184
      %2188 = vset.pattern.permute.xlu0 0
      %2189 = vperm.xlu0 %2188, %v2155
      %v2190 = vpop.permute.xlu0 %2189
      %2193 = vset.pattern.permute.xlu0 0
      %2194 = vperm.xlu0 %2193, %v2156
      %v2195 = vpop.permute.xlu0 %2194
      %v2197 = vadd.f32 %v2117, %v2160
      %v2198 = vadd.f32 %v2118, %v2160
      %v2199 = vadd.f32 %v2119, %v2160
      %v2200 = vadd.f32 %v2120, %v2160
      %v2201 = vadd.f32 %v2121, %v2165
      %v2202 = vadd.f32 %v2122, %v2165
      %v2203 = vadd.f32 %v2123, %v2165
      %v2204 = vadd.f32 %v2124, %v2165
      %v2205 = vadd.f32 %v2125, %v2170
      %v2206 = vadd.f32 %v2126, %v2170
      %v2207 = vadd.f32 %v2127, %v2170
      %v2208 = vadd.f32 %v2128, %v2170
      %v2209 = vadd.f32 %v2129, %v2175
      %v2210 = vadd.f32 %v2130, %v2175
      %v2211 = vadd.f32 %v2131, %v2175
      %v2212 = vadd.f32 %v2132, %v2175
      %v2213 = vadd.f32 %v2133, %v2180
      %v2214 = vadd.f32 %v2134, %v2180
      %v2215 = vadd.f32 %v2135, %v2180
      %v2216 = vadd.f32 %v2136, %v2180
      %v2217 = vadd.f32 %v2137, %v2185
      %v2218 = vadd.f32 %v2138, %v2185
      %v2219 = vadd.f32 %v2139, %v2185
      %v2220 = vadd.f32 %v2140, %v2185
      %v2221 = vadd.f32 %v2141, %v2190
      %v2222 = vadd.f32 %v2142, %v2190
      %v2223 = vadd.f32 %v2143, %v2190
      %v2224 = vadd.f32 %v2144, %v2190
      %v2225 = vadd.f32 %v2145, %v2195
      %v2226 = vadd.f32 %v2146, %v2195
      %v2227 = vadd.f32 %v2147, %v2195
      %v2228 = vadd.f32 %v2148, %v2195
      %v2229 = vmax.f32 %v2197, 0.0
      %v2230 = vmax.f32 %v2198, 0.0
      %v2231 = vmax.f32 %v2199, 0.0
      %v2232 = vmax.f32 %v2200, 0.0
      %v2233 = vmax.f32 %v2201, 0.0
      %v2234 = vmax.f32 %v2202, 0.0
      %v2235 = vmax.f32 %v2203, 0.0
      %v2236 = vmax.f32 %v2204, 0.0
      %v2237 = vmax.f32 %v2205, 0.0
      %v2238 = vmax.f32 %v2206, 0.0
      %v2239 = vmax.f32 %v2207, 0.0
      %v2240 = vmax.f32 %v2208, 0.0
      %v2241 = vmax.f32 %v2209, 0.0
      %v2242 = vmax.f32 %v2210, 0.0
      %v2243 = vmax.f32 %v2211, 0.0
      %v2244 = vmax.f32 %v2212, 0.0
      %v2245 = vmax.f32 %v2213, 0.0
      %v2246 = vmax.f32 %v2214, 0.0
      %v2247 = vmax.f32 %v2215, 0.0
      %v2248 = vmax.f32 %v2216, 0.0
      %v2249 = vmax.f32 %v2217, 0.0
      %v2250 = vmax.f32 %v2218, 0.0
      %v2251 = vmax.f32 %v2219, 0.0
      %v2252 = vmax.f32 %v2220, 0.0
      %v2253 = vmax.f32 %v2221, 0.0
      %v2254 = vmax.f32 %v2222, 0.0
      %v2255 = vmax.f32 %v2223, 0.0
      %v2256 = vmax.f32 %v2224, 0.0
      %v2257 = vmax.f32 %v2225, 0.0
      %v2258 = vmax.f32 %v2226, 0.0
      %v2259 = vmax.f32 %v2227, 0.0
      %v2260 = vmax.f32 %v2228, 0.0
      %v2261 = vpack.c.bf16 %v2233, %v2229
      %v2262 = vpack.c.bf16 %v2234, %v2230
      %v2263 = vpack.c.bf16 %v2235, %v2231
      %v2264 = vpack.c.bf16 %v2236, %v2232
      %v2265 = vpack.c.bf16 %v2241, %v2237
      %v2266 = vpack.c.bf16 %v2242, %v2238
      %v2267 = vpack.c.bf16 %v2243, %v2239
      %v2268 = vpack.c.bf16 %v2244, %v2240
      %v2269 = vpack.c.bf16 %v2249, %v2245
      %v2270 = vpack.c.bf16 %v2250, %v2246
      %v2271 = vpack.c.bf16 %v2251, %v2247
      %v2272 = vpack.c.bf16 %v2252, %v2248
      %v2273 = vpack.c.bf16 %v2257, %v2253
      %v2274 = vpack.c.bf16 %v2258, %v2254
      %v2275 = vpack.c.bf16 %v2259, %v2255
      %v2276 = vpack.c.bf16 %v2260, %v2256
      %v2293 = vunpack.c.l.b16 %v2261
      %v2294 = vunpack.c.l.b16 %v2262
      %v2295 = vunpack.c.l.b16 %v2263
      %v2296 = vunpack.c.l.b16 %v2264
      %v2297 = vunpack.c.h.b16 %v2261
      %v2298 = vunpack.c.h.b16 %v2262
      %v2299 = vunpack.c.h.b16 %v2263
      %v2300 = vunpack.c.h.b16 %v2264
      %v2301 = vunpack.c.l.b16 %v2265
      %v2302 = vunpack.c.l.b16 %v2266
      %v2303 = vunpack.c.l.b16 %v2267
      %v2304 = vunpack.c.l.b16 %v2268
      %v2305 = vunpack.c.h.b16 %v2265
      %v2306 = vunpack.c.h.b16 %v2266
      %v2307 = vunpack.c.h.b16 %v2267
      %v2308 = vunpack.c.h.b16 %v2268
      %v2309 = vunpack.c.l.b16 %v2269
      %v2310 = vunpack.c.l.b16 %v2270
      %v2311 = vunpack.c.l.b16 %v2271
      %v2312 = vunpack.c.l.b16 %v2272
      %v2313 = vunpack.c.h.b16 %v2269
      %v2314 = vunpack.c.h.b16 %v2270
      %v2315 = vunpack.c.h.b16 %v2271
      %v2316 = vunpack.c.h.b16 %v2272
      %v2317 = vunpack.c.l.b16 %v2273
      %v2318 = vunpack.c.l.b16 %v2274
      %v2319 = vunpack.c.l.b16 %v2275
      %v2320 = vunpack.c.l.b16 %v2276
      %v2321 = vunpack.c.h.b16 %v2273
      %v2322 = vunpack.c.h.b16 %v2274
      %v2323 = vunpack.c.h.b16 %v2275
      %v2324 = vunpack.c.h.b16 %v2276
      %v2325 = vpack.c.b16 %v2294, %v2293
      %v2326 = vpack.c.b16 %v2296, %v2295
      %v2327 = vpack.c.b16 %v2298, %v2297
      %v2328 = vpack.c.b16 %v2300, %v2299
      %v2329 = vpack.c.b16 %v2302, %v2301
      %v2330 = vpack.c.b16 %v2304, %v2303
      %v2331 = vpack.c.b16 %v2306, %v2305
      %v2332 = vpack.c.b16 %v2308, %v2307
      %v2333 = vpack.c.b16 %v2310, %v2309
      %v2334 = vpack.c.b16 %v2312, %v2311
      %v2335 = vpack.c.b16 %v2314, %v2313
      %v2336 = vpack.c.b16 %v2316, %v2315
      %v2337 = vpack.c.b16 %v2318, %v2317
      %v2338 = vpack.c.b16 %v2320, %v2319
      %v2339 = vpack.c.b16 %v2322, %v2321
      %v2340 = vpack.c.b16 %v2324, %v2323
      %2357 = vst [vmem:[%s233] sm:$0xff] %v2325
      %2358 = vst [vmem:[%s233 + $0x8] sm:$0xff] %v2326
      %2359 = vst [vmem:[%s233 + $0x20] sm:$0xff] %v2327
      %2360 = vst [vmem:[%s233 + $0x28] sm:$0xff] %v2328
      %2361 = vst [vmem:[%s233 + $0x40] sm:$0xff] %v2329
      %2362 = vst [vmem:[%s233 + $0x48] sm:$0xff] %v2330
      %2363 = vst [vmem:[%s233 + $0x60] sm:$0xff] %v2331
      %2364 = vst [vmem:[%s233 + $0x68] sm:$0xff] %v2332
      %2365 = vst [vmem:[%s233 + $0x80] sm:$0xff] %v2333
      %2366 = vst [vmem:[%s233 + $0x88] sm:$0xff] %v2334
      %2367 = vst [vmem:[%s233 + $0xa0] sm:$0xff] %v2335
      %2368 = vst [vmem:[%s233 + $0xa8] sm:$0xff] %v2336
      %2369 = vst [vmem:[%s233 + $0xc0] sm:$0xff] %v2337
      %2370 = vst [vmem:[%s233 + $0xc8] sm:$0xff] %v2338
      %2371 = vst [vmem:[%s233 + $0xe0] sm:$0xff] %v2339
      %2372 = vst [vmem:[%s233 + $0xe8] sm:$0xff] %v2340
      %v2373 = vld [vmem:[%s224 + $0x10] sm:$0xff]
      %v2374 = vld [vmem:[%s224 + $0x18] sm:$0xff]
      %v2375 = vld [vmem:[%s224 + $0x38] sm:$0xff]
      %v2376 = vld [vmem:[%s224 + $0x40] sm:$0xff]
      %v2381 = vunpack.c.l.b16 %v2373
      %v2382 = vunpack.c.h.b16 %v2373
      %v2383 = vunpack.c.l.b16 %v2374
      %v2384 = vunpack.c.h.b16 %v2374
      %v2385 = vunpack.c.l.b16 %v2375
      %v2386 = vunpack.c.h.b16 %v2375
      %v2387 = vunpack.c.l.b16 %v2376
      %v2388 = vunpack.c.h.b16 %v2376
      %v2389 = vpack.c.b16 %v2385, %v2381
      %v2390 = vpack.c.b16 %v2386, %v2382
      %v2391 = vpack.c.b16 %v2387, %v2383
      %v2392 = vpack.c.b16 %v2388, %v2384
      %s2397 = scalar_lea.vmem [#allocation2], 864
      %2398 = vst [vmem:[%s2397] sm:$0xff] %v2389
      %2399 = vst [vmem:[%s2397 + $0x8] sm:$0xff] %v2390
      %2400 = vst [vmem:[%s2397 + $0x10] sm:$0xff] %v2391
      %2401 = vst [vmem:[%s2397 + $0x18] sm:$0xff] %v2392
      %v2402 = vld [vmem:[%s224 + $0x10] sm:$0xff]
      %v2403 = vld [vmem:[%s224 + $0x18] sm:$0xff]
      %v2404 = vld [vmem:[%s224 + $0x20] sm:$0xf]
      %v2405 = vld [vmem:[%s224 + $0x38] sm:$0xff]
      %v2406 = vld [vmem:[%s224 + $0x40] sm:$0xff]
      %v2407 = vld [vmem:[%s224 + $0x48] sm:$0xf]
      %v2414 = vunpack.c.l.b16 %v2402
      %v2415 = vunpack.c.h.b16 %v2402
      %v2416 = vunpack.c.l.b16 %v2403
      %v2417 = vunpack.c.h.b16 %v2403
      %v2418 = vunpack.c.l.b16 %v2404
      %v2419 = vunpack.c.l.b16 %v2405
      %v2420 = vunpack.c.h.b16 %v2405
      %v2421 = vunpack.c.l.b16 %v2406
      %v2422 = vunpack.c.h.b16 %v2406
      %v2423 = vunpack.c.l.b16 %v2407
      %v2424 = vpack.c.b16 %v2419, %v2414
      %v2425 = vpack.c.b16 %v2420, %v2415
      %v2426 = vpack.c.b16 %v2421, %v2416
      %v2427 = vpack.c.b16 %v2422, %v2417
      %v2428 = vpack.c.b16 %v2423, %v2418
      %2429 = vrot.lane.b32.xlu0 %v2424, 127
      %v2430 = vpop.permute.xlu0 %2429
      %2431 = vrot.lane.b32.xlu0 %v2425, 127
      %v2432 = vpop.permute.xlu0 %2431
      %2433 = vrot.lane.b32.xlu0 %v2426, 127
      %v2434 = vpop.permute.xlu0 %2433
      %2435 = vrot.lane.b32.xlu0 %v2427, 127
      %v2436 = vpop.permute.xlu0 %2435
      %2437 = vrot.lane.b32.xlu0 %v2428, 127
      %v2438 = vpop.permute.xlu0 %2437
      %v2439 = vsel %vm301, %v2430, %v2432
      %v2440 = vsel %vm301, %v2432, %v2434
      %v2441 = vsel %vm301, %v2434, %v2436
      %v2442 = vsel %vm301, %v2436, %v2438
      %2447 = vst [vmem:[%s2397 + $0x20] sm:$0xff] %v2439
      %2448 = vst [vmem:[%s2397 + $0x28] sm:$0xff] %v2440
      %2449 = vst [vmem:[%s2397 + $0x30] sm:$0xff] %v2441
      %2450 = vst [vmem:[%s2397 + $0x38] sm:$0xff] %v2442
      %v2451 = vld [vmem:[%s224 + $0x10] sm:$0xff]
      %v2452 = vld [vmem:[%s224 + $0x18] sm:$0xff]
      %v2453 = vld [vmem:[%s224 + $0x20] sm:$0xf]
      %v2454 = vld [vmem:[%s224 + $0x38] sm:$0xff]
      %v2455 = vld [vmem:[%s224 + $0x40] sm:$0xff]
      %v2456 = vld [vmem:[%s224 + $0x48] sm:$0xf]
      %v2463 = vunpack.c.l.b16 %v2451
      %v2464 = vunpack.c.h.b16 %v2451
      %v2465 = vunpack.c.l.b16 %v2452
      %v2466 = vunpack.c.h.b16 %v2452
      %v2467 = vunpack.c.l.b16 %v2453
      %v2468 = vunpack.c.l.b16 %v2454
      %v2469 = vunpack.c.h.b16 %v2454
      %v2470 = vunpack.c.l.b16 %v2455
      %v2471 = vunpack.c.h.b16 %v2455
      %v2472 = vunpack.c.l.b16 %v2456
      %v2473 = vpack.c.b16 %v2468, %v2463
      %v2474 = vpack.c.b16 %v2469, %v2464
      %v2475 = vpack.c.b16 %v2470, %v2465
      %v2476 = vpack.c.b16 %v2471, %v2466
      %v2477 = vpack.c.b16 %v2472, %v2467
      %2478 = vrot.lane.b32.xlu0 %v2473, 126
      %v2479 = vpop.permute.xlu0 %2478
      %2480 = vrot.lane.b32.xlu0 %v2474, 126
      %v2481 = vpop.permute.xlu0 %2480
      %2482 = vrot.lane.b32.xlu0 %v2475, 126
      %v2483 = vpop.permute.xlu0 %2482
      %2484 = vrot.lane.b32.xlu0 %v2476, 126
      %v2485 = vpop.permute.xlu0 %2484
      %2486 = vrot.lane.b32.xlu0 %v2477, 126
      %v2487 = vpop.permute.xlu0 %2486
      %v2488 = vsel %vm351, %v2479, %v2481
      %v2489 = vsel %vm351, %v2481, %v2483
      %v2490 = vsel %vm351, %v2483, %v2485
      %v2491 = vsel %vm351, %v2485, %v2487
      %2496 = vst [vmem:[%s2397 + $0x40] sm:$0xff] %v2488
      %2497 = vst [vmem:[%s2397 + $0x48] sm:$0xff] %v2489
      %2498 = vst [vmem:[%s2397 + $0x50] sm:$0xff] %v2490
      %2499 = vst [vmem:[%s2397 + $0x58] sm:$0xff] %v2491
      %v2500 = vld [vmem:[%s224 + $0x10] sm:$0xff]
      %v2501 = vld [vmem:[%s224 + $0x18] sm:$0xff]
      %v2502 = vld [vmem:[%s224 + $0x20] sm:$0xf]
      %v2503 = vld [vmem:[%s224 + $0x38] sm:$0xff]
      %v2504 = vld [vmem:[%s224 + $0x40] sm:$0xff]
      %v2505 = vld [vmem:[%s224 + $0x48] sm:$0xf]
      %v2512 = vunpack.c.l.b16 %v2500
      %v2513 = vunpack.c.h.b16 %v2500
      %v2514 = vunpack.c.l.b16 %v2501
      %v2515 = vunpack.c.h.b16 %v2501
      %v2516 = vunpack.c.l.b16 %v2502
      %v2517 = vunpack.c.l.b16 %v2503
      %v2518 = vunpack.c.h.b16 %v2503
      %v2519 = vunpack.c.l.b16 %v2504
      %v2520 = vunpack.c.h.b16 %v2504
      %v2521 = vunpack.c.l.b16 %v2505
      %v2522 = vpack.c.b16 %v2517, %v2512
      %v2523 = vpack.c.b16 %v2518, %v2513
      %v2524 = vpack.c.b16 %v2519, %v2514
      %v2525 = vpack.c.b16 %v2520, %v2515
      %v2526 = vpack.c.b16 %v2521, %v2516
      %2527 = vrot.lane.b32.xlu0 %v2522, 118
      %v2528 = vpop.permute.xlu0 %2527
      %2529 = vrot.lane.b32.xlu0 %v2523, 118
      %v2530 = vpop.permute.xlu0 %2529
      %2531 = vrot.lane.b32.xlu0 %v2524, 118
      %v2532 = vpop.permute.xlu0 %2531
      %2533 = vrot.lane.b32.xlu0 %v2525, 118
      %v2534 = vpop.permute.xlu0 %2533
      %2535 = vrot.lane.b32.xlu0 %v2526, 118
      %v2536 = vpop.permute.xlu0 %2535
      %v2537 = vsel %vm401, %v2528, %v2530
      %v2538 = vsel %vm401, %v2530, %v2532
      %v2539 = vsel %vm401, %v2532, %v2534
      %v2540 = vsel %vm401, %v2534, %v2536
      %2545 = vst [vmem:[%s2397 + $0x60] sm:$0xff] %v2537
      %2546 = vst [vmem:[%s2397 + $0x68] sm:$0xff] %v2538
      %2547 = vst [vmem:[%s2397 + $0x70] sm:$0xff] %v2539
      %2548 = vst [vmem:[%s2397 + $0x78] sm:$0xff] %v2540
      %v2549 = vld [vmem:[%s224 + $0x10] sm:$0xff]
      %v2550 = vld [vmem:[%s224 + $0x18] sm:$0xff]
      %v2551 = vld [vmem:[%s224 + $0x20] sm:$0xf]
      %v2552 = vld [vmem:[%s224 + $0x38] sm:$0xff]
      %v2553 = vld [vmem:[%s224 + $0x40] sm:$0xff]
      %v2554 = vld [vmem:[%s224 + $0x48] sm:$0xf]
      %v2561 = vunpack.c.l.b16 %v2549
      %v2562 = vunpack.c.h.b16 %v2549
      %v2563 = vunpack.c.l.b16 %v2550
      %v2564 = vunpack.c.h.b16 %v2550
      %v2565 = vunpack.c.l.b16 %v2551
      %v2566 = vunpack.c.l.b16 %v2552
      %v2567 = vunpack.c.h.b16 %v2552
      %v2568 = vunpack.c.l.b16 %v2553
      %v2569 = vunpack.c.h.b16 %v2553
      %v2570 = vunpack.c.l.b16 %v2554
      %v2571 = vpack.c.b16 %v2566, %v2561
      %v2572 = vpack.c.b16 %v2567, %v2562
      %v2573 = vpack.c.b16 %v2568, %v2563
      %v2574 = vpack.c.b16 %v2569, %v2564
      %v2575 = vpack.c.b16 %v2570, %v2565
      %2576 = vrot.lane.b32.xlu0 %v2571, 117
      %v2577 = vpop.permute.xlu0 %2576
      %2578 = vrot.lane.b32.xlu0 %v2572, 117
      %v2579 = vpop.permute.xlu0 %2578
      %2580 = vrot.lane.b32.xlu0 %v2573, 117
      %v2581 = vpop.permute.xlu0 %2580
      %2582 = vrot.lane.b32.xlu0 %v2574, 117
      %v2583 = vpop.permute.xlu0 %2582
      %2584 = vrot.lane.b32.xlu0 %v2575, 117
      %v2585 = vpop.permute.xlu0 %2584
      %v2586 = vsel %vm451, %v2577, %v2579
      %v2587 = vsel %vm451, %v2579, %v2581
      %v2588 = vsel %vm451, %v2581, %v2583
      %v2589 = vsel %vm451, %v2583, %v2585
      %2594 = vst [vmem:[%s2397 + $0x80] sm:$0xff] %v2586
      %2595 = vst [vmem:[%s2397 + $0x88] sm:$0xff] %v2587
      %2596 = vst [vmem:[%s2397 + $0x90] sm:$0xff] %v2588
      %2597 = vst [vmem:[%s2397 + $0x98] sm:$0xff] %v2589
      %v2598 = vld [vmem:[%s224 + $0x10] sm:$0xff]
      %v2599 = vld [vmem:[%s224 + $0x18] sm:$0xff]
      %v2600 = vld [vmem:[%s224 + $0x20] sm:$0xf]
      %v2601 = vld [vmem:[%s224 + $0x38] sm:$0xff]
      %v2602 = vld [vmem:[%s224 + $0x40] sm:$0xff]
      %v2603 = vld [vmem:[%s224 + $0x48] sm:$0xf]
      %v2610 = vunpack.c.l.b16 %v2598
      %v2611 = vunpack.c.h.b16 %v2598
      %v2612 = vunpack.c.l.b16 %v2599
      %v2613 = vunpack.c.h.b16 %v2599
      %v2614 = vunpack.c.l.b16 %v2600
      %v2615 = vunpack.c.l.b16 %v2601
      %v2616 = vunpack.c.h.b16 %v2601
      %v2617 = vunpack.c.l.b16 %v2602
      %v2618 = vunpack.c.h.b16 %v2602
      %v2619 = vunpack.c.l.b16 %v2603
      %v2620 = vpack.c.b16 %v2615, %v2610
      %v2621 = vpack.c.b16 %v2616, %v2611
      %v2622 = vpack.c.b16 %v2617, %v2612
      %v2623 = vpack.c.b16 %v2618, %v2613
      %v2624 = vpack.c.b16 %v2619, %v2614
      %2625 = vrot.lane.b32.xlu0 %v2620, 116
      %v2626 = vpop.permute.xlu0 %2625
      %2627 = vrot.lane.b32.xlu0 %v2621, 116
      %v2628 = vpop.permute.xlu0 %2627
      %2629 = vrot.lane.b32.xlu0 %v2622, 116
      %v2630 = vpop.permute.xlu0 %2629
      %2631 = vrot.lane.b32.xlu0 %v2623, 116
      %v2632 = vpop.permute.xlu0 %2631
      %2633 = vrot.lane.b32.xlu0 %v2624, 116
      %v2634 = vpop.permute.xlu0 %2633
      %v2635 = vsel %vm501, %v2626, %v2628
      %v2636 = vsel %vm501, %v2628, %v2630
      %v2637 = vsel %vm501, %v2630, %v2632
      %v2638 = vsel %vm501, %v2632, %v2634
      %2643 = vst [vmem:[%s2397 + $0xa0] sm:$0xff] %v2635
      %2644 = vst [vmem:[%s2397 + $0xa8] sm:$0xff] %v2636
      %2645 = vst [vmem:[%s2397 + $0xb0] sm:$0xff] %v2637
      %2646 = vst [vmem:[%s2397 + $0xb8] sm:$0xff] %v2638
      %v2647 = vld [vmem:[%s224 + $0x10] sm:$0xff]
      %v2648 = vld [vmem:[%s224 + $0x18] sm:$0xff]
      %v2649 = vld [vmem:[%s224 + $0x20] sm:$0xf]
      %v2650 = vld [vmem:[%s224 + $0x38] sm:$0xff]
      %v2651 = vld [vmem:[%s224 + $0x40] sm:$0xff]
      %v2652 = vld [vmem:[%s224 + $0x48] sm:$0xf]
      %v2659 = vunpack.c.l.b16 %v2647
      %v2660 = vunpack.c.h.b16 %v2647
      %v2661 = vunpack.c.l.b16 %v2648
      %v2662 = vunpack.c.h.b16 %v2648
      %v2663 = vunpack.c.l.b16 %v2649
      %v2664 = vunpack.c.l.b16 %v2650
      %v2665 = vunpack.c.h.b16 %v2650
      %v2666 = vunpack.c.l.b16 %v2651
      %v2667 = vunpack.c.h.b16 %v2651
      %v2668 = vunpack.c.l.b16 %v2652
      %v2669 = vpack.c.b16 %v2664, %v2659
      %v2670 = vpack.c.b16 %v2665, %v2660
      %v2671 = vpack.c.b16 %v2666, %v2661
      %v2672 = vpack.c.b16 %v2667, %v2662
      %v2673 = vpack.c.b16 %v2668, %v2663
      %2674 = vrot.lane.b32.xlu0 %v2669, 108
      %v2675 = vpop.permute.xlu0 %2674
      %2676 = vrot.lane.b32.xlu0 %v2670, 108
      %v2677 = vpop.permute.xlu0 %2676
      %2678 = vrot.lane.b32.xlu0 %v2671, 108
      %v2679 = vpop.permute.xlu0 %2678
      %2680 = vrot.lane.b32.xlu0 %v2672, 108
      %v2681 = vpop.permute.xlu0 %2680
      %2682 = vrot.lane.b32.xlu0 %v2673, 108
      %v2683 = vpop.permute.xlu0 %2682
      %v2684 = vsel %vm551, %v2675, %v2677
      %v2685 = vsel %vm551, %v2677, %v2679
      %v2686 = vsel %vm551, %v2679, %v2681
      %v2687 = vsel %vm551, %v2681, %v2683
      %2692 = vst [vmem:[%s2397 + $0xc0] sm:$0xff] %v2684
      %2693 = vst [vmem:[%s2397 + $0xc8] sm:$0xff] %v2685
      %2694 = vst [vmem:[%s2397 + $0xd0] sm:$0xff] %v2686
      %2695 = vst [vmem:[%s2397 + $0xd8] sm:$0xff] %v2687
      %v2696 = vld [vmem:[%s224 + $0x10] sm:$0xff]
      %v2697 = vld [vmem:[%s224 + $0x18] sm:$0xff]
      %v2698 = vld [vmem:[%s224 + $0x20] sm:$0xf]
      %v2699 = vld [vmem:[%s224 + $0x38] sm:$0xff]
      %v2700 = vld [vmem:[%s224 + $0x40] sm:$0xff]
      %v2701 = vld [vmem:[%s224 + $0x48] sm:$0xf]
      %v2708 = vunpack.c.l.b16 %v2696
      %v2709 = vunpack.c.h.b16 %v2696
      %v2710 = vunpack.c.l.b16 %v2697
      %v2711 = vunpack.c.h.b16 %v2697
      %v2712 = vunpack.c.l.b16 %v2698
      %v2713 = vunpack.c.l.b16 %v2699
      %v2714 = vunpack.c.h.b16 %v2699
      %v2715 = vunpack.c.l.b16 %v2700
      %v2716 = vunpack.c.h.b16 %v2700
      %v2717 = vunpack.c.l.b16 %v2701
      %v2718 = vpack.c.b16 %v2713, %v2708
      %v2719 = vpack.c.b16 %v2714, %v2709
      %v2720 = vpack.c.b16 %v2715, %v2710
      %v2721 = vpack.c.b16 %v2716, %v2711
      %v2722 = vpack.c.b16 %v2717, %v2712
      %2723 = vrot.lane.b32.xlu0 %v2718, 107
      %v2724 = vpop.permute.xlu0 %2723
      %2725 = vrot.lane.b32.xlu0 %v2719, 107
      %v2726 = vpop.permute.xlu0 %2725
      %2727 = vrot.lane.b32.xlu0 %v2720, 107
      %v2728 = vpop.permute.xlu0 %2727
      %2729 = vrot.lane.b32.xlu0 %v2721, 107
      %v2730 = vpop.permute.xlu0 %2729
      %2731 = vrot.lane.b32.xlu0 %v2722, 107
      %v2732 = vpop.permute.xlu0 %2731
      %v2733 = vsel %vm601, %v2724, %v2726
      %v2734 = vsel %vm601, %v2726, %v2728
      %v2735 = vsel %vm601, %v2728, %v2730
      %v2736 = vsel %vm601, %v2730, %v2732
      %2741 = vst [vmem:[%s2397 + $0xe0] sm:$0xff] %v2733
      %2742 = vst [vmem:[%s2397 + $0xe8] sm:$0xff] %v2734
      %2743 = vst [vmem:[%s2397 + $0xf0] sm:$0xff] %v2735
      %2744 = vst [vmem:[%s2397 + $0xf8] sm:$0xff] %v2736
      %v2745 = vld [vmem:[%s224 + $0x10] sm:$0xff]
      %v2746 = vld [vmem:[%s224 + $0x18] sm:$0xff]
      %v2747 = vld [vmem:[%s224 + $0x20] sm:$0xf]
      %v2748 = vld [vmem:[%s224 + $0x38] sm:$0xff]
      %v2749 = vld [vmem:[%s224 + $0x40] sm:$0xff]
      %v2750 = vld [vmem:[%s224 + $0x48] sm:$0xf]
      %v2757 = vunpack.c.l.b16 %v2745
      %v2758 = vunpack.c.h.b16 %v2745
      %v2759 = vunpack.c.l.b16 %v2746
      %v2760 = vunpack.c.h.b16 %v2746
      %v2761 = vunpack.c.l.b16 %v2747
      %v2762 = vunpack.c.l.b16 %v2748
      %v2763 = vunpack.c.h.b16 %v2748
      %v2764 = vunpack.c.l.b16 %v2749
      %v2765 = vunpack.c.h.b16 %v2749
      %v2766 = vunpack.c.l.b16 %v2750
      %v2767 = vpack.c.b16 %v2762, %v2757
      %v2768 = vpack.c.b16 %v2763, %v2758
      %v2769 = vpack.c.b16 %v2764, %v2759
      %v2770 = vpack.c.b16 %v2765, %v2760
      %v2771 = vpack.c.b16 %v2766, %v2761
      %2772 = vrot.lane.b32.xlu0 %v2767, 106
      %v2773 = vpop.permute.xlu0 %2772
      %2774 = vrot.lane.b32.xlu0 %v2768, 106
      %v2775 = vpop.permute.xlu0 %2774
      %2776 = vrot.lane.b32.xlu0 %v2769, 106
      %v2777 = vpop.permute.xlu0 %2776
      %2778 = vrot.lane.b32.xlu0 %v2770, 106
      %v2779 = vpop.permute.xlu0 %2778
      %2780 = vrot.lane.b32.xlu0 %v2771, 106
      %v2781 = vpop.permute.xlu0 %2780
      %v2782 = vsel %vm651, %v2773, %v2775
      %v2783 = vsel %vm651, %v2775, %v2777
      %v2784 = vsel %vm651, %v2777, %v2779
      %v2785 = vsel %vm651, %v2779, %v2781
      %2790 = vst [vmem:[%s2397 + $0x100] sm:$0xff] %v2782
      %2791 = vst [vmem:[%s2397 + $0x108] sm:$0xff] %v2783
      %2792 = vst [vmem:[%s2397 + $0x110] sm:$0xff] %v2784
      %2793 = vst [vmem:[%s2397 + $0x118] sm:$0xff] %v2785
      %v2794 = vld [vmem:[%s224 + $0x10] sm:$0xff]
      %v2795 = vld [vmem:[%s224 + $0x18] sm:$0xff]
      %v2796 = vld [vmem:[%s224 + $0x20] sm:$0xf]
      %v2797 = vld [vmem:[%s224 + $0x38] sm:$0xff]
      %v2798 = vld [vmem:[%s224 + $0x40] sm:$0xff]
      %v2799 = vld [vmem:[%s224 + $0x48] sm:$0xf]
      %v2806 = vunpack.c.l.b16 %v2794
      %v2807 = vunpack.c.h.b16 %v2794
      %v2808 = vunpack.c.l.b16 %v2795
      %v2809 = vunpack.c.h.b16 %v2795
      %v2810 = vunpack.c.l.b16 %v2796
      %v2811 = vunpack.c.l.b16 %v2797
      %v2812 = vunpack.c.h.b16 %v2797
      %v2813 = vunpack.c.l.b16 %v2798
      %v2814 = vunpack.c.h.b16 %v2798
      %v2815 = vunpack.c.l.b16 %v2799
      %v2816 = vpack.c.b16 %v2811, %v2806
      %v2817 = vpack.c.b16 %v2812, %v2807
      %v2818 = vpack.c.b16 %v2813, %v2808
      %v2819 = vpack.c.b16 %v2814, %v2809
      %v2820 = vpack.c.b16 %v2815, %v2810
      %2821 = vrot.lane.b32.xlu0 %v2816, 28
      %v2822 = vpop.permute.xlu0 %2821
      %2823 = vrot.lane.b32.xlu0 %v2817, 28
      %v2824 = vpop.permute.xlu0 %2823
      %2825 = vrot.lane.b32.xlu0 %v2818, 28
      %v2826 = vpop.permute.xlu0 %2825
      %2827 = vrot.lane.b32.xlu0 %v2819, 28
      %v2828 = vpop.permute.xlu0 %2827
      %2829 = vrot.lane.b32.xlu0 %v2820, 28
      %v2830 = vpop.permute.xlu0 %2829
      %v2831 = vsel %vm701, %v2822, %v2824
      %v2832 = vsel %vm701, %v2824, %v2826
      %v2833 = vsel %vm701, %v2826, %v2828
      %v2834 = vsel %vm701, %v2828, %v2830
      %2839 = vst [vmem:[%s2397 + $0x120] sm:$0xff] %v2831
      %2840 = vst [vmem:[%s2397 + $0x128] sm:$0xff] %v2832
      %2841 = vst [vmem:[%s2397 + $0x130] sm:$0xff] %v2833
      %2842 = vst [vmem:[%s2397 + $0x138] sm:$0xff] %v2834
      %v2843 = vld [vmem:[%s224 + $0x10] sm:$0xff]
      %v2844 = vld [vmem:[%s224 + $0x18] sm:$0xff]
      %v2845 = vld [vmem:[%s224 + $0x20] sm:$0xf]
      %v2846 = vld [vmem:[%s224 + $0x38] sm:$0xff]
      %v2847 = vld [vmem:[%s224 + $0x40] sm:$0xff]
      %v2848 = vld [vmem:[%s224 + $0x48] sm:$0xf]
      %v2855 = vunpack.c.l.b16 %v2843
      %v2856 = vunpack.c.h.b16 %v2843
      %v2857 = vunpack.c.l.b16 %v2844
      %v2858 = vunpack.c.h.b16 %v2844
      %v2859 = vunpack.c.l.b16 %v2845
      %v2860 = vunpack.c.l.b16 %v2846
      %v2861 = vunpack.c.h.b16 %v2846
      %v2862 = vunpack.c.l.b16 %v2847
      %v2863 = vunpack.c.h.b16 %v2847
      %v2864 = vunpack.c.l.b16 %v2848
      %v2865 = vpack.c.b16 %v2860, %v2855
      %v2866 = vpack.c.b16 %v2861, %v2856
      %v2867 = vpack.c.b16 %v2862, %v2857
      %v2868 = vpack.c.b16 %v2863, %v2858
      %v2869 = vpack.c.b16 %v2864, %v2859
      %2870 = vrot.lane.b32.xlu0 %v2865, 27
      %v2871 = vpop.permute.xlu0 %2870
      %2872 = vrot.lane.b32.xlu0 %v2866, 27
      %v2873 = vpop.permute.xlu0 %2872
      %2874 = vrot.lane.b32.xlu0 %v2867, 27
      %v2875 = vpop.permute.xlu0 %2874
      %2876 = vrot.lane.b32.xlu0 %v2868, 27
      %v2877 = vpop.permute.xlu0 %2876
      %2878 = vrot.lane.b32.xlu0 %v2869, 27
      %v2879 = vpop.permute.xlu0 %2878
      %v2880 = vsel %vm751, %v2871, %v2873
      %v2881 = vsel %vm751, %v2873, %v2875
      %v2882 = vsel %vm751, %v2875, %v2877
      %v2883 = vsel %vm751, %v2877, %v2879
      %2888 = vst [vmem:[%s2397 + $0x140] sm:$0xff] %v2880
      %2889 = vst [vmem:[%s2397 + $0x148] sm:$0xff] %v2881
      %2890 = vst [vmem:[%s2397 + $0x150] sm:$0xff] %v2882
      %2891 = vst [vmem:[%s2397 + $0x158] sm:$0xff] %v2883
      %v2892 = vld [vmem:[%s224 + $0x10] sm:$0xff]
      %v2893 = vld [vmem:[%s224 + $0x18] sm:$0xff]
      %v2894 = vld [vmem:[%s224 + $0x20] sm:$0xf]
      %v2895 = vld [vmem:[%s224 + $0x38] sm:$0xff]
      %v2896 = vld [vmem:[%s224 + $0x40] sm:$0xff]
      %v2897 = vld [vmem:[%s224 + $0x48] sm:$0xf]
      %v2904 = vunpack.c.l.b16 %v2892
      %v2905 = vunpack.c.h.b16 %v2892
      %v2906 = vunpack.c.l.b16 %v2893
      %v2907 = vunpack.c.h.b16 %v2893
      %v2908 = vunpack.c.l.b16 %v2894
      %v2909 = vunpack.c.l.b16 %v2895
      %v2910 = vunpack.c.h.b16 %v2895
      %v2911 = vunpack.c.l.b16 %v2896
      %v2912 = vunpack.c.h.b16 %v2896
      %v2913 = vunpack.c.l.b16 %v2897
      %v2914 = vpack.c.b16 %v2909, %v2904
      %v2915 = vpack.c.b16 %v2910, %v2905
      %v2916 = vpack.c.b16 %v2911, %v2906
      %v2917 = vpack.c.b16 %v2912, %v2907
      %v2918 = vpack.c.b16 %v2913, %v2908
      %2919 = vrot.lane.b32.xlu0 %v2914, 26
      %v2920 = vpop.permute.xlu0 %2919
      %2921 = vrot.lane.b32.xlu0 %v2915, 26
      %v2922 = vpop.permute.xlu0 %2921
      %2923 = vrot.lane.b32.xlu0 %v2916, 26
      %v2924 = vpop.permute.xlu0 %2923
      %2925 = vrot.lane.b32.xlu0 %v2917, 26
      %v2926 = vpop.permute.xlu0 %2925
      %2927 = vrot.lane.b32.xlu0 %v2918, 26
      %v2928 = vpop.permute.xlu0 %2927
      %v2929 = vsel %vm801, %v2920, %v2922
      %v2930 = vsel %vm801, %v2922, %v2924
      %v2931 = vsel %vm801, %v2924, %v2926
      %v2932 = vsel %vm801, %v2926, %v2928
      %2937 = vst [vmem:[%s2397 + $0x160] sm:$0xff] %v2929
      %2938 = vst [vmem:[%s2397 + $0x168] sm:$0xff] %v2930
      %2939 = vst [vmem:[%s2397 + $0x170] sm:$0xff] %v2931
      %2940 = vst [vmem:[%s2397 + $0x178] sm:$0xff] %v2932
      %v2941 = vld [vmem:[%s224 + $0x10] sm:$0xff]
      %v2942 = vld [vmem:[%s224 + $0x18] sm:$0xff]
      %v2943 = vld [vmem:[%s224 + $0x20] sm:$0xf]
      %v2944 = vld [vmem:[%s224 + $0x38] sm:$0xff]
      %v2945 = vld [vmem:[%s224 + $0x40] sm:$0xff]
      %v2946 = vld [vmem:[%s224 + $0x48] sm:$0xf]
      %v2953 = vunpack.c.l.b16 %v2941
      %v2954 = vunpack.c.h.b16 %v2941
      %v2955 = vunpack.c.l.b16 %v2942
      %v2956 = vunpack.c.h.b16 %v2942
      %v2957 = vunpack.c.l.b16 %v2943
      %v2958 = vunpack.c.l.b16 %v2944
      %v2959 = vunpack.c.h.b16 %v2944
      %v2960 = vunpack.c.l.b16 %v2945
      %v2961 = vunpack.c.h.b16 %v2945
      %v2962 = vunpack.c.l.b16 %v2946
      %v2963 = vpack.c.b16 %v2958, %v2953
      %v2964 = vpack.c.b16 %v2959, %v2954
      %v2965 = vpack.c.b16 %v2960, %v2955
      %v2966 = vpack.c.b16 %v2961, %v2956
      %v2967 = vpack.c.b16 %v2962, %v2957
      %2968 = vrot.lane.b32.xlu0 %v2963, 18
      %v2969 = vpop.permute.xlu0 %2968
      %2970 = vrot.lane.b32.xlu0 %v2964, 18
      %v2971 = vpop.permute.xlu0 %2970
      %2972 = vrot.lane.b32.xlu0 %v2965, 18
      %v2973 = vpop.permute.xlu0 %2972
      %2974 = vrot.lane.b32.xlu0 %v2966, 18
      %v2975 = vpop.permute.xlu0 %2974
      %2976 = vrot.lane.b32.xlu0 %v2967, 18
      %v2977 = vpop.permute.xlu0 %2976
      %v2978 = vsel %vm851, %v2969, %v2971
      %v2979 = vsel %vm851, %v2971, %v2973
      %v2980 = vsel %vm851, %v2973, %v2975
      %v2981 = vsel %vm851, %v2975, %v2977
      %2986 = vst [vmem:[%s2397 + $0x180] sm:$0xff] %v2978
      %2987 = vst [vmem:[%s2397 + $0x188] sm:$0xff] %v2979
      %2988 = vst [vmem:[%s2397 + $0x190] sm:$0xff] %v2980
      %2989 = vst [vmem:[%s2397 + $0x198] sm:$0xff] %v2981
      %v2990 = vld [vmem:[%s224 + $0x10] sm:$0xff]
      %v2991 = vld [vmem:[%s224 + $0x18] sm:$0xff]
      %v2992 = vld [vmem:[%s224 + $0x20] sm:$0xf]
      %v2993 = vld [vmem:[%s224 + $0x38] sm:$0xff]
      %v2994 = vld [vmem:[%s224 + $0x40] sm:$0xff]
      %v2995 = vld [vmem:[%s224 + $0x48] sm:$0xf]
      %v3002 = vunpack.c.l.b16 %v2990
      %v3003 = vunpack.c.h.b16 %v2990
      %v3004 = vunpack.c.l.b16 %v2991
      %v3005 = vunpack.c.h.b16 %v2991
      %v3006 = vunpack.c.l.b16 %v2992
      %v3007 = vunpack.c.l.b16 %v2993
      %v3008 = vunpack.c.h.b16 %v2993
      %v3009 = vunpack.c.l.b16 %v2994
      %v3010 = vunpack.c.h.b16 %v2994
      %v3011 = vunpack.c.l.b16 %v2995
      %v3012 = vpack.c.b16 %v3007, %v3002
      %v3013 = vpack.c.b16 %v3008, %v3003
      %v3014 = vpack.c.b16 %v3009, %v3004
      %v3015 = vpack.c.b16 %v3010, %v3005
      %v3016 = vpack.c.b16 %v3011, %v3006
      %3017 = vrot.lane.b32.xlu0 %v3012, 17
      %v3018 = vpop.permute.xlu0 %3017
      %3019 = vrot.lane.b32.xlu0 %v3013, 17
      %v3020 = vpop.permute.xlu0 %3019
      %3021 = vrot.lane.b32.xlu0 %v3014, 17
      %v3022 = vpop.permute.xlu0 %3021
      %3023 = vrot.lane.b32.xlu0 %v3015, 17
      %v3024 = vpop.permute.xlu0 %3023
      %3025 = vrot.lane.b32.xlu0 %v3016, 17
      %v3026 = vpop.permute.xlu0 %3025
      %v3027 = vsel %vm901, %v3018, %v3020
      %v3028 = vsel %vm901, %v3020, %v3022
      %v3029 = vsel %vm901, %v3022, %v3024
      %v3030 = vsel %vm901, %v3024, %v3026
      %3035 = vst [vmem:[%s2397 + $0x1a0] sm:$0xff] %v3027
      %3036 = vst [vmem:[%s2397 + $0x1a8] sm:$0xff] %v3028
      %3037 = vst [vmem:[%s2397 + $0x1b0] sm:$0xff] %v3029
      %3038 = vst [vmem:[%s2397 + $0x1b8] sm:$0xff] %v3030
      %v3039 = vld [vmem:[%s224 + $0x10] sm:$0xff]
      %v3040 = vld [vmem:[%s224 + $0x18] sm:$0xff]
      %v3041 = vld [vmem:[%s224 + $0x20] sm:$0xf]
      %v3042 = vld [vmem:[%s224 + $0x38] sm:$0xff]
      %v3043 = vld [vmem:[%s224 + $0x40] sm:$0xff]
      %v3044 = vld [vmem:[%s224 + $0x48] sm:$0xf]
      %v3051 = vunpack.c.l.b16 %v3039
      %v3052 = vunpack.c.h.b16 %v3039
      %v3053 = vunpack.c.l.b16 %v3040
      %v3054 = vunpack.c.h.b16 %v3040
      %v3055 = vunpack.c.l.b16 %v3041
      %v3056 = vunpack.c.l.b16 %v3042
      %v3057 = vunpack.c.h.b16 %v3042
      %v3058 = vunpack.c.l.b16 %v3043
      %v3059 = vunpack.c.h.b16 %v3043
      %v3060 = vunpack.c.l.b16 %v3044
      %v3061 = vpack.c.b16 %v3056, %v3051
      %v3062 = vpack.c.b16 %v3057, %v3052
      %v3063 = vpack.c.b16 %v3058, %v3053
      %v3064 = vpack.c.b16 %v3059, %v3054
      %v3065 = vpack.c.b16 %v3060, %v3055
      %3066 = vrot.lane.b32.xlu0 %v3061, 16
      %v3067 = vpop.permute.xlu0 %3066
      %3068 = vrot.lane.b32.xlu0 %v3062, 16
      %v3069 = vpop.permute.xlu0 %3068
      %3070 = vrot.lane.b32.xlu0 %v3063, 16
      %v3071 = vpop.permute.xlu0 %3070
      %3072 = vrot.lane.b32.xlu0 %v3064, 16
      %v3073 = vpop.permute.xlu0 %3072
      %3074 = vrot.lane.b32.xlu0 %v3065, 16
      %v3075 = vpop.permute.xlu0 %3074
      %v3076 = vsel %vm951, %v3067, %v3069
      %v3077 = vsel %vm951, %v3069, %v3071
      %v3078 = vsel %vm951, %v3071, %v3073
      %v3079 = vsel %vm951, %v3073, %v3075
      %3084 = vst [vmem:[%s2397 + $0x1c0] sm:$0xff] %v3076
      %3085 = vst [vmem:[%s2397 + $0x1c8] sm:$0xff] %v3077
      %3086 = vst [vmem:[%s2397 + $0x1d0] sm:$0xff] %v3078
      %3087 = vst [vmem:[%s2397 + $0x1d8] sm:$0xff] %v3079
      %v3088 = vld [vmem:[%s224 + $0x10] sm:$0xff]
      %v3089 = vld [vmem:[%s224 + $0x18] sm:$0xff]
      %v3090 = vld [vmem:[%s224 + $0x20] sm:$0xf]
      %v3091 = vld [vmem:[%s224 + $0x38] sm:$0xff]
      %v3092 = vld [vmem:[%s224 + $0x40] sm:$0xff]
      %v3093 = vld [vmem:[%s224 + $0x48] sm:$0xf]
      %v3100 = vunpack.c.l.b16 %v3088
      %v3101 = vunpack.c.h.b16 %v3088
      %v3102 = vunpack.c.l.b16 %v3089
      %v3103 = vunpack.c.h.b16 %v3089
      %v3104 = vunpack.c.l.b16 %v3090
      %v3105 = vunpack.c.l.b16 %v3091
      %v3106 = vunpack.c.h.b16 %v3091
      %v3107 = vunpack.c.l.b16 %v3092
      %v3108 = vunpack.c.h.b16 %v3092
      %v3109 = vunpack.c.l.b16 %v3093
      %v3110 = vpack.c.b16 %v3105, %v3100
      %v3111 = vpack.c.b16 %v3106, %v3101
      %v3112 = vpack.c.b16 %v3107, %v3102
      %v3113 = vpack.c.b16 %v3108, %v3103
      %v3114 = vpack.c.b16 %v3109, %v3104
      %3115 = vrot.lane.b32.xlu0 %v3110, 8
      %v3116 = vpop.permute.xlu0 %3115
      %3117 = vrot.lane.b32.xlu0 %v3111, 8
      %v3118 = vpop.permute.xlu0 %3117
      %3119 = vrot.lane.b32.xlu0 %v3112, 8
      %v3120 = vpop.permute.xlu0 %3119
      %3121 = vrot.lane.b32.xlu0 %v3113, 8
      %v3122 = vpop.permute.xlu0 %3121
      %3123 = vrot.lane.b32.xlu0 %v3114, 8
      %v3124 = vpop.permute.xlu0 %3123
      %v3125 = vsel %vm1001, %v3116, %v3118
      %v3126 = vsel %vm1001, %v3118, %v3120
      %v3127 = vsel %vm1001, %v3120, %v3122
      %v3128 = vsel %vm1001, %v3122, %v3124
      %3133 = vst [vmem:[%s2397 + $0x1e0] sm:$0xff] %v3125
      %3134 = vst [vmem:[%s2397 + $0x1e8] sm:$0xff] %v3126
      %3135 = vst [vmem:[%s2397 + $0x1f0] sm:$0xff] %v3127
      %3136 = vst [vmem:[%s2397 + $0x1f8] sm:$0xff] %v3128
      %v3137 = vld [vmem:[%s224 + $0x10] sm:$0xff]
      %v3138 = vld [vmem:[%s224 + $0x18] sm:$0xff]
      %v3139 = vld [vmem:[%s224 + $0x20] sm:$0xf]
      %v3140 = vld [vmem:[%s224 + $0x38] sm:$0xff]
      %v3141 = vld [vmem:[%s224 + $0x40] sm:$0xff]
      %v3142 = vld [vmem:[%s224 + $0x48] sm:$0xf]
      %v3149 = vunpack.c.l.b16 %v3137
      %v3150 = vunpack.c.h.b16 %v3137
      %v3151 = vunpack.c.l.b16 %v3138
      %v3152 = vunpack.c.h.b16 %v3138
      %v3153 = vunpack.c.l.b16 %v3139
      %v3154 = vunpack.c.l.b16 %v3140
      %v3155 = vunpack.c.h.b16 %v3140
      %v3156 = vunpack.c.l.b16 %v3141
      %v3157 = vunpack.c.h.b16 %v3141
      %v3158 = vunpack.c.l.b16 %v3142
      %v3159 = vpack.c.b16 %v3154, %v3149
      %v3160 = vpack.c.b16 %v3155, %v3150
      %v3161 = vpack.c.b16 %v3156, %v3151
      %v3162 = vpack.c.b16 %v3157, %v3152
      %v3163 = vpack.c.b16 %v3158, %v3153
      %3164 = vrot.lane.b32.xlu0 %v3159, 7
      %v3165 = vpop.permute.xlu0 %3164
      %3166 = vrot.lane.b32.xlu0 %v3160, 7
      %v3167 = vpop.permute.xlu0 %3166
      %3168 = vrot.lane.b32.xlu0 %v3161, 7
      %v3169 = vpop.permute.xlu0 %3168
      %3170 = vrot.lane.b32.xlu0 %v3162, 7
      %v3171 = vpop.permute.xlu0 %3170
      %3172 = vrot.lane.b32.xlu0 %v3163, 7
      %v3173 = vpop.permute.xlu0 %3172
      %v3174 = vsel %vm1051, %v3165, %v3167
      %v3175 = vsel %vm1051, %v3167, %v3169
      %v3176 = vsel %vm1051, %v3169, %v3171
      %v3177 = vsel %vm1051, %v3171, %v3173
      %3182 = vst [vmem:[%s2397 + $0x200] sm:$0xff] %v3174
      %3183 = vst [vmem:[%s2397 + $0x208] sm:$0xff] %v3175
      %3184 = vst [vmem:[%s2397 + $0x210] sm:$0xff] %v3176
      %3185 = vst [vmem:[%s2397 + $0x218] sm:$0xff] %v3177
      %v3186 = vld [vmem:[%s224 + $0x10] sm:$0xff]
      %v3187 = vld [vmem:[%s224 + $0x18] sm:$0xff]
      %v3188 = vld [vmem:[%s224 + $0x20] sm:$0xf]
      %v3189 = vld [vmem:[%s224 + $0x38] sm:$0xff]
      %v3190 = vld [vmem:[%s224 + $0x40] sm:$0xff]
      %v3191 = vld [vmem:[%s224 + $0x48] sm:$0xf]
      %v3198 = vunpack.c.l.b16 %v3186
      %v3199 = vunpack.c.h.b16 %v3186
      %v3200 = vunpack.c.l.b16 %v3187
      %v3201 = vunpack.c.h.b16 %v3187
      %v3202 = vunpack.c.l.b16 %v3188
      %v3203 = vunpack.c.l.b16 %v3189
      %v3204 = vunpack.c.h.b16 %v3189
      %v3205 = vunpack.c.l.b16 %v3190
      %v3206 = vunpack.c.h.b16 %v3190
      %v3207 = vunpack.c.l.b16 %v3191
      %v3208 = vpack.c.b16 %v3203, %v3198
      %v3209 = vpack.c.b16 %v3204, %v3199
      %v3210 = vpack.c.b16 %v3205, %v3200
      %v3211 = vpack.c.b16 %v3206, %v3201
      %v3212 = vpack.c.b16 %v3207, %v3202
      %3213 = vrot.lane.b32.xlu0 %v3208, 6
      %v3214 = vpop.permute.xlu0 %3213
      %3215 = vrot.lane.b32.xlu0 %v3209, 6
      %v3216 = vpop.permute.xlu0 %3215
      %3217 = vrot.lane.b32.xlu0 %v3210, 6
      %v3218 = vpop.permute.xlu0 %3217
      %3219 = vrot.lane.b32.xlu0 %v3211, 6
      %v3220 = vpop.permute.xlu0 %3219
      %3221 = vrot.lane.b32.xlu0 %v3212, 6
      %v3222 = vpop.permute.xlu0 %3221
      %v3223 = vsel %vm1101, %v3214, %v3216
      %v3224 = vsel %vm1101, %v3216, %v3218
      %v3225 = vsel %vm1101, %v3218, %v3220
      %v3226 = vsel %vm1101, %v3220, %v3222
      %3231 = vst [vmem:[%s2397 + $0x220] sm:$0xff] %v3223
      %3232 = vst [vmem:[%s2397 + $0x228] sm:$0xff] %v3224
      %3233 = vst [vmem:[%s2397 + $0x230] sm:$0xff] %v3225
      %3234 = vst [vmem:[%s2397 + $0x238] sm:$0xff] %v3226
      %v3235 = vld [vmem:[%s224 + $0x14] sm:$0xff]
      %v3236 = vld [vmem:[%s224 + $0x1c] sm:$0xff]
      %v3237 = vld [vmem:[%s224 + $0x24] sm:$0xf]
      %v3238 = vld [vmem:[%s224 + $0x3c] sm:$0xff]
      %v3239 = vld [vmem:[%s224 + $0x44] sm:$0xff]
      %v3240 = vld [vmem:[%s224 + $0x4c] sm:$0xf]
      %v3247 = vunpack.c.l.b16 %v3235
      %v3248 = vunpack.c.h.b16 %v3235
      %v3249 = vunpack.c.l.b16 %v3236
      %v3250 = vunpack.c.h.b16 %v3236
      %v3251 = vunpack.c.l.b16 %v3237
      %v3252 = vunpack.c.l.b16 %v3238
      %v3253 = vunpack.c.h.b16 %v3238
      %v3254 = vunpack.c.l.b16 %v3239
      %v3255 = vunpack.c.h.b16 %v3239
      %v3256 = vunpack.c.l.b16 %v3240
      %v3257 = vpack.c.b16 %v3252, %v3247
      %v3258 = vpack.c.b16 %v3253, %v3248
      %v3259 = vpack.c.b16 %v3254, %v3249
      %v3260 = vpack.c.b16 %v3255, %v3250
      %v3261 = vpack.c.b16 %v3256, %v3251
      %3262 = vrot.lane.b32.xlu0 %v3257, 56
      %v3263 = vpop.permute.xlu0 %3262
      %3264 = vrot.lane.b32.xlu0 %v3258, 56
      %v3265 = vpop.permute.xlu0 %3264
      %3266 = vrot.lane.b32.xlu0 %v3259, 56
      %v3267 = vpop.permute.xlu0 %3266
      %3268 = vrot.lane.b32.xlu0 %v3260, 56
      %v3269 = vpop.permute.xlu0 %3268
      %3270 = vrot.lane.b32.xlu0 %v3261, 56
      %v3271 = vpop.permute.xlu0 %3270
      %v3272 = vsel %vm1151, %v3263, %v3265
      %v3273 = vsel %vm1151, %v3265, %v3267
      %v3274 = vsel %vm1151, %v3267, %v3269
      %v3275 = vsel %vm1151, %v3269, %v3271
      %3280 = vst [vmem:[%s2397 + $0x240] sm:$0xff] %v3272
      %3281 = vst [vmem:[%s2397 + $0x248] sm:$0xff] %v3273
      %3282 = vst [vmem:[%s2397 + $0x250] sm:$0xff] %v3274
      %3283 = vst [vmem:[%s2397 + $0x258] sm:$0xff] %v3275
      %v3284 = vld [vmem:[%s224 + $0x14] sm:$0xff]
      %v3285 = vld [vmem:[%s224 + $0x1c] sm:$0xff]
      %v3286 = vld [vmem:[%s224 + $0x24] sm:$0xf]
      %v3287 = vld [vmem:[%s224 + $0x3c] sm:$0xff]
      %v3288 = vld [vmem:[%s224 + $0x44] sm:$0xff]
      %v3289 = vld [vmem:[%s224 + $0x4c] sm:$0xf]
      %v3296 = vunpack.c.l.b16 %v3284
      %v3297 = vunpack.c.h.b16 %v3284
      %v3298 = vunpack.c.l.b16 %v3285
      %v3299 = vunpack.c.h.b16 %v3285
      %v3300 = vunpack.c.l.b16 %v3286
      %v3301 = vunpack.c.l.b16 %v3287
      %v3302 = vunpack.c.h.b16 %v3287
      %v3303 = vunpack.c.l.b16 %v3288
      %v3304 = vunpack.c.h.b16 %v3288
      %v3305 = vunpack.c.l.b16 %v3289
      %v3306 = vpack.c.b16 %v3301, %v3296
      %v3307 = vpack.c.b16 %v3302, %v3297
      %v3308 = vpack.c.b16 %v3303, %v3298
      %v3309 = vpack.c.b16 %v3304, %v3299
      %v3310 = vpack.c.b16 %v3305, %v3300
      %3311 = vrot.lane.b32.xlu0 %v3306, 55
      %v3312 = vpop.permute.xlu0 %3311
      %3313 = vrot.lane.b32.xlu0 %v3307, 55
      %v3314 = vpop.permute.xlu0 %3313
      %3315 = vrot.lane.b32.xlu0 %v3308, 55
      %v3316 = vpop.permute.xlu0 %3315
      %3317 = vrot.lane.b32.xlu0 %v3309, 55
      %v3318 = vpop.permute.xlu0 %3317
      %3319 = vrot.lane.b32.xlu0 %v3310, 55
      %v3320 = vpop.permute.xlu0 %3319
      %v3321 = vsel %vm1201, %v3312, %v3314
      %v3322 = vsel %vm1201, %v3314, %v3316
      %v3323 = vsel %vm1201, %v3316, %v3318
      %v3324 = vsel %vm1201, %v3318, %v3320
      %3329 = vst [vmem:[%s2397 + $0x260] sm:$0xff] %v3321
      %3330 = vst [vmem:[%s2397 + $0x268] sm:$0xff] %v3322
      %3331 = vst [vmem:[%s2397 + $0x270] sm:$0xff] %v3323
      %3332 = vst [vmem:[%s2397 + $0x278] sm:$0xff] %v3324
      %v3333 = vld [vmem:[%s224 + $0x14] sm:$0xff]
      %v3334 = vld [vmem:[%s224 + $0x1c] sm:$0xff]
      %v3335 = vld [vmem:[%s224 + $0x24] sm:$0xf]
      %v3336 = vld [vmem:[%s224 + $0x3c] sm:$0xff]
      %v3337 = vld [vmem:[%s224 + $0x44] sm:$0xff]
      %v3338 = vld [vmem:[%s224 + $0x4c] sm:$0xf]
      %v3345 = vunpack.c.l.b16 %v3333
      %v3346 = vunpack.c.h.b16 %v3333
      %v3347 = vunpack.c.l.b16 %v3334
      %v3348 = vunpack.c.h.b16 %v3334
      %v3349 = vunpack.c.l.b16 %v3335
      %v3350 = vunpack.c.l.b16 %v3336
      %v3351 = vunpack.c.h.b16 %v3336
      %v3352 = vunpack.c.l.b16 %v3337
      %v3353 = vunpack.c.h.b16 %v3337
      %v3354 = vunpack.c.l.b16 %v3338
      %v3355 = vpack.c.b16 %v3350, %v3345
      %v3356 = vpack.c.b16 %v3351, %v3346
      %v3357 = vpack.c.b16 %v3352, %v3347
      %v3358 = vpack.c.b16 %v3353, %v3348
      %v3359 = vpack.c.b16 %v3354, %v3349
      %3360 = vrot.lane.b32.xlu0 %v3355, 54
      %v3361 = vpop.permute.xlu0 %3360
      %3362 = vrot.lane.b32.xlu0 %v3356, 54
      %v3363 = vpop.permute.xlu0 %3362
      %3364 = vrot.lane.b32.xlu0 %v3357, 54
      %v3365 = vpop.permute.xlu0 %3364
      %3366 = vrot.lane.b32.xlu0 %v3358, 54
      %v3367 = vpop.permute.xlu0 %3366
      %3368 = vrot.lane.b32.xlu0 %v3359, 54
      %v3369 = vpop.permute.xlu0 %3368
      %v3370 = vsel %vm1251, %v3361, %v3363
      %v3371 = vsel %vm1251, %v3363, %v3365
      %v3372 = vsel %vm1251, %v3365, %v3367
      %v3373 = vsel %vm1251, %v3367, %v3369
      %3378 = vst [vmem:[%s2397 + $0x280] sm:$0xff] %v3370
      %3379 = vst [vmem:[%s2397 + $0x288] sm:$0xff] %v3371
      %3380 = vst [vmem:[%s2397 + $0x290] sm:$0xff] %v3372
      %3381 = vst [vmem:[%s2397 + $0x298] sm:$0xff] %v3373
      %v3382 = vld [vmem:[%s224 + $0x14] sm:$0xff]
      %v3383 = vld [vmem:[%s224 + $0x1c] sm:$0xff]
      %v3384 = vld [vmem:[%s224 + $0x24] sm:$0xf]
      %v3385 = vld [vmem:[%s224 + $0x3c] sm:$0xff]
      %v3386 = vld [vmem:[%s224 + $0x44] sm:$0xff]
      %v3387 = vld [vmem:[%s224 + $0x4c] sm:$0xf]
      %v3394 = vunpack.c.l.b16 %v3382
      %v3395 = vunpack.c.h.b16 %v3382
      %v3396 = vunpack.c.l.b16 %v3383
      %v3397 = vunpack.c.h.b16 %v3383
      %v3398 = vunpack.c.l.b16 %v3384
      %v3399 = vunpack.c.l.b16 %v3385
      %v3400 = vunpack.c.h.b16 %v3385
      %v3401 = vunpack.c.l.b16 %v3386
      %v3402 = vunpack.c.h.b16 %v3386
      %v3403 = vunpack.c.l.b16 %v3387
      %v3404 = vpack.c.b16 %v3399, %v3394
      %v3405 = vpack.c.b16 %v3400, %v3395
      %v3406 = vpack.c.b16 %v3401, %v3396
      %v3407 = vpack.c.b16 %v3402, %v3397
      %v3408 = vpack.c.b16 %v3403, %v3398
      %3409 = vrot.lane.b32.xlu0 %v3404, 46
      %v3410 = vpop.permute.xlu0 %3409
      %3411 = vrot.lane.b32.xlu0 %v3405, 46
      %v3412 = vpop.permute.xlu0 %3411
      %3413 = vrot.lane.b32.xlu0 %v3406, 46
      %v3414 = vpop.permute.xlu0 %3413
      %3415 = vrot.lane.b32.xlu0 %v3407, 46
      %v3416 = vpop.permute.xlu0 %3415
      %3417 = vrot.lane.b32.xlu0 %v3408, 46
      %v3418 = vpop.permute.xlu0 %3417
      %v3419 = vsel %vm1301, %v3410, %v3412
      %v3420 = vsel %vm1301, %v3412, %v3414
      %v3421 = vsel %vm1301, %v3414, %v3416
      %v3422 = vsel %vm1301, %v3416, %v3418
      %3427 = vst [vmem:[%s2397 + $0x2a0] sm:$0xff] %v3419
      %3428 = vst [vmem:[%s2397 + $0x2a8] sm:$0xff] %v3420
      %3429 = vst [vmem:[%s2397 + $0x2b0] sm:$0xff] %v3421
      %3430 = vst [vmem:[%s2397 + $0x2b8] sm:$0xff] %v3422
      %v3431 = vld [vmem:[%s224 + $0x14] sm:$0xff]
      %v3432 = vld [vmem:[%s224 + $0x1c] sm:$0xff]
      %v3433 = vld [vmem:[%s224 + $0x24] sm:$0xf]
      %v3434 = vld [vmem:[%s224 + $0x3c] sm:$0xff]
      %v3435 = vld [vmem:[%s224 + $0x44] sm:$0xff]
      %v3436 = vld [vmem:[%s224 + $0x4c] sm:$0xf]
      %v3443 = vunpack.c.l.b16 %v3431
      %v3444 = vunpack.c.h.b16 %v3431
      %v3445 = vunpack.c.l.b16 %v3432
      %v3446 = vunpack.c.h.b16 %v3432
      %v3447 = vunpack.c.l.b16 %v3433
      %v3448 = vunpack.c.l.b16 %v3434
      %v3449 = vunpack.c.h.b16 %v3434
      %v3450 = vunpack.c.l.b16 %v3435
      %v3451 = vunpack.c.h.b16 %v3435
      %v3452 = vunpack.c.l.b16 %v3436
      %v3453 = vpack.c.b16 %v3448, %v3443
      %v3454 = vpack.c.b16 %v3449, %v3444
      %v3455 = vpack.c.b16 %v3450, %v3445
      %v3456 = vpack.c.b16 %v3451, %v3446
      %v3457 = vpack.c.b16 %v3452, %v3447
      %3458 = vrot.lane.b32.xlu0 %v3453, 45
      %v3459 = vpop.permute.xlu0 %3458
      %3460 = vrot.lane.b32.xlu0 %v3454, 45
      %v3461 = vpop.permute.xlu0 %3460
      %3462 = vrot.lane.b32.xlu0 %v3455, 45
      %v3463 = vpop.permute.xlu0 %3462
      %3464 = vrot.lane.b32.xlu0 %v3456, 45
      %v3465 = vpop.permute.xlu0 %3464
      %3466 = vrot.lane.b32.xlu0 %v3457, 45
      %v3467 = vpop.permute.xlu0 %3466
      %v3468 = vsel %vm1351, %v3459, %v3461
      %v3469 = vsel %vm1351, %v3461, %v3463
      %v3470 = vsel %vm1351, %v3463, %v3465
      %v3471 = vsel %vm1351, %v3465, %v3467
      %3476 = vst [vmem:[%s2397 + $0x2c0] sm:$0xff] %v3468
      %3477 = vst [vmem:[%s2397 + $0x2c8] sm:$0xff] %v3469
      %3478 = vst [vmem:[%s2397 + $0x2d0] sm:$0xff] %v3470
      %3479 = vst [vmem:[%s2397 + $0x2d8] sm:$0xff] %v3471
      %v3480 = vld [vmem:[%s224 + $0x14] sm:$0xff]
      %v3481 = vld [vmem:[%s224 + $0x1c] sm:$0xff]
      %v3482 = vld [vmem:[%s224 + $0x24] sm:$0xf]
      %v3483 = vld [vmem:[%s224 + $0x3c] sm:$0xff]
      %v3484 = vld [vmem:[%s224 + $0x44] sm:$0xff]
      %v3485 = vld [vmem:[%s224 + $0x4c] sm:$0xf]
      %v3492 = vunpack.c.l.b16 %v3480
      %v3493 = vunpack.c.h.b16 %v3480
      %v3494 = vunpack.c.l.b16 %v3481
      %v3495 = vunpack.c.h.b16 %v3481
      %v3496 = vunpack.c.l.b16 %v3482
      %v3497 = vunpack.c.l.b16 %v3483
      %v3498 = vunpack.c.h.b16 %v3483
      %v3499 = vunpack.c.l.b16 %v3484
      %v3500 = vunpack.c.h.b16 %v3484
      %v3501 = vunpack.c.l.b16 %v3485
      %v3502 = vpack.c.b16 %v3497, %v3492
      %v3503 = vpack.c.b16 %v3498, %v3493
      %v3504 = vpack.c.b16 %v3499, %v3494
      %v3505 = vpack.c.b16 %v3500, %v3495
      %v3506 = vpack.c.b16 %v3501, %v3496
      %3507 = vrot.lane.b32.xlu0 %v3502, 44
      %v3508 = vpop.permute.xlu0 %3507
      %3509 = vrot.lane.b32.xlu0 %v3503, 44
      %v3510 = vpop.permute.xlu0 %3509
      %3511 = vrot.lane.b32.xlu0 %v3504, 44
      %v3512 = vpop.permute.xlu0 %3511
      %3513 = vrot.lane.b32.xlu0 %v3505, 44
      %v3514 = vpop.permute.xlu0 %3513
      %3515 = vrot.lane.b32.xlu0 %v3506, 44
      %v3516 = vpop.permute.xlu0 %3515
      %v3517 = vsel %vm1401, %v3508, %v3510
      %v3518 = vsel %vm1401, %v3510, %v3512
      %v3519 = vsel %vm1401, %v3512, %v3514
      %v3520 = vsel %vm1401, %v3514, %v3516
      %3525 = vst [vmem:[%s2397 + $0x2e0] sm:$0xff] %v3517
      %3526 = vst [vmem:[%s2397 + $0x2e8] sm:$0xff] %v3518
      %3527 = vst [vmem:[%s2397 + $0x2f0] sm:$0xff] %v3519
      %3528 = vst [vmem:[%s2397 + $0x2f8] sm:$0xff] %v3520
      %v3529 = vld [vmem:[%s224 + $0x14] sm:$0xff]
      %v3530 = vld [vmem:[%s224 + $0x1c] sm:$0xff]
      %v3531 = vld [vmem:[%s224 + $0x24] sm:$0xf]
      %v3532 = vld [vmem:[%s224 + $0x3c] sm:$0xff]
      %v3533 = vld [vmem:[%s224 + $0x44] sm:$0xff]
      %v3534 = vld [vmem:[%s224 + $0x4c] sm:$0xf]
      %v3541 = vunpack.c.l.b16 %v3529
      %v3542 = vunpack.c.h.b16 %v3529
      %v3543 = vunpack.c.l.b16 %v3530
      %v3544 = vunpack.c.h.b16 %v3530
      %v3545 = vunpack.c.l.b16 %v3531
      %v3546 = vunpack.c.l.b16 %v3532
      %v3547 = vunpack.c.h.b16 %v3532
      %v3548 = vunpack.c.l.b16 %v3533
      %v3549 = vunpack.c.h.b16 %v3533
      %v3550 = vunpack.c.l.b16 %v3534
      %v3551 = vpack.c.b16 %v3546, %v3541
      %v3552 = vpack.c.b16 %v3547, %v3542
      %v3553 = vpack.c.b16 %v3548, %v3543
      %v3554 = vpack.c.b16 %v3549, %v3544
      %v3555 = vpack.c.b16 %v3550, %v3545
      %3556 = vrot.lane.b32.xlu0 %v3551, 36
      %v3557 = vpop.permute.xlu0 %3556
      %3558 = vrot.lane.b32.xlu0 %v3552, 36
      %v3559 = vpop.permute.xlu0 %3558
      %3560 = vrot.lane.b32.xlu0 %v3553, 36
      %v3561 = vpop.permute.xlu0 %3560
      %3562 = vrot.lane.b32.xlu0 %v3554, 36
      %v3563 = vpop.permute.xlu0 %3562
      %3564 = vrot.lane.b32.xlu0 %v3555, 36
      %v3565 = vpop.permute.xlu0 %3564
      %v3566 = vsel %vm1451, %v3557, %v3559
      %v3567 = vsel %vm1451, %v3559, %v3561
      %v3568 = vsel %vm1451, %v3561, %v3563
      %v3569 = vsel %vm1451, %v3563, %v3565
      %3574 = vst [vmem:[%s2397 + $0x300] sm:$0xff] %v3566
      %3575 = vst [vmem:[%s2397 + $0x308] sm:$0xff] %v3567
      %3576 = vst [vmem:[%s2397 + $0x310] sm:$0xff] %v3568
      %3577 = vst [vmem:[%s2397 + $0x318] sm:$0xff] %v3569
      %v3578 = vld [vmem:[%s224 + $0x14] sm:$0xff]
      %v3579 = vld [vmem:[%s224 + $0x1c] sm:$0xff]
      %v3580 = vld [vmem:[%s224 + $0x24] sm:$0xf]
      %v3581 = vld [vmem:[%s224 + $0x3c] sm:$0xff]
      %v3582 = vld [vmem:[%s224 + $0x44] sm:$0xff]
      %v3583 = vld [vmem:[%s224 + $0x4c] sm:$0xf]
      %v3590 = vunpack.c.l.b16 %v3578
      %v3591 = vunpack.c.h.b16 %v3578
      %v3592 = vunpack.c.l.b16 %v3579
      %v3593 = vunpack.c.h.b16 %v3579
      %v3594 = vunpack.c.l.b16 %v3580
      %v3595 = vunpack.c.l.b16 %v3581
      %v3596 = vunpack.c.h.b16 %v3581
      %v3597 = vunpack.c.l.b16 %v3582
      %v3598 = vunpack.c.h.b16 %v3582
      %v3599 = vunpack.c.l.b16 %v3583
      %v3600 = vpack.c.b16 %v3595, %v3590
      %v3601 = vpack.c.b16 %v3596, %v3591
      %v3602 = vpack.c.b16 %v3597, %v3592
      %v3603 = vpack.c.b16 %v3598, %v3593
      %v3604 = vpack.c.b16 %v3599, %v3594
      %3605 = vrot.lane.b32.xlu0 %v3600, 35
      %v3606 = vpop.permute.xlu0 %3605
      %3607 = vrot.lane.b32.xlu0 %v3601, 35
      %v3608 = vpop.permute.xlu0 %3607
      %3609 = vrot.lane.b32.xlu0 %v3602, 35
      %v3610 = vpop.permute.xlu0 %3609
      %3611 = vrot.lane.b32.xlu0 %v3603, 35
      %v3612 = vpop.permute.xlu0 %3611
      %3613 = vrot.lane.b32.xlu0 %v3604, 35
      %v3614 = vpop.permute.xlu0 %3613
      %v3615 = vsel %vm1501, %v3606, %v3608
      %v3616 = vsel %vm1501, %v3608, %v3610
      %v3617 = vsel %vm1501, %v3610, %v3612
      %v3618 = vsel %vm1501, %v3612, %v3614
      %3623 = vst [vmem:[%s2397 + $0x320] sm:$0xff] %v3615
      %3624 = vst [vmem:[%s2397 + $0x328] sm:$0xff] %v3616
      %3625 = vst [vmem:[%s2397 + $0x330] sm:$0xff] %v3617
      %3626 = vst [vmem:[%s2397 + $0x338] sm:$0xff] %v3618
      %v3627 = vld [vmem:[%s224 + $0x14] sm:$0xff]
      %v3628 = vld [vmem:[%s224 + $0x1c] sm:$0xff]
      %v3629 = vld [vmem:[%s224 + $0x24] sm:$0xf]
      %v3630 = vld [vmem:[%s224 + $0x3c] sm:$0xff]
      %v3631 = vld [vmem:[%s224 + $0x44] sm:$0xff]
      %v3632 = vld [vmem:[%s224 + $0x4c] sm:$0xf]
      %v3639 = vunpack.c.l.b16 %v3627
      %v3640 = vunpack.c.h.b16 %v3627
      %v3641 = vunpack.c.l.b16 %v3628
      %v3642 = vunpack.c.h.b16 %v3628
      %v3643 = vunpack.c.l.b16 %v3629
      %v3644 = vunpack.c.l.b16 %v3630
      %v3645 = vunpack.c.h.b16 %v3630
      %v3646 = vunpack.c.l.b16 %v3631
      %v3647 = vunpack.c.h.b16 %v3631
      %v3648 = vunpack.c.l.b16 %v3632
      %v3649 = vpack.c.b16 %v3644, %v3639
      %v3650 = vpack.c.b16 %v3645, %v3640
      %v3651 = vpack.c.b16 %v3646, %v3641
      %v3652 = vpack.c.b16 %v3647, %v3642
      %v3653 = vpack.c.b16 %v3648, %v3643
      %3654 = vrot.lane.b32.xlu0 %v3649, 34
      %v3655 = vpop.permute.xlu0 %3654
      %3656 = vrot.lane.b32.xlu0 %v3650, 34
      %v3657 = vpop.permute.xlu0 %3656
      %3658 = vrot.lane.b32.xlu0 %v3651, 34
      %v3659 = vpop.permute.xlu0 %3658
      %3660 = vrot.lane.b32.xlu0 %v3652, 34
      %v3661 = vpop.permute.xlu0 %3660
      %3662 = vrot.lane.b32.xlu0 %v3653, 34
      %v3663 = vpop.permute.xlu0 %3662
      %v3664 = vsel %vm1551, %v3655, %v3657
      %v3665 = vsel %vm1551, %v3657, %v3659
      %v3666 = vsel %vm1551, %v3659, %v3661
      %v3667 = vsel %vm1551, %v3661, %v3663
      %3672 = vst [vmem:[%s2397 + $0x340] sm:$0xff] %v3664
      %3673 = vst [vmem:[%s2397 + $0x348] sm:$0xff] %v3665
      %3674 = vst [vmem:[%s2397 + $0x350] sm:$0xff] %v3666
      %3675 = vst [vmem:[%s2397 + $0x358] sm:$0xff] %v3667
      %v3676 = vld [vmem:[%s1] sm:$0xff]
      %v3677 = vld [vmem:[%s1 + $0x8] sm:$0xff]
      %v3678 = vld [vmem:[%s1 + $0x10] sm:$0xff]
      %v3679 = vld [vmem:[%s1 + $0x18] sm:$0xff]
      %v3680 = vld [vmem:[%s1 + $0x20] sm:$0xff]
      %v3681 = vld [vmem:[%s1 + $0x28] sm:$0xff]
      %v3682 = vld [vmem:[%s1 + $0x30] sm:$0xff]
      %v3683 = vld [vmem:[%s1 + $0x38] sm:$0xff]
      %v3684 = vld [vmem:[%s1 + $0x40] sm:$0xff]
      %v3685 = vld [vmem:[%s1 + $0x48] sm:$0xff]
      %v3686 = vld [vmem:[%s1 + $0x50] sm:$0xff]
      %v3687 = vld [vmem:[%s1 + $0x58] sm:$0xff]
      %v3688 = vld [vmem:[%s1 + $0x60] sm:$0xff]
      %v3689 = vld [vmem:[%s1 + $0x68] sm:$0xff]
      %v3690 = vld [vmem:[%s1 + $0x70] sm:$0xff]
      %v3691 = vld [vmem:[%s1 + $0x78] sm:$0xff]
      %v3692 = vld [vmem:[%s2397] sm:$0xff]
      %v3693 = vld [vmem:[%s2397 + $0x8] sm:$0xff]
      %v3694 = vld [vmem:[%s2397 + $0x10] sm:$0xff]
      %v3695 = vld [vmem:[%s2397 + $0x18] sm:$0xff]
      %v3696 = vld [vmem:[%s2397 + $0x20] sm:$0xff]
      %v3697 = vld [vmem:[%s2397 + $0x28] sm:$0xff]
      %v3698 = vld [vmem:[%s2397 + $0x30] sm:$0xff]
      %v3699 = vld [vmem:[%s2397 + $0x38] sm:$0xff]
      %v3700 = vld [vmem:[%s2397 + $0x40] sm:$0xff]
      %v3701 = vld [vmem:[%s2397 + $0x48] sm:$0xff]
      %v3702 = vld [vmem:[%s2397 + $0x50] sm:$0xff]
      %v3703 = vld [vmem:[%s2397 + $0x58] sm:$0xff]
      %v3704 = vld [vmem:[%s2397 + $0x60] sm:$0xff]
      %v3705 = vld [vmem:[%s2397 + $0x68] sm:$0xff]
      %v3706 = vld [vmem:[%s2397 + $0x70] sm:$0xff]
      %v3707 = vld [vmem:[%s2397 + $0x78] sm:$0xff]
      %v3708 = vld [vmem:[%s2397 + $0x80] sm:$0xff]
      %v3709 = vld [vmem:[%s2397 + $0x88] sm:$0xff]
      %v3710 = vld [vmem:[%s2397 + $0x90] sm:$0xff]
      %v3711 = vld [vmem:[%s2397 + $0x98] sm:$0xff]
      %v3712 = vld [vmem:[%s2397 + $0xa0] sm:$0xff]
      %v3713 = vld [vmem:[%s2397 + $0xa8] sm:$0xff]
      %v3714 = vld [vmem:[%s2397 + $0xb0] sm:$0xff]
      %v3715 = vld [vmem:[%s2397 + $0xb8] sm:$0xff]
      %v3716 = vld [vmem:[%s2397 + $0xc0] sm:$0xff]
      %v3717 = vld [vmem:[%s2397 + $0xc8] sm:$0xff]
      %v3718 = vld [vmem:[%s2397 + $0xd0] sm:$0xff]
      %v3719 = vld [vmem:[%s2397 + $0xd8] sm:$0xff]
      %v3720 = vld [vmem:[%s2397 + $0xe0] sm:$0xff]
      %v3721 = vld [vmem:[%s2397 + $0xe8] sm:$0xff]
      %v3722 = vld [vmem:[%s2397 + $0xf0] sm:$0xff]
      %v3723 = vld [vmem:[%s2397 + $0xf8] sm:$0xff]
      %v3724 = vld [vmem:[%s2397 + $0x100] sm:$0xff]
      %v3725 = vld [vmem:[%s2397 + $0x108] sm:$0xff]
      %v3726 = vld [vmem:[%s2397 + $0x110] sm:$0xff]
      %v3727 = vld [vmem:[%s2397 + $0x118] sm:$0xff]
      %v3728 = vld [vmem:[%s2397 + $0x120] sm:$0xff]
      %v3729 = vld [vmem:[%s2397 + $0x128] sm:$0xff]
      %v3730 = vld [vmem:[%s2397 + $0x130] sm:$0xff]
      %v3731 = vld [vmem:[%s2397 + $0x138] sm:$0xff]
      %v3732 = vld [vmem:[%s2397 + $0x140] sm:$0xff]
      %v3733 = vld [vmem:[%s2397 + $0x148] sm:$0xff]
      %v3734 = vld [vmem:[%s2397 + $0x150] sm:$0xff]
      %v3735 = vld [vmem:[%s2397 + $0x158] sm:$0xff]
      %v3736 = vld [vmem:[%s2397 + $0x160] sm:$0xff]
      %v3737 = vld [vmem:[%s2397 + $0x168] sm:$0xff]
      %v3738 = vld [vmem:[%s2397 + $0x170] sm:$0xff]
      %v3739 = vld [vmem:[%s2397 + $0x178] sm:$0xff]
      %v3740 = vld [vmem:[%s2397 + $0x180] sm:$0xff]
      %v3741 = vld [vmem:[%s2397 + $0x188] sm:$0xff]
      %v3742 = vld [vmem:[%s2397 + $0x190] sm:$0xff]
      %v3743 = vld [vmem:[%s2397 + $0x198] sm:$0xff]
      %v3744 = vld [vmem:[%s2397 + $0x1a0] sm:$0xff]
      %v3745 = vld [vmem:[%s2397 + $0x1a8] sm:$0xff]
      %v3746 = vld [vmem:[%s2397 + $0x1b0] sm:$0xff]
      %v3747 = vld [vmem:[%s2397 + $0x1b8] sm:$0xff]
      %v3748 = vld [vmem:[%s2397 + $0x1c0] sm:$0xff]
      %v3749 = vld [vmem:[%s2397 + $0x1c8] sm:$0xff]
      %v3750 = vld [vmem:[%s2397 + $0x1d0] sm:$0xff]
      %v3751 = vld [vmem:[%s2397 + $0x1d8] sm:$0xff]
      %v3752 = vld [vmem:[%s2397 + $0x1e0] sm:$0xff]
      %v3753 = vld [vmem:[%s2397 + $0x1e8] sm:$0xff]
      %v3754 = vld [vmem:[%s2397 + $0x1f0] sm:$0xff]
      %v3755 = vld [vmem:[%s2397 + $0x1f8] sm:$0xff]
      %v3756 = vld [vmem:[%s2397 + $0x200] sm:$0xff]
      %v3757 = vld [vmem:[%s2397 + $0x208] sm:$0xff]
      %v3758 = vld [vmem:[%s2397 + $0x210] sm:$0xff]
      %v3759 = vld [vmem:[%s2397 + $0x218] sm:$0xff]
      %v3760 = vld [vmem:[%s2397 + $0x220] sm:$0xff]
      %v3761 = vld [vmem:[%s2397 + $0x228] sm:$0xff]
      %v3762 = vld [vmem:[%s2397 + $0x230] sm:$0xff]
      %v3763 = vld [vmem:[%s2397 + $0x238] sm:$0xff]
      %v3764 = vld [vmem:[%s2397 + $0x240] sm:$0xff]
      %v3765 = vld [vmem:[%s2397 + $0x248] sm:$0xff]
      %v3766 = vld [vmem:[%s2397 + $0x250] sm:$0xff]
      %v3767 = vld [vmem:[%s2397 + $0x258] sm:$0xff]
      %v3768 = vld [vmem:[%s2397 + $0x260] sm:$0xff]
      %v3769 = vld [vmem:[%s2397 + $0x268] sm:$0xff]
      %v3770 = vld [vmem:[%s2397 + $0x270] sm:$0xff]
      %v3771 = vld [vmem:[%s2397 + $0x278] sm:$0xff]
      %v3772 = vld [vmem:[%s2397 + $0x280] sm:$0xff]
      %v3773 = vld [vmem:[%s2397 + $0x288] sm:$0xff]
      %v3774 = vld [vmem:[%s2397 + $0x290] sm:$0xff]
      %v3775 = vld [vmem:[%s2397 + $0x298] sm:$0xff]
      %v3776 = vld [vmem:[%s2397 + $0x2a0] sm:$0xff]
      %v3777 = vld [vmem:[%s2397 + $0x2a8] sm:$0xff]
      %v3778 = vld [vmem:[%s2397 + $0x2b0] sm:$0xff]
      %v3779 = vld [vmem:[%s2397 + $0x2b8] sm:$0xff]
      %v3780 = vld [vmem:[%s2397 + $0x2c0] sm:$0xff]
      %v3781 = vld [vmem:[%s2397 + $0x2c8] sm:$0xff]
      %v3782 = vld [vmem:[%s2397 + $0x2d0] sm:$0xff]
      %v3783 = vld [vmem:[%s2397 + $0x2d8] sm:$0xff]
      %v3784 = vld [vmem:[%s2397 + $0x2e0] sm:$0xff]
      %v3785 = vld [vmem:[%s2397 + $0x2e8] sm:$0xff]
      %v3786 = vld [vmem:[%s2397 + $0x2f0] sm:$0xff]
      %v3787 = vld [vmem:[%s2397 + $0x2f8] sm:$0xff]
      %v3788 = vld [vmem:[%s2397 + $0x300] sm:$0xff]
      %v3789 = vld [vmem:[%s2397 + $0x308] sm:$0xff]
      %v3790 = vld [vmem:[%s2397 + $0x310] sm:$0xff]
      %v3791 = vld [vmem:[%s2397 + $0x318] sm:$0xff]
      %v3792 = vld [vmem:[%s2397 + $0x320] sm:$0xff]
      %v3793 = vld [vmem:[%s2397 + $0x328] sm:$0xff]
      %v3794 = vld [vmem:[%s2397 + $0x330] sm:$0xff]
      %v3795 = vld [vmem:[%s2397 + $0x338] sm:$0xff]
      %v3796 = vld [vmem:[%s2397 + $0x340] sm:$0xff]
      %v3797 = vld [vmem:[%s2397 + $0x348] sm:$0xff]
      %v3798 = vld [vmem:[%s2397 + $0x350] sm:$0xff]
      %v3799 = vld [vmem:[%s2397 + $0x358] sm:$0xff]
      %v3816 = vunpack.c.l.b16 %v3676
      %v3817 = vunpack.c.h.b16 %v3676
      %v3818 = vunpack.c.l.b16 %v3677
      %v3819 = vunpack.c.h.b16 %v3677
      %v3820 = vunpack.c.l.b16 %v3678
      %v3821 = vunpack.c.h.b16 %v3678
      %v3822 = vunpack.c.l.b16 %v3679
      %v3823 = vunpack.c.h.b16 %v3679
      %v3824 = vunpack.c.l.b16 %v3680
      %v3825 = vunpack.c.h.b16 %v3680
      %v3826 = vunpack.c.l.b16 %v3681
      %v3827 = vunpack.c.h.b16 %v3681
      %v3828 = vunpack.c.l.b16 %v3682
      %v3829 = vunpack.c.h.b16 %v3682
      %v3830 = vunpack.c.l.b16 %v3683
      %v3831 = vunpack.c.h.b16 %v3683
      %v3832 = vunpack.c.l.b16 %v3684
      %v3833 = vunpack.c.h.b16 %v3684
      %v3834 = vunpack.c.l.b16 %v3685
      %v3835 = vunpack.c.h.b16 %v3685
      %v3836 = vunpack.c.l.b16 %v3686
      %v3837 = vunpack.c.h.b16 %v3686
      %v3838 = vunpack.c.l.b16 %v3687
      %v3839 = vunpack.c.h.b16 %v3687
      %v3840 = vunpack.c.l.b16 %v3688
      %v3841 = vunpack.c.h.b16 %v3688
      %v3842 = vunpack.c.l.b16 %v3689
      %v3843 = vunpack.c.h.b16 %v3689
      %v3844 = vunpack.c.l.b16 %v3690
      %v3845 = vunpack.c.h.b16 %v3690
      %v3846 = vunpack.c.l.b16 %v3691
      %v3847 = vunpack.c.h.b16 %v3691
      %v3848 = vpack.c.b16 %v3820, %v3816
      %v3849 = vpack.c.b16 %v3821, %v3817
      %v3850 = vpack.c.b16 %v3822, %v3818
      %v3851 = vpack.c.b16 %v3823, %v3819
      %v3852 = vpack.c.b16 %v3828, %v3824
      %v3853 = vpack.c.b16 %v3829, %v3825
      %v3854 = vpack.c.b16 %v3830, %v3826
      %v3855 = vpack.c.b16 %v3831, %v3827
      %v3856 = vpack.c.b16 %v3836, %v3832
      %v3857 = vpack.c.b16 %v3837, %v3833
      %v3858 = vpack.c.b16 %v3838, %v3834
      %v3859 = vpack.c.b16 %v3839, %v3835
      %v3860 = vpack.c.b16 %v3844, %v3840
      %v3861 = vpack.c.b16 %v3845, %v3841
      %v3862 = vpack.c.b16 %v3846, %v3842
      %v3863 = vpack.c.b16 %v3847, %v3843
      %v3877 = vsel %vm1764, %v3851, 0
      %v3880 = vsel %vm1764, %v3855, 0
      %v3883 = vsel %vm1764, %v3859, 0
      %v3886 = vsel %vm1764, %v3863, 0
      %3888 = vmatprep.subr.bf16.mxu0 %v3693
      %3889 = vmatpush1.bf16.msra.mxu0 %v3692
      %3890 = vmatprep.subr.bf16.mxu0 %v3697
      %3891 = vmatpush1.bf16.msra.mxu0 %v3696
      %3892 = vmatprep.subr.bf16.mxu0 %v3701
      %3893 = vmatpush1.bf16.msra.mxu0 %v3700
      %3894 = vmatprep.subr.bf16.mxu0 %v3705
      %3895 = vmatpush1.bf16.msra.mxu0 %v3704
      %3896 = vmatprep.subr.bf16.mxu0 %v3709
      %3897 = vmatpush1.bf16.msra.mxu0 %v3708
      %3898 = vmatprep.subr.bf16.mxu0 %v3713
      %3899 = vmatpush1.bf16.msra.mxu0 %v3712
      %3900 = vmatprep.subr.bf16.mxu0 %v3717
      %3901 = vmatpush1.bf16.msra.mxu0 %v3716
      %3902 = vmatprep.subr.bf16.mxu0 %v3721
      %3903 = vmatpush1.bf16.msra.mxu0 %v3720
      %3904 = vmatprep.subr.bf16.mxu0 %v3725
      %3905 = vmatpush1.bf16.msra.mxu0 %v3724
      %3906 = vmatprep.subr.bf16.mxu0 %v3729
      %3907 = vmatpush1.bf16.msra.mxu0 %v3728
      %3908 = vmatprep.subr.bf16.mxu0 %v3733
      %3909 = vmatpush1.bf16.msra.mxu0 %v3732
      %3910 = vmatprep.subr.bf16.mxu0 %v3737
      %3911 = vmatpush1.bf16.msra.mxu0 %v3736
      %3912 = vmatprep.subr.bf16.mxu0 %v3741
      %3913 = vmatpush1.bf16.msra.mxu0 %v3740
      %3914 = vmatprep.subr.bf16.mxu0 %v3745
      %3915 = vmatpush1.bf16.msra.mxu0 %v3744
      %3916 = vmatprep.subr.bf16.mxu0 %v3749
      %3917 = vmatpush1.bf16.msra.mxu0 %v3748
      %3918 = vmatprep.subr.bf16.mxu0 %v3753
      %3919 = vmatpush1.bf16.msra.mxu0 %v3752
      %3920 = vmatprep.mubr.bf16.mxu0 %v3849
      %3921 = vmatmul.mubr.bf16.gmra.mrb[0].mxu0 %v3848
      %v3922 = vpop.f32.mrb[0].mxu0
      %v3923 = vadd.f32 0.0, %v3922
      %v3924 = vpop.f32.mrb[0].mxu0
      %v3925 = vadd.f32 0.0, %v3924
      %v3926 = vpop.f32.mrb[0].mxu0
      %v3927 = vadd.f32 0.0, %v3926
      %v3928 = vpop.f32.mrb[0].mxu0
      %v3929 = vadd.f32 0.0, %v3928
      %3930 = vmatprep.mubr.bf16.mxu0 %v3853
      %3931 = vmatmul.mubr.bf16.gmra.mrb[0].mxu0 %v3852
      %v3932 = vpop.f32.mrb[0].mxu0
      %v3933 = vadd.f32 0.0, %v3932
      %v3934 = vpop.f32.mrb[0].mxu0
      %v3935 = vadd.f32 0.0, %v3934
      %v3936 = vpop.f32.mrb[0].mxu0
      %v3937 = vadd.f32 0.0, %v3936
      %v3938 = vpop.f32.mrb[0].mxu0
      %v3939 = vadd.f32 0.0, %v3938
      %3940 = vmatprep.mubr.bf16.mxu0 %v3857
      %3941 = vmatmul.mubr.bf16.gmra.mrb[0].mxu0 %v3856
      %v3942 = vpop.f32.mrb[0].mxu0
      %v3943 = vadd.f32 0.0, %v3942
      %v3944 = vpop.f32.mrb[0].mxu0
      %v3945 = vadd.f32 0.0, %v3944
      %v3946 = vpop.f32.mrb[0].mxu0
      %v3947 = vadd.f32 0.0, %v3946
      %v3948 = vpop.f32.mrb[0].mxu0
      %v3949 = vadd.f32 0.0, %v3948
      %3950 = vmatprep.mubr.bf16.mxu0 %v3861
      %3951 = vmatmul.mubr.bf16.gmra.mrb[0].mxu0 %v3860
      %v3952 = vpop.f32.mrb[0].mxu0
      %v3953 = vadd.f32 0.0, %v3952
      %v3954 = vpop.f32.mrb[0].mxu0
      %v3955 = vadd.f32 0.0, %v3954
      %v3956 = vpop.f32.mrb[0].mxu0
      %v3957 = vadd.f32 0.0, %v3956
      %v3958 = vpop.f32.mrb[0].mxu0
      %v3959 = vadd.f32 0.0, %v3958
      %3960 = vdwg.mxu0
      %3961 = vmatprep.subr.bf16.mxu0 %v3757
      %3962 = vmatpush1.bf16.msra.mxu0 %v3756
      %3963 = vmatprep.subr.bf16.mxu0 %v3761
      %3964 = vmatpush1.bf16.msra.mxu0 %v3760
      %3965 = vmatprep.subr.bf16.mxu0 %v3765
      %3966 = vmatpush1.bf16.msra.mxu0 %v3764
      %3967 = vmatprep.subr.bf16.mxu0 %v3769
      %3968 = vmatpush1.bf16.msra.mxu0 %v3768
      %3969 = vmatprep.subr.bf16.mxu0 %v3773
      %3970 = vmatpush1.bf16.msra.mxu0 %v3772
      %3971 = vmatprep.subr.bf16.mxu0 %v3777
      %3972 = vmatpush1.bf16.msra.mxu0 %v3776
      %3973 = vmatprep.subr.bf16.mxu0 %v3781
      %3974 = vmatpush1.bf16.msra.mxu0 %v3780
      %3975 = vmatprep.subr.bf16.mxu0 %v3785
      %3976 = vmatpush1.bf16.msra.mxu0 %v3784
      %3977 = vmatprep.subr.bf16.mxu0 %v3789
      %3978 = vmatpush1.bf16.msra.mxu0 %v3788
      %3979 = vmatprep.subr.bf16.mxu0 %v3793
      %3980 = vmatpush1.bf16.msra.mxu0 %v3792
      %3981 = vmatprep.subr.bf16.mxu0 %v3797
      %3982 = vmatpush1.bf16.msra.mxu0 %v3796
      %3983 = vmatprep.subr.bf16.mxu0 0
      %3984 = vmatpush1.bf16.msra.mxu0 0
      %3985 = vmatprep.subr.bf16.mxu0 0
      %3986 = vmatpush1.bf16.msra.mxu0 0
      %3987 = vmatprep.subr.bf16.mxu0 0
      %3988 = vmatpush1.bf16.msra.mxu0 0
      %3989 = vmatprep.subr.bf16.mxu0 0
      %3990 = vmatpush1.bf16.msra.mxu0 0
      %3991 = vmatprep.subr.bf16.mxu0 0
      %3992 = vmatpush1.bf16.msra.mxu0 0
      %3993 = vmatprep.mubr.bf16.mxu0 %v3877
      %3994 = vmatmul.mubr.bf16.gmra.mrb[0].mxu0 %v3850
      %v3995 = vpop.f32.mrb[0].mxu0
      %v3996 = vadd.f32 %v3923, %v3995
      %v3997 = vpop.f32.mrb[0].mxu0
      %v3998 = vadd.f32 %v3925, %v3997
      %v3999 = vpop.f32.mrb[0].mxu0
      %v4000 = vadd.f32 %v3927, %v3999
      %v4001 = vpop.f32.mrb[0].mxu0
      %v4002 = vadd.f32 %v3929, %v4001
      %4003 = vmatprep.mubr.bf16.mxu0 %v3880
      %4004 = vmatmul.mubr.bf16.gmra.mrb[0].mxu0 %v3854
      %v4005 = vpop.f32.mrb[0].mxu0
      %v4006 = vadd.f32 %v3933, %v4005
      %v4007 = vpop.f32.mrb[0].mxu0
      %v4008 = vadd.f32 %v3935, %v4007
      %v4009 = vpop.f32.mrb[0].mxu0
      %v4010 = vadd.f32 %v3937, %v4009
      %v4011 = vpop.f32.mrb[0].mxu0
      %v4012 = vadd.f32 %v3939, %v4011
      %4013 = vmatprep.mubr.bf16.mxu0 %v3883
      %4014 = vmatmul.mubr.bf16.gmra.mrb[0].mxu0 %v3858
      %v4015 = vpop.f32.mrb[0].mxu0
      %v4016 = vadd.f32 %v3943, %v4015
      %v4017 = vpop.f32.mrb[0].mxu0
      %v4018 = vadd.f32 %v3945, %v4017
      %v4019 = vpop.f32.mrb[0].mxu0
      %v4020 = vadd.f32 %v3947, %v4019
      %v4021 = vpop.f32.mrb[0].mxu0
      %v4022 = vadd.f32 %v3949, %v4021
      %4023 = vmatprep.mubr.bf16.mxu0 %v3886
      %4024 = vmatmul.mubr.bf16.gmra.mrb[0].mxu0 %v3862
      %v4025 = vpop.f32.mrb[0].mxu0
      %v4026 = vadd.f32 %v3953, %v4025
      %v4027 = vpop.f32.mrb[0].mxu0
      %v4028 = vadd.f32 %v3955, %v4027
      %v4029 = vpop.f32.mrb[0].mxu0
      %v4030 = vadd.f32 %v3957, %v4029
      %v4031 = vpop.f32.mrb[0].mxu0
      %v4032 = vadd.f32 %v3959, %v4031
      %4033 = vdwg.mxu0
      %4034 = vmatprep.subr.bf16.mxu0 %v3695
      %4035 = vmatpush1.bf16.msra.mxu0 %v3694
      %4036 = vmatprep.subr.bf16.mxu0 %v3699
      %4037 = vmatpush1.bf16.msra.mxu0 %v3698
      %4038 = vmatprep.subr.bf16.mxu0 %v3703
      %4039 = vmatpush1.bf16.msra.mxu0 %v3702
      %4040 = vmatprep.subr.bf16.mxu0 %v3707
      %4041 = vmatpush1.bf16.msra.mxu0 %v3706
      %4042 = vmatprep.subr.bf16.mxu0 %v3711
      %4043 = vmatpush1.bf16.msra.mxu0 %v3710
      %4044 = vmatprep.subr.bf16.mxu0 %v3715
      %4045 = vmatpush1.bf16.msra.mxu0 %v3714
      %4046 = vmatprep.subr.bf16.mxu0 %v3719
      %4047 = vmatpush1.bf16.msra.mxu0 %v3718
      %4048 = vmatprep.subr.bf16.mxu0 %v3723
      %4049 = vmatpush1.bf16.msra.mxu0 %v3722
      %4050 = vmatprep.subr.bf16.mxu0 %v3727
      %4051 = vmatpush1.bf16.msra.mxu0 %v3726
      %4052 = vmatprep.subr.bf16.mxu0 %v3731
      %4053 = vmatpush1.bf16.msra.mxu0 %v3730
      %4054 = vmatprep.subr.bf16.mxu0 %v3735
      %4055 = vmatpush1.bf16.msra.mxu0 %v3734
      %4056 = vmatprep.subr.bf16.mxu0 %v3739
      %4057 = vmatpush1.bf16.msra.mxu0 %v3738
      %4058 = vmatprep.subr.bf16.mxu0 %v3743
      %4059 = vmatpush1.bf16.msra.mxu0 %v3742
      %4060 = vmatprep.subr.bf16.mxu0 %v3747
      %4061 = vmatpush1.bf16.msra.mxu0 %v3746
      %4062 = vmatprep.subr.bf16.mxu0 %v3751
      %4063 = vmatpush1.bf16.msra.mxu0 %v3750
      %4064 = vmatprep.subr.bf16.mxu0 %v3755
      %4065 = vmatpush1.bf16.msra.mxu0 %v3754
      %4066 = vmatprep.mubr.bf16.mxu0 %v3849
      %4067 = vmatmul.mubr.bf16.gmra.mrb[0].mxu0 %v3848
      %v4068 = vpop.f32.mrb[0].mxu0
      %v4069 = vadd.f32 0.0, %v4068
      %v4070 = vpop.f32.mrb[0].mxu0
      %v4071 = vadd.f32 0.0, %v4070
      %v4072 = vpop.f32.mrb[0].mxu0
      %v4073 = vadd.f32 0.0, %v4072
      %v4074 = vpop.f32.mrb[0].mxu0
      %v4075 = vadd.f32 0.0, %v4074
      %4076 = vmatprep.mubr.bf16.mxu0 %v3853
      %4077 = vmatmul.mubr.bf16.gmra.mrb[0].mxu0 %v3852
      %v4078 = vpop.f32.mrb[0].mxu0
      %v4079 = vadd.f32 0.0, %v4078
      %v4080 = vpop.f32.mrb[0].mxu0
      %v4081 = vadd.f32 0.0, %v4080
      %v4082 = vpop.f32.mrb[0].mxu0
      %v4083 = vadd.f32 0.0, %v4082
      %v4084 = vpop.f32.mrb[0].mxu0
      %v4085 = vadd.f32 0.0, %v4084
      %4086 = vmatprep.mubr.bf16.mxu0 %v3857
      %4087 = vmatmul.mubr.bf16.gmra.mrb[0].mxu0 %v3856
      %v4088 = vpop.f32.mrb[0].mxu0
      %v4089 = vadd.f32 0.0, %v4088
      %v4090 = vpop.f32.mrb[0].mxu0
      %v4091 = vadd.f32 0.0, %v4090
      %v4092 = vpop.f32.mrb[0].mxu0
      %v4093 = vadd.f32 0.0, %v4092
      %v4094 = vpop.f32.mrb[0].mxu0
      %v4095 = vadd.f32 0.0, %v4094
      %4096 = vmatprep.mubr.bf16.mxu0 %v3861
      %4097 = vmatmul.mubr.bf16.gmra.mrb[0].mxu0 %v3860
      %v4098 = vpop.f32.mrb[0].mxu0
      %v4099 = vadd.f32 0.0, %v4098
      %v4100 = vpop.f32.mrb[0].mxu0
      %v4101 = vadd.f32 0.0, %v4100
      %v4102 = vpop.f32.mrb[0].mxu0
      %v4103 = vadd.f32 0.0, %v4102
      %v4104 = vpop.f32.mrb[0].mxu0
      %v4105 = vadd.f32 0.0, %v4104
      %4106 = vdwg.mxu0
      %4107 = vmatprep.subr.bf16.mxu0 %v3759
      %4108 = vmatpush1.bf16.msra.mxu0 %v3758
      %4109 = vmatprep.subr.bf16.mxu0 %v3763
      %4110 = vmatpush1.bf16.msra.mxu0 %v3762
      %4111 = vmatprep.subr.bf16.mxu0 %v3767
      %4112 = vmatpush1.bf16.msra.mxu0 %v3766
      %4113 = vmatprep.subr.bf16.mxu0 %v3771
      %4114 = vmatpush1.bf16.msra.mxu0 %v3770
      %4115 = vmatprep.subr.bf16.mxu0 %v3775
      %4116 = vmatpush1.bf16.msra.mxu0 %v3774
      %4117 = vmatprep.subr.bf16.mxu0 %v3779
      %4118 = vmatpush1.bf16.msra.mxu0 %v3778
      %4119 = vmatprep.subr.bf16.mxu0 %v3783
      %4120 = vmatpush1.bf16.msra.mxu0 %v3782
      %4121 = vmatprep.subr.bf16.mxu0 %v3787
      %4122 = vmatpush1.bf16.msra.mxu0 %v3786
      %4123 = vmatprep.subr.bf16.mxu0 %v3791
      %4124 = vmatpush1.bf16.msra.mxu0 %v3790
      %4125 = vmatprep.subr.bf16.mxu0 %v3795
      %4126 = vmatpush1.bf16.msra.mxu0 %v3794
      %4127 = vmatprep.subr.bf16.mxu0 %v3799
      %4128 = vmatpush1.bf16.msra.mxu0 %v3798
      %4129 = vmatprep.subr.bf16.mxu0 0
      %4130 = vmatpush1.bf16.msra.mxu0 0
      %4131 = vmatprep.subr.bf16.mxu0 0
      %4132 = vmatpush1.bf16.msra.mxu0 0
      %4133 = vmatprep.subr.bf16.mxu0 0
      %4134 = vmatpush1.bf16.msra.mxu0 0
      %4135 = vmatprep.subr.bf16.mxu0 0
      %4136 = vmatpush1.bf16.msra.mxu0 0
      %4137 = vmatprep.subr.bf16.mxu0 0
      %4138 = vmatpush1.bf16.msra.mxu0 0
      %4139 = vmatprep.mubr.bf16.mxu0 %v3877
      %4140 = vmatmul.mubr.bf16.gmra.mrb[0].mxu0 %v3850
      %v4141 = vpop.f32.mrb[0].mxu0
      %v4142 = vadd.f32 %v4069, %v4141
      %v4143 = vpop.f32.mrb[0].mxu0
      %v4144 = vadd.f32 %v4071, %v4143
      %v4145 = vpop.f32.mrb[0].mxu0
      %v4146 = vadd.f32 %v4073, %v4145
      %v4147 = vpop.f32.mrb[0].mxu0
      %v4148 = vadd.f32 %v4075, %v4147
      %4149 = vmatprep.mubr.bf16.mxu0 %v3880
      %4150 = vmatmul.mubr.bf16.gmra.mrb[0].mxu0 %v3854
      %v4151 = vpop.f32.mrb[0].mxu0
      %v4152 = vadd.f32 %v4079, %v4151
      %v4153 = vpop.f32.mrb[0].mxu0
      %v4154 = vadd.f32 %v4081, %v4153
      %v4155 = vpop.f32.mrb[0].mxu0
      %v4156 = vadd.f32 %v4083, %v4155
      %v4157 = vpop.f32.mrb[0].mxu0
      %v4158 = vadd.f32 %v4085, %v4157
      %4159 = vmatprep.mubr.bf16.mxu0 %v3883
      %4160 = vmatmul.mubr.bf16.gmra.mrb[0].mxu0 %v3858
      %v4161 = vpop.f32.mrb[0].mxu0
      %v4162 = vadd.f32 %v4089, %v4161
      %v4163 = vpop.f32.mrb[0].mxu0
      %v4164 = vadd.f32 %v4091, %v4163
      %v4165 = vpop.f32.mrb[0].mxu0
      %v4166 = vadd.f32 %v4093, %v4165
      %v4167 = vpop.f32.mrb[0].mxu0
      %v4168 = vadd.f32 %v4095, %v4167
      %4169 = vmatprep.mubr.bf16.mxu0 %v3886
      %4170 = vmatmul.mubr.bf16.gmra.mrb[0].mxu0 %v3862
      %v4171 = vpop.f32.mrb[0].mxu0
      %v4172 = vadd.f32 %v4099, %v4171
      %v4173 = vpop.f32.mrb[0].mxu0
      %v4174 = vadd.f32 %v4101, %v4173
      %v4175 = vpop.f32.mrb[0].mxu0
      %v4176 = vadd.f32 %v4103, %v4175
      %v4177 = vpop.f32.mrb[0].mxu0
      %v4178 = vadd.f32 %v4105, %v4177
      %4179 = vdwg.mxu0
      %v4180 = vld [vmem:[%s2] sm:$0xff]
      %v4181 = vld [vmem:[%s2 + $0x8] sm:$0xff]
      %v4182 = vld [vmem:[%s2 + $0x10] sm:$0xff]
      %v4183 = vld [vmem:[%s2 + $0x18] sm:$0xff]
      %v4184 = vld [vmem:[%s2 + $0x20] sm:$0xff]
      %v4185 = vld [vmem:[%s2 + $0x28] sm:$0xff]
      %v4186 = vld [vmem:[%s2 + $0x30] sm:$0xff]
      %v4187 = vld [vmem:[%s2 + $0x38] sm:$0xff]
      %4189 = vset.pattern.permute.xlu0 0
      %4190 = vperm.xlu0 %4189, %v4180
      %v4191 = vpop.permute.xlu0 %4190
      %4194 = vset.pattern.permute.xlu0 0
      %4195 = vperm.xlu0 %4194, %v4181
      %v4196 = vpop.permute.xlu0 %4195
      %4199 = vset.pattern.permute.xlu0 0
      %4200 = vperm.xlu0 %4199, %v4182
      %v4201 = vpop.permute.xlu0 %4200
      %4204 = vset.pattern.permute.xlu0 0
      %4205 = vperm.xlu0 %4204, %v4183
      %v4206 = vpop.permute.xlu0 %4205
      %4209 = vset.pattern.permute.xlu0 0
      %4210 = vperm.xlu0 %4209, %v4184
      %v4211 = vpop.permute.xlu0 %4210
      %4214 = vset.pattern.permute.xlu0 0
      %4215 = vperm.xlu0 %4214, %v4185
      %v4216 = vpop.permute.xlu0 %4215
      %4219 = vset.pattern.permute.xlu0 0
      %4220 = vperm.xlu0 %4219, %v4186
      %v4221 = vpop.permute.xlu0 %4220
      %4224 = vset.pattern.permute.xlu0 0
      %4225 = vperm.xlu0 %4224, %v4187
      %v4226 = vpop.permute.xlu0 %4225
      %v4228 = vmul.f32 %v3996, %v4191
      %v4229 = vmul.f32 %v3998, %v4191
      %v4230 = vmul.f32 %v4142, %v4191
      %v4231 = vmul.f32 %v4144, %v4191
      %v4232 = vmul.f32 %v4000, %v4196
      %v4233 = vmul.f32 %v4002, %v4196
      %v4234 = vmul.f32 %v4146, %v4196
      %v4235 = vmul.f32 %v4148, %v4196
      %v4236 = vmul.f32 %v4006, %v4201
      %v4237 = vmul.f32 %v4008, %v4201
      %v4238 = vmul.f32 %v4152, %v4201
      %v4239 = vmul.f32 %v4154, %v4201
      %v4240 = vmul.f32 %v4010, %v4206
      %v4241 = vmul.f32 %v4012, %v4206
      %v4242 = vmul.f32 %v4156, %v4206
      %v4243 = vmul.f32 %v4158, %v4206
      %v4244 = vmul.f32 %v4016, %v4211
      %v4245 = vmul.f32 %v4018, %v4211
      %v4246 = vmul.f32 %v4162, %v4211
      %v4247 = vmul.f32 %v4164, %v4211
      %v4248 = vmul.f32 %v4020, %v4216
      %v4249 = vmul.f32 %v4022, %v4216
      %v4250 = vmul.f32 %v4166, %v4216
      %v4251 = vmul.f32 %v4168, %v4216
      %v4252 = vmul.f32 %v4026, %v4221
      %v4253 = vmul.f32 %v4028, %v4221
      %v4254 = vmul.f32 %v4172, %v4221
      %v4255 = vmul.f32 %v4174, %v4221
      %v4256 = vmul.f32 %v4030, %v4226
      %v4257 = vmul.f32 %v4032, %v4226
      %v4258 = vmul.f32 %v4176, %v4226
      %v4259 = vmul.f32 %v4178, %v4226
      %v4260 = vld [vmem:[%s3] sm:$0xff]
      %v4261 = vld [vmem:[%s3 + $0x8] sm:$0xff]
      %v4262 = vld [vmem:[%s3 + $0x10] sm:$0xff]
      %v4263 = vld [vmem:[%s3 + $0x18] sm:$0xff]
      %v4264 = vld [vmem:[%s3 + $0x20] sm:$0xff]
      %v4265 = vld [vmem:[%s3 + $0x28] sm:$0xff]
      %v4266 = vld [vmem:[%s3 + $0x30] sm:$0xff]
      %v4267 = vld [vmem:[%s3 + $0x38] sm:$0xff]
      %4269 = vset.pattern.permute.xlu0 0
      %4270 = vperm.xlu0 %4269, %v4260
      %v4271 = vpop.permute.xlu0 %4270
      %4274 = vset.pattern.permute.xlu0 0
      %4275 = vperm.xlu0 %4274, %v4261
      %v4276 = vpop.permute.xlu0 %4275
      %4279 = vset.pattern.permute.xlu0 0
      %4280 = vperm.xlu0 %4279, %v4262
      %v4281 = vpop.permute.xlu0 %4280
      %4284 = vset.pattern.permute.xlu0 0
      %4285 = vperm.xlu0 %4284, %v4263
      %v4286 = vpop.permute.xlu0 %4285
      %4289 = vset.pattern.permute.xlu0 0
      %4290 = vperm.xlu0 %4289, %v4264
      %v4291 = vpop.permute.xlu0 %4290
      %4294 = vset.pattern.permute.xlu0 0
      %4295 = vperm.xlu0 %4294, %v4265
      %v4296 = vpop.permute.xlu0 %4295
      %4299 = vset.pattern.permute.xlu0 0
      %4300 = vperm.xlu0 %4299, %v4266
      %v4301 = vpop.permute.xlu0 %4300
      %4304 = vset.pattern.permute.xlu0 0
      %4305 = vperm.xlu0 %4304, %v4267
      %v4306 = vpop.permute.xlu0 %4305
      %v4308 = vadd.f32 %v4228, %v4271
      %v4309 = vadd.f32 %v4229, %v4271
      %v4310 = vadd.f32 %v4230, %v4271
      %v4311 = vadd.f32 %v4231, %v4271
      %v4312 = vadd.f32 %v4232, %v4276
      %v4313 = vadd.f32 %v4233, %v4276
      %v4314 = vadd.f32 %v4234, %v4276
      %v4315 = vadd.f32 %v4235, %v4276
      %v4316 = vadd.f32 %v4236, %v4281
      %v4317 = vadd.f32 %v4237, %v4281
      %v4318 = vadd.f32 %v4238, %v4281
      %v4319 = vadd.f32 %v4239, %v4281
      %v4320 = vadd.f32 %v4240, %v4286
      %v4321 = vadd.f32 %v4241, %v4286
      %v4322 = vadd.f32 %v4242, %v4286
      %v4323 = vadd.f32 %v4243, %v4286
      %v4324 = vadd.f32 %v4244, %v4291
      %v4325 = vadd.f32 %v4245, %v4291
      %v4326 = vadd.f32 %v4246, %v4291
      %v4327 = vadd.f32 %v4247, %v4291
      %v4328 = vadd.f32 %v4248, %v4296
      %v4329 = vadd.f32 %v4249, %v4296
      %v4330 = vadd.f32 %v4250, %v4296
      %v4331 = vadd.f32 %v4251, %v4296
      %v4332 = vadd.f32 %v4252, %v4301
      %v4333 = vadd.f32 %v4253, %v4301
      %v4334 = vadd.f32 %v4254, %v4301
      %v4335 = vadd.f32 %v4255, %v4301
      %v4336 = vadd.f32 %v4256, %v4306
      %v4337 = vadd.f32 %v4257, %v4306
      %v4338 = vadd.f32 %v4258, %v4306
      %v4339 = vadd.f32 %v4259, %v4306
      %v4340 = vmax.f32 %v4308, 0.0
      %v4341 = vmax.f32 %v4309, 0.0
      %v4342 = vmax.f32 %v4310, 0.0
      %v4343 = vmax.f32 %v4311, 0.0
      %v4344 = vmax.f32 %v4312, 0.0
      %v4345 = vmax.f32 %v4313, 0.0
      %v4346 = vmax.f32 %v4314, 0.0
      %v4347 = vmax.f32 %v4315, 0.0
      %v4348 = vmax.f32 %v4316, 0.0
      %v4349 = vmax.f32 %v4317, 0.0
      %v4350 = vmax.f32 %v4318, 0.0
      %v4351 = vmax.f32 %v4319, 0.0
      %v4352 = vmax.f32 %v4320, 0.0
      %v4353 = vmax.f32 %v4321, 0.0
      %v4354 = vmax.f32 %v4322, 0.0
      %v4355 = vmax.f32 %v4323, 0.0
      %v4356 = vmax.f32 %v4324, 0.0
      %v4357 = vmax.f32 %v4325, 0.0
      %v4358 = vmax.f32 %v4326, 0.0
      %v4359 = vmax.f32 %v4327, 0.0
      %v4360 = vmax.f32 %v4328, 0.0
      %v4361 = vmax.f32 %v4329, 0.0
      %v4362 = vmax.f32 %v4330, 0.0
      %v4363 = vmax.f32 %v4331, 0.0
      %v4364 = vmax.f32 %v4332, 0.0
      %v4365 = vmax.f32 %v4333, 0.0
      %v4366 = vmax.f32 %v4334, 0.0
      %v4367 = vmax.f32 %v4335, 0.0
      %v4368 = vmax.f32 %v4336, 0.0
      %v4369 = vmax.f32 %v4337, 0.0
      %v4370 = vmax.f32 %v4338, 0.0
      %v4371 = vmax.f32 %v4339, 0.0
      %v4372 = vpack.c.bf16 %v4344, %v4340
      %v4373 = vpack.c.bf16 %v4345, %v4341
      %v4374 = vpack.c.bf16 %v4346, %v4342
      %v4375 = vpack.c.bf16 %v4347, %v4343
      %v4376 = vpack.c.bf16 %v4352, %v4348
      %v4377 = vpack.c.bf16 %v4353, %v4349
      %v4378 = vpack.c.bf16 %v4354, %v4350
      %v4379 = vpack.c.bf16 %v4355, %v4351
      %v4380 = vpack.c.bf16 %v4360, %v4356
      %v4381 = vpack.c.bf16 %v4361, %v4357
      %v4382 = vpack.c.bf16 %v4362, %v4358
      %v4383 = vpack.c.bf16 %v4363, %v4359
      %v4384 = vpack.c.bf16 %v4368, %v4364
      %v4385 = vpack.c.bf16 %v4369, %v4365
      %v4386 = vpack.c.bf16 %v4370, %v4366
      %v4387 = vpack.c.bf16 %v4371, %v4367
      %v4404 = vunpack.c.l.b16 %v4372
      %v4405 = vunpack.c.l.b16 %v4373
      %v4406 = vunpack.c.l.b16 %v4374
      %v4407 = vunpack.c.l.b16 %v4375
      %v4408 = vunpack.c.h.b16 %v4372
      %v4409 = vunpack.c.h.b16 %v4373
      %v4410 = vunpack.c.h.b16 %v4374
      %v4411 = vunpack.c.h.b16 %v4375
      %v4412 = vunpack.c.l.b16 %v4376
      %v4413 = vunpack.c.l.b16 %v4377
      %v4414 = vunpack.c.l.b16 %v4378
      %v4415 = vunpack.c.l.b16 %v4379
      %v4416 = vunpack.c.h.b16 %v4376
      %v4417 = vunpack.c.h.b16 %v4377
      %v4418 = vunpack.c.h.b16 %v4378
      %v4419 = vunpack.c.h.b16 %v4379
      %v4420 = vunpack.c.l.b16 %v4380
      %v4421 = vunpack.c.l.b16 %v4381
      %v4422 = vunpack.c.l.b16 %v4382
      %v4423 = vunpack.c.l.b16 %v4383
      %v4424 = vunpack.c.h.b16 %v4380
      %v4425 = vunpack.c.h.b16 %v4381
      %v4426 = vunpack.c.h.b16 %v4382
      %v4427 = vunpack.c.h.b16 %v4383
      %v4428 = vunpack.c.l.b16 %v4384
      %v4429 = vunpack.c.l.b16 %v4385
      %v4430 = vunpack.c.l.b16 %v4386
      %v4431 = vunpack.c.l.b16 %v4387
      %v4432 = vunpack.c.h.b16 %v4384
      %v4433 = vunpack.c.h.b16 %v4385
      %v4434 = vunpack.c.h.b16 %v4386
      %v4435 = vunpack.c.h.b16 %v4387
      %v4436 = vpack.c.b16 %v4405, %v4404
      %v4437 = vpack.c.b16 %v4407, %v4406
      %v4438 = vpack.c.b16 %v4409, %v4408
      %v4439 = vpack.c.b16 %v4411, %v4410
      %v4440 = vpack.c.b16 %v4413, %v4412
      %v4441 = vpack.c.b16 %v4415, %v4414
      %v4442 = vpack.c.b16 %v4417, %v4416
      %v4443 = vpack.c.b16 %v4419, %v4418
      %v4444 = vpack.c.b16 %v4421, %v4420
      %v4445 = vpack.c.b16 %v4423, %v4422
      %v4446 = vpack.c.b16 %v4425, %v4424
      %v4447 = vpack.c.b16 %v4427, %v4426
      %v4448 = vpack.c.b16 %v4429, %v4428
      %v4449 = vpack.c.b16 %v4431, %v4430
      %v4450 = vpack.c.b16 %v4433, %v4432
      %v4451 = vpack.c.b16 %v4435, %v4434
      %4468 = vst [vmem:[%s233 + $0x10] sm:$0xff] %v4436
      %4469 = vst [vmem:[%s233 + $0x18] sm:$0xff] %v4437
      %4470 = vst [vmem:[%s233 + $0x30] sm:$0xff] %v4438
      %4471 = vst [vmem:[%s233 + $0x38] sm:$0xff] %v4439
      %4472 = vst [vmem:[%s233 + $0x50] sm:$0xff] %v4440
      %4473 = vst [vmem:[%s233 + $0x58] sm:$0xff] %v4441
      %4474 = vst [vmem:[%s233 + $0x70] sm:$0xff] %v4442
      %4475 = vst [vmem:[%s233 + $0x78] sm:$0xff] %v4443
      %4476 = vst [vmem:[%s233 + $0x90] sm:$0xff] %v4444
      %4477 = vst [vmem:[%s233 + $0x98] sm:$0xff] %v4445
      %4478 = vst [vmem:[%s233 + $0xb0] sm:$0xff] %v4446
      %4479 = vst [vmem:[%s233 + $0xb8] sm:$0xff] %v4447
      %4480 = vst [vmem:[%s233 + $0xd0] sm:$0xff] %v4448
      %4481 = vst [vmem:[%s233 + $0xd8] sm:$0xff] %v4449
      %4482 = vst [vmem:[%s233 + $0xf0] sm:$0xff] %v4450
      %4483 = vst [vmem:[%s233 + $0xf8] sm:$0xff] %v4451
      %s4484 = smul.u32 8, %s20
      %p4485 = scmp.lt.s32.totalorder %s19, 1
      %s4486 = scalar_select %p4485, %s19, 1
      %p4487 = scmp.lt.s32.totalorder %s4484, 7
      %s4488 = scalar_select %p4487, %s4484, 7
      %s4489 = smul.addr %s4486, 64
      %s4490 = sadd.s32 %s4488, %s4489
      %s4491 = smul.addr %s4490, 4
      %s4492 = scalar_lea.vmem %s4, %s4491
      // Predicated region
      $region37: #{upblock3d_forward.1} parent=35 // pred_check
        %p4493 = pneg %p138
      $region38: #{upblock3d_forward.1} parent=35 // pred_check_branch
        %4495 = sbr.rel (%p4493) target = $region40
      $region39: #{upblock3d_forward.1} parent=35 // pred_region
        %s4496 = smul.u32 8, %s20
      $region40: #{upblock3d_forward.1} parent=35 // pred_fallthru
        _
    $region36: #{upblock3d_forward.1} parent=5 // pred_fallthru
      _
    %p4497 = scmp.le.s32.totalorder 2, %s10
    // Predicated region
    $region41: #{upblock3d_forward.1} parent=5 // pred_check
      %p4498 = pneg %p4497
    $region42: #{upblock3d_forward.1} parent=5 // pred_check_branch
      %4500 = sbr.rel (%p4498) target = $region44
    $region43: #{upblock3d_forward.1} parent=5 // pred_region
      %s4501 = ssub.s32 %s10, 2
      // Predicated region
      $region45: #{upblock3d_forward.1} parent=43 // pred_check
        %p4502 = pneg %p144
      $region46: #{upblock3d_forward.1} parent=43 // pred_check_branch
        %4504 = sbr.rel (%p4502) target = $region48
      $region47: #{upblock3d_forward.1} parent=43 // pred_region
        %s4505 = smul.u32 8, %s22
        %p4506 = scmp.lt.s32.totalorder %s21, 1
        %s4507 = scalar_select %p4506, %s21, 1
        %p4508 = scmp.lt.s32.totalorder %s4505, 7
        %s4509 = scalar_select %p4508, %s4505, 7
        %s4510 = smul.addr %s4507, 64
        %s4511 = sadd.s32 %s4509, %s4510
        %s4512 = smul.addr %s4511, 4
        %s4513 = scalar_lea.vmem %s4, %s4512
      $region48: #{upblock3d_forward.1} parent=43 // pred_fallthru
        _
    $region44: #{upblock3d_forward.1} parent=5 // pred_fallthru
      _
  $region6: #{upblock3d_forward.1} parent=0 // loop_footer
    %s14 = sadd.s32 1, %s10
  $region7: #{upblock3d_forward.1} parent=0 // loop_footer_branch
    %9 = sbr.rel target = $region3
  $region8: #{upblock3d_forward.1} parent=0 // loop_exit
    _

</llo_original>
